<compile_context>
chip_gen: v5e
topology: v5e:2x2
jax: 0.10.0
libtpu: 0.0.40
codegen_flags: <defaults>
</compile_context>

<pallas_src>
import functools

import jax
import jax.numpy as jnp
from jax import lax
from jax.experimental import pallas as pl
from jax.experimental.pallas import tpu as pltpu


# ----------------------------- model config ----------------------------------

PATCH = 8            # RAFT features live at 1/8 resolution
IN_CH = 3
FDIM = 128           # feature-encoder channels (lane-dense)
HIDDEN = 128         # GRU hidden state (matches real RAFT hdim)
CONTEXT = 128        # context channels (matches real RAFT cdim)
MOTION = 128         # motion-encoder output channels
NUM_ITERS = 5        # matches RAFT(num_iters=5) default in the module

# Explicit scoped-VMEM budget: above the v5e/v6e defaults, comfortably under
# v7x's 64 MiB physical VMEM for the tile sizes chosen below.
VMEM_LIMIT = 32 * 1024 * 1024


# ----------------------------- helpers ---------------------------------------

def _pick_tile(n, target=256):
    """Row-tile size.

    Small problems (n <= 2*target) get a single block: per-grid-step overhead
    (~0.35us) dominates tiny tiles.  Larger problems get the biggest divisor of
    n that is <= target, preferring multiples of 256, then 128, then 8 (MXU row
    dim / sublane alignment).
    """
    if n <= 2 * target:
        return n
    for quantum in (256, 128, 8):
        start = target - (target % quantum)
        for t in range(start, quantum - 1, -quantum):
            if n % t == 0:
                return t
    return n


def _mosaic(dims):
    return pltpu.CompilerParams(dimension_semantics=dims,
                                vmem_limit_bytes=VMEM_LIMIT)


# ----------------------------- encoder matmul kernel --------------------------

def _enc_matmul_kernel(x_ref, w_ref, b_ref, o_ref, *, act, normalize, split):
    x = x_ref[...].astype(jnp.float32)
    if normalize:
        # Module semantics: im*255 at the wrapper, 2*(x/255)-1 inside RAFT.
        # The *255 / /255 pair cancels, so just apply 2*x-1.
        x = 2.0 * x - 1.0
    # bf16 MXU inputs, f32 accumulation.
    y = jnp.dot(x.astype(w_ref.dtype), w_ref[...],
                preferred_element_type=jnp.float32) + b_ref[...]
    if act == "relu":
        o_ref[...] = jnp.maximum(y, 0.0).astype(o_ref.dtype)
    elif act == "cnet_split":
        # context encoder epilogue: tanh -> hidden state, relu -> context
        # (split is a multiple of 128 so both stores stay lane-aligned).
        o_ref[:, :split] = jnp.tanh(y[:, :split]).astype(o_ref.dtype)
        o_ref[:, split:] = jnp.maximum(y[:, split:], 0.0).astype(o_ref.dtype)
    else:
        o_ref[...] = y.astype(o_ref.dtype)


def tiled_matmul(x, w, b, *, act="none", normalize=False, split=0,
                 out_dtype=jnp.float32, rows=None, col_block=0, col_width=None):
    """Row-tiled x @ w + b with fused epilogue.

    `rows` restricts the computation to the first `rows` rows of x;
    `col_block`/`col_width` read a column block of x (no wrapper-side slice).
    """
    xr, xc = x.shape
    rows = xr if rows is None else rows
    K = xc if col_width is None else col_width
    N = w.shape[1]
    tm = _pick_tile(rows)
    kernel = functools.partial(_enc_matmul_kernel, act=act,
                               normalize=normalize, split=split)
    return pl.pallas_call(
        kernel,
        out_shape=jax.ShapeDtypeStruct((rows, N), out_dtype),
        grid=(rows // tm,),
        in_specs=[pl.BlockSpec((tm, K), lambda i: (i, col_block)),
                  pl.BlockSpec((K, N), lambda i: (0, 0)),
                  pl.BlockSpec((1, N), lambda i: (0, 0))],
        out_specs=pl.BlockSpec((tm, N), lambda i: (i, 0)),
        compiler_params=_mosaic(("parallel",)),
    )(x, w, b)


# ----------------------------- fused correlation -> motion contribution -------

def _corr_contrib_kernel(f1_ref, f2_ref, w_ref, b_ref, o_ref):
    a = f1_ref[0, 0]      # (ti, D)  bf16, streamed
    bm = f2_ref[0, 0]     # (HW, D)  bf16, resident per image
    # all-pairs correlation tile (ti, HW): bf16 MXU inputs, f32 accumulation
    c = lax.dot_general(a, bm, (((1,), (1,)), ((), ())),
                        preferred_element_type=jnp.float32)
    # immediately contract against the (scale-folded, bf16) motion-encoder
    # weights so the HW x HW correlation volume never materializes in HBM;
    # bf16 cast halves vreg/VMEM pressure of the intermediate.
    acc = jnp.dot(c.astype(jnp.bfloat16), w_ref[...],
                  preferred_element_type=jnp.float32)
    o_ref[...] = acc + b_ref[...]


def corr_motion_contrib(f, w_corr, b, *, B, HW):
    """f: (2, B, HW, D) bf16 (f[0]=im1 features, f[1]=im2).  Returns (B*HW, MOTION)."""
    D = f.shape[-1]
    MOT = w_corr.shape[1]
    # Asymmetric tiling: only the output-row (i) axis is tiled; f2[b] and
    # w_corr stay fully resident in VMEM (a few MB bf16 at real RAFT HW) so
    # they are DMA'd once per image / once per call instead of once per i.
    ti = _pick_tile(HW)
    ni = HW // ti
    return pl.pallas_call(
        _corr_contrib_kernel,
        out_shape=jax.ShapeDtypeStruct((B * HW, MOT), jnp.float32),
        grid=(B, ni),
        in_specs=[
            pl.BlockSpec((1, 1, ti, D), lambda b_, i: (0, b_, i, 0)),
            pl.BlockSpec((1, 1, HW, D), lambda b_, i: (1, b_, 0, 0)),
            pl.BlockSpec((HW, MOT), lambda b_, i: (0, 0)),
            pl.BlockSpec((1, MOT), lambda b_, i: (0, 0)),
        ],
        out_specs=pl.BlockSpec((ti, MOT), lambda b_, i: (b_ * ni + i, 0)),
        compiler_params=_mosaic(("parallel", "parallel")),
    )(f, f, w_corr, b)


# ----------------------------- fused refinement loop ---------------------------

def _refine_kernel(net_ref, inpc_ref, corrc_ref, wflow_ref, wxm_ref, whzr_ref,
                   wqh_ref, fw_ref, fb_ref, flow_ref, *, num_iters, hidden):
    h0 = net_ref[...]                     # (tm, HIDDEN) f32 GRU state
    inp_c = inpc_ref[...]                 # (tm, 3*HIDDEN) hoisted inp-gate contrib + biases
    corr_c = corrc_ref[...]               # (tm, MOTION)   hoisted corr contrib + menc bias
    wfl_x = wflow_ref[0:1, :]             # (1, MOTION) f32, VPU path
    wfl_y = wflow_ref[1:2, :]
    wxm = wxm_ref[...]                    # (MOTION, 3*HIDDEN) bf16
    whzr = whzr_ref[...]                  # (HIDDEN, 2*HIDDEN) bf16
    wqh = wqh_ref[...]                    # (HIDDEN, HIDDEN)   bf16
    fw_x = fw_ref[0:1, :]                 # (1, HIDDEN) f32, VPU path
    fw_y = fw_ref[1:2, :]
    fb_x = fb_ref[0:1, 0:1]               # (1, 1)
    fb_y = fb_ref[0:1, 1:2]
    tm = h0.shape[0]
    bf16 = jnp.bfloat16

    def body(_, carry):
        h, fx, fy = carry                 # f32 state / flow accumulators
        # motion encoder: relu([corr, flow] @ Wm + bm); flow part on the VPU
        fcontrib = fx * wfl_x + fy * wfl_y
        motion = jnp.maximum(corr_c + fcontrib, 0.0)
        # packed GRU gates: xg = [z|r|q] x-contribution, hg = [z|r] h-contribution
        # (bf16 MXU inputs, f32 accumulation; h itself stays f32 across iterations)
        xg = inp_c + jnp.dot(motion.astype(bf16), wxm,
                             preferred_element_type=jnp.float32)
        hg = jnp.dot(h.astype(bf16), whzr, preferred_element_type=jnp.float32)
        z = jax.nn.sigmoid(xg[:, :hidden] + hg[:, :hidden])
        r = jax.nn.sigmoid(xg[:, hidden:2 * hidden] + hg[:, hidden:])
        q = jnp.tanh(xg[:, 2 * hidden:]
                     + jnp.dot((r * h).astype(bf16), wqh,
                               preferred_element_type=jnp.float32))
        h = (1.0 - z) * h + z * q
        # flow-head delta (N=2) on VPU multiplies + lane reductions instead of
        # wasting 2/256 MXU columns per unrolled iteration.
        dx = jnp.sum(h * fw_x, axis=-1, keepdims=True) + fb_x
        dy = jnp.sum(h * fw_y, axis=-1, keepdims=True) + fb_y
        return h, fx + dx, fy + dy

    zeros = jnp.zeros((tm, 1), jnp.float32)
    _, fx, fy = lax.fori_loop(0, num_iters, body, (h0, zeros, zeros),
                              unroll=True)
    # Single writeback after the last iteration (output is tiny; it is consumed
    # immediately by the upsample kernel which produces the lane-dense result).
    flow_ref[:, 0:1] = fx
    flow_ref[:, 1:2] = fy


def refine(c_act, inp_contrib, corr_contrib, p, *, num_iters):
    M = corr_contrib.shape[0]
    tm = _pick_tile(M)
    kernel = functools.partial(_refine_kernel, num_iters=num_iters, hidden=HIDDEN)
    args = (c_act, inp_contrib, corr_contrib, p["w_flow"], p["wx_motion"],
            p["wh_zr"], p["wqh"], p["fhead_w"], p["fhead_b"])
    in_specs = [
        pl.BlockSpec((tm, HIDDEN), lambda i: (i, 0)),        # net = tanh half of c_act
        pl.BlockSpec((tm, 3 * HIDDEN), lambda i: (i, 0)),
        pl.BlockSpec((tm, MOTION), lambda i: (i, 0)),
    ] + [pl.BlockSpec(a.shape, lambda i: (0, 0)) for a in args[3:]]
    return pl.pallas_call(
        kernel,
        out_shape=jax.ShapeDtypeStruct((M, 2), jnp.float32),
        grid=(M // tm,),
        in_specs=in_specs,
        out_specs=pl.BlockSpec((tm, 2), lambda i: (i, 0)),
        compiler_params=_mosaic(("parallel",)),
    )(*args)


# ----------------------------- fused 8x upsample + NCHW writeback --------------

def _upsample_kernel(flow_ref, e_ref, out_ref):
    # flow_ref: (1, Wf, 2) low-res flow for one (image, patch-row)
    # e_ref:    (Wf, W) expansion matrix, E[wf, w] = 8.0 if w//PATCH == wf
    #           (the RAFT x8 flow scale is folded into E)
    fl = flow_ref[0]                                         # (Wf, 2) f32
    e = e_ref[...]                                           # (Wf, W)
    # per-channel lane-dense row: sum over the Wf sublanes (VPU + sublane reduce)
    row_x = jnp.sum(fl[:, 0:1] * e, axis=0, keepdims=True)   # (1, W)
    row_y = jnp.sum(fl[:, 1:2] * e, axis=0, keepdims=True)   # (1, W)
    patch, w = out_ref.shape[2], out_ref.shape[3]
    out_ref[0, 0] = jnp.broadcast_to(row_x, (patch, w))
    out_ref[0, 1] = jnp.broadcast_to(row_y, (patch, w))


def upsample8(flow, *, B, Hf, Wf):
    """flow: (B*Hf*Wf, 2) low-res flow.  Returns NCHW (B, 2, H, W), x8 nearest."""
    # TODO(synk): real RAFT uses a learned convex-combination upsampling mask.
    H, W = Hf * PATCH, Wf * PATCH
    flow3 = flow.reshape(B * Hf, Wf, 2)
    e = ((jnp.arange(W)[None, :] // PATCH) == jnp.arange(Wf)[:, None])
    e = e.astype(jnp.float32) * float(PATCH)                 # x8 flow scale folded in
    return pl.pallas_call(
        _upsample_kernel,
        out_shape=jax.ShapeDtypeStruct((B, 2, H, W), jnp.float32),
        grid=(B, Hf),
        in_specs=[pl.BlockSpec((1, Wf, 2), lambda b, hf: (b * Hf + hf, 0, 0)),
                  pl.BlockSpec((Wf, W), lambda b, hf: (0, 0))],
        out_specs=pl.BlockSpec((1, 2, PATCH, W), lambda b, hf: (b, 0, hf, 0)),
        compiler_params=_mosaic(("parallel", "parallel")),
    )(flow3, e)


# ----------------------------- params -----------------------------------------

def init_params(key, hw):
    ks = iter(jax.random.split(key, 16))

    def w(shape, dtype=jnp.float32, fan_in=None):
        fan_in = shape[0] if fan_in is None else fan_in
        return (jax.random.normal(next(ks), shape, jnp.float32)
                / jnp.sqrt(float(fan_in))).astype(dtype)

    def b(n):
        return jnp.zeros((1, n), jnp.float32)

    patch_dim = IN_CH * PATCH * PATCH
    corr_scale = 1.0 / (FDIM ** 0.5)
    return {
        # feature / context encoders (patch-embedding style), bf16 for the MXU
        "fnet_w": w((patch_dim, FDIM), jnp.bfloat16), "fnet_b": b(FDIM),
        "cnet_w": w((patch_dim, HIDDEN + CONTEXT), jnp.bfloat16),
        "cnet_b": b(HIDDEN + CONTEXT),
        # motion encoder: corr part (1/sqrt(D) scale folded in, bf16) + flow part (VPU, f32)
        "w_corr": (w((hw, MOTION)) * corr_scale).astype(jnp.bfloat16),
        "w_flow": w((2, MOTION)),
        "menc_b": b(MOTION),
        # GRU with gates packed along N: x-side [z|r|q], h-side [z|r]; bf16 MXU weights
        "wh_zr": w((HIDDEN, 2 * HIDDEN), jnp.bfloat16),
        "wqh": w((HIDDEN, HIDDEN), jnp.bfloat16),
        "wx_motion": w((MOTION, 3 * HIDDEN), jnp.bfloat16),
        "wx_inp": w((CONTEXT, 3 * HIDDEN), jnp.bfloat16),
        "b_gates": b(3 * HIDDEN),
        # flow head stored (2, HIDDEN) so the kernel uses row slices on the VPU (f32)
        "fhead_w": w((2, HIDDEN), fan_in=HIDDEN), "fhead_b": b(2),
    }


# ----------------------------- forward ------------------------------------------

def raft_forward(params, im1, im2, *, num_iters=NUM_ITERS):
    """im1, im2: NCHW float32 in [0, 1]. Returns flow_up: (B, 2, H, W)."""
    B, C, H, W = im1.shape
    Hf, Wf = H // PATCH, W // PATCH
    HW = Hf * Wf
    M = B * HW

    # Both images patchified together so the feature encoder runs once; bf16
    # pre-cast halves the HBM traffic of the XLA-side unfold.
    # TODO(synk): fold the 8x8 unfold into the fnet BlockSpec index_map instead
    # of an XLA reshape/transpose; full RAFT uses residual conv encoders.
    im = jnp.stack([im1, im2], axis=0).astype(jnp.bfloat16)          # (2, B, C, H, W)
    p = im.reshape(2 * B, C, Hf, PATCH, Wf, PATCH)
    p = jnp.transpose(p, (0, 2, 4, 1, 3, 5)).reshape(2 * M, C * PATCH * PATCH)

    # Feature encoder (fnet) over im1+im2 in one gridded call, bf16 output for the MXU.
    f = tiled_matmul(p, params["fnet_w"], params["fnet_b"],
                     act="relu", normalize=True, out_dtype=jnp.bfloat16)
    f = f.reshape(2, B, HW, FDIM)

    # Context encoder (cnet) on im1 only (first M rows of p): tanh hidden | relu context.
    c_act = tiled_matmul(p, params["cnet_w"], params["cnet_b"],
                         act="cnet_split", split=HIDDEN, normalize=True, rows=M)

    # Hoisted loop-invariant contributions (computed once, reused by all iterations):
    #   corr_contrib = (f1 . f2^T / sqrt(D)) @ W_corr + b_menc
    #   inp_contrib  = context @ [Wzx_i | Wrx_i | Wqx_i] + [bz | br | bq]
    # TODO(synk): real RAFT samples a local window from a 4-level correlation
    # pyramid via bilinear lookup at the current flow; the full correlation row
    # (contracted against W_corr) is used here.
    corr_contrib = corr_motion_contrib(f, params["w_corr"], params["menc_b"],
                                       B=B, HW=HW)
    inp_contrib = tiled_matmul(c_act, params["wx_inp"], params["b_gates"],
                               col_block=1, col_width=CONTEXT)

    # Fused refinement: all GRU iterations in one kernel; h/flow stay on-chip.
    flow = refine(c_act, inp_contrib, corr_contrib, params, num_iters=num_iters)

    # Fused 8x upsample + NCHW writeback (single lane-dense HBM write).
    return upsample8(flow, B=B, Hf=Hf, Wf=Wf)                        # (B, 2, H, W)


# ----------------------------- main ---------------------------------------------

if __name__ == "__main__":
    key = jax.random.PRNGKey(0)
    k_im1, k_im2, k_par = jax.random.split(key, 3)

    B, C, H, W = 2, 3, 32, 32                 # small shapes consistent with the module
    im1 = jax.random.uniform(k_im1, (B, C, H, W), jnp.float32)      # images in [0,1]
    im2 = jax.random.uniform(k_im2, (B, C, H, W), jnp.float32)

    HW = (H // PATCH) * (W // PATCH)
    params = init_params(k_par, HW)

    fwd = jax.jit(functools.partial(raft_forward, num_iters=NUM_ITERS))
    flow_up = fwd(params, im1, im2)
    jax.block_until_ready(flow_up)

    assert flow_up.shape == (B, 2, H, W), flow_up.shape
    assert flow_up.dtype == jnp.float32
    assert bool(jnp.all(jnp.isfinite(flow_up)))
    print("KERNEL_OK")
</pallas_src>

<mosaic_0001>
module attributes {stable_mosaic.version = 11 : i64} {
  func.func @_enc_matmul_kernel(%arg0: i32, %arg1: memref<32x192xbf16, #tpu.memory_space<vmem>>, %arg2: memref<192x256xbf16, #tpu.memory_space<vmem>>, %arg3: memref<1x256xf32, #tpu.memory_space<vmem>>, %arg4: memref<32x256xf32, #tpu.memory_space<vmem>>) attributes {dimension_semantics = [#tpu.dimension_semantics<parallel>], iteration_bounds = array<i64: 1>, scalar_prefetch = 0 : i64, scratch_operands = 0 : i64, tpu.core_type = #tpu.core_type<tc>, window_params = [{transform_indices = @transform_0, window_bounds = array<i64: 32, 192>}, {pipeline_mode = #tpu.pipeline_mode<synchronous>, transform_indices = @transform_1, window_bounds = array<i64: 192, 256>}, {pipeline_mode = #tpu.pipeline_mode<synchronous>, transform_indices = @transform_2, window_bounds = array<i64: 1, 256>}, {transform_indices = @transform_3, window_bounds = array<i64: 32, 256>}]} {
    %c0 = arith.constant 0 : index
    %c0_0 = arith.constant 0 : index
    %0 = vector.load %arg1[%c0, %c0_0] : memref<32x192xbf16, #tpu.memory_space<vmem>>, vector<32x192xbf16>
    %1 = arith.extf %0 : vector<32x192xbf16> to vector<32x192xf32>
    %cst = arith.constant 2.000000e+00 : f32
    %2 = vector.broadcast %cst : f32 to vector<32x192xf32>
    %3 = arith.mulf %2, %1 : vector<32x192xf32>
    %cst_1 = arith.constant 1.000000e+00 : f32
    %4 = vector.broadcast %cst_1 : f32 to vector<32x192xf32>
    %5 = arith.subf %3, %4 : vector<32x192xf32>
    %6 = arith.truncf %5 : vector<32x192xf32> to vector<32x192xbf16>
    %c0_2 = arith.constant 0 : index
    %c0_3 = arith.constant 0 : index
    %7 = vector.load %arg2[%c0_2, %c0_3] : memref<192x256xbf16, #tpu.memory_space<vmem>>, vector<192x256xbf16>
    %cst_4 = arith.constant dense<0.000000e+00> : vector<32x256xf32>
    %8 = tpu.matmul %6, %7, %cst_4 {dimension_numbers = #tpu.dot_dimension_numbers<[1], [0], [0], [1], [0, 0, 1, 1], [], []>} : vector<32x192xbf16>, vector<192x256xbf16>, vector<32x256xf32> -> vector<32x256xf32>
    %c0_5 = arith.constant 0 : index
    %c0_6 = arith.constant 0 : index
    %9 = vector.load %arg3[%c0_5, %c0_6] : memref<1x256xf32, #tpu.memory_space<vmem>>, vector<1x256xf32>
    %10 = vector.broadcast %9 : vector<1x256xf32> to vector<32x256xf32>
    %11 = arith.addf %8, %10 : vector<32x256xf32>
    %12 = vector.extract_strided_slice %11 {offsets = [0, 0], sizes = [32, 128], strides = [1, 1]} : vector<32x256xf32> to vector<32x128xf32>
    %13 = math.tanh %12 : vector<32x128xf32>
    %c0_7 = arith.constant 0 : index
    %c0_8 = arith.constant 0 : index
    %14 = vector.load %arg4[%c0_7, %c0_8] : memref<32x256xf32, #tpu.memory_space<vmem>>, vector<32x128xf32>
    tpu.vector_store %arg4[%c0_7, %c0_8], %13 {strides = array<i32>} : memref<32x256xf32, #tpu.memory_space<vmem>>, vector<32x128xf32>,
    %15 = vector.extract_strided_slice %11 {offsets = [0, 128], sizes = [32, 128], strides = [1, 1]} : vector<32x256xf32> to vector<32x128xf32>
    %cst_9 = arith.constant 0.000000e+00 : f32
    %16 = vector.broadcast %cst_9 : f32 to vector<32x128xf32>
    %17 = arith.maximumf %15, %16 : vector<32x128xf32>
    %c0_10 = arith.constant 0 : index
    %c128 = arith.constant 128 : index
    %18 = vector.load %arg4[%c0_10, %c128] : memref<32x256xf32, #tpu.memory_space<vmem>>, vector<32x128xf32>
    tpu.vector_store %arg4[%c0_10, %c128], %17 {strides = array<i32>} : memref<32x256xf32, #tpu.memory_space<vmem>>, vector<32x128xf32>,
    return
  }
  func.func @transform_0(%arg0: i32) -> (i32, i32) {
    %c0_i32 = arith.constant 0 : i32
    %c0_i32_0 = arith.constant 0 : i32
    return %arg0, %c0_i32 : i32, i32
  }
  func.func @transform_1(%arg0: i32) -> (i32, i32) {
    %c0_i32 = arith.constant 0 : i32
    %c0_i32_0 = arith.constant 0 : i32
    %c0_i32_1 = arith.constant 0 : i32
    return %c0_i32, %c0_i32_0 : i32, i32
  }
  func.func @transform_2(%arg0: i32) -> (i32, i32) {
    %c0_i32 = arith.constant 0 : i32
    %c0_i32_0 = arith.constant 0 : i32
    %c0_i32_1 = arith.constant 0 : i32
    return %c0_i32, %c0_i32_0 : i32, i32
  }
  func.func @transform_3(%arg0: i32) -> (i32, i32) {
    %c0_i32 = arith.constant 0 : i32
    %c0_i32_0 = arith.constant 0 : i32
    return %arg0, %c0_i32 : i32, i32
  }
}

module attributes {stable_mosaic.version = 11 : i64} {
  func.func @_enc_matmul_kernel(%arg0: i32, %arg1: memref<64x192xbf16, #tpu.memory_space<vmem>>, %arg2: memref<192x128xbf16, #tpu.memory_space<vmem>>, %arg3: memref<1x128xf32, #tpu.memory_space<vmem>>, %arg4: memref<64x128xbf16, #tpu.memory_space<vmem>>) attributes {dimension_semantics = [#tpu.dimension_semantics<parallel>], iteration_bounds = array<i64: 1>, scalar_prefetch = 0 : i64, scratch_operands = 0 : i64, tpu.core_type = #tpu.core_type<tc>, window_params = [{transform_indices = @transform_0, window_bounds = array<i64: 64, 192>}, {pipeline_mode = #tpu.pipeline_mode<synchronous>, transform_indices = @transform_1, window_bounds = array<i64: 192, 128>}, {pipeline_mode = #tpu.pipeline_mode<synchronous>, transform_indices = @transform_2, window_bounds = array<i64: 1, 128>}, {transform_indices = @transform_3, window_bounds = array<i64: 64, 128>}]} {
    %c0 = arith.constant 0 : index
    %c0_0 = arith.constant 0 : index
    %0 = vector.load %arg1[%c0, %c0_0] : memref<64x192xbf16, #tpu.memory_space<vmem>>, vector<64x192xbf16>
    %1 = arith.extf %0 : vector<64x192xbf16> to vector<64x192xf32>
    %cst = arith.constant 2.000000e+00 : f32
    %2 = vector.broadcast %cst : f32 to vector<64x192xf32>
    %3 = arith.mulf %2, %1 : vector<64x192xf32>
    %cst_1 = arith.constant 1.000000e+00 : f32
    %4 = vector.broadcast %cst_1 : f32 to vector<64x192xf32>
    %5 = arith.subf %3, %4 : vector<64x192xf32>
    %6 = arith.truncf %5 : vector<64x192xf32> to vector<64x192xbf16>
    %c0_2 = arith.constant 0 : index
    %c0_3 = arith.constant 0 : index
    %7 = vector.load %arg2[%c0_2, %c0_3] : memref<192x128xbf16, #tpu.memory_space<vmem>>, vector<192x128xbf16>
    %cst_4 = arith.constant dense<0.000000e+00> : vector<64x128xf32>
    %8 = tpu.matmul %6, %7, %cst_4 {dimension_numbers = #tpu.dot_dimension_numbers<[1], [0], [0], [1], [0, 0, 1, 1], [], []>} : vector<64x192xbf16>, vector<192x128xbf16>, vector<64x128xf32> -> vector<64x128xf32>
    %c0_5 = arith.constant 0 : index
    %c0_6 = arith.constant 0 : index
    %9 = vector.load %arg3[%c0_5, %c0_6] : memref<1x128xf32, #tpu.memory_space<vmem>>, vector<1x128xf32>
    %10 = vector.broadcast %9 : vector<1x128xf32> to vector<64x128xf32>
    %11 = arith.addf %8, %10 : vector<64x128xf32>
    %cst_7 = arith.constant 0.000000e+00 : f32
    %12 = vector.broadcast %cst_7 : f32 to vector<64x128xf32>
    %13 = arith.maximumf %11, %12 : vector<64x128xf32>
    %14 = arith.truncf %13 : vector<64x128xf32> to vector<64x128xbf16>
    %c0_8 = arith.constant 0 : index
    %c0_9 = arith.constant 0 : index
    %15 = vector.load %arg4[%c0_8, %c0_9] : memref<64x128xbf16, #tpu.memory_space<vmem>>, vector<64x128xbf16>
    tpu.vector_store %arg4[%c0_8, %c0_9], %14 {strides = array<i32>} : memref<64x128xbf16, #tpu.memory_space<vmem>>, vector<64x128xbf16>,
    return
  }
  func.func @transform_0(%arg0: i32) -> (i32, i32) {
    %c0_i32 = arith.constant 0 : i32
    %c0_i32_0 = arith.constant 0 : i32
    return %arg0, %c0_i32 : i32, i32
  }
  func.func @transform_1(%arg0: i32) -> (i32, i32) {
    %c0_i32 = arith.constant 0 : i32
    %c0_i32_0 = arith.constant 0 : i32
    %c0_i32_1 = arith.constant 0 : i32
    return %c0_i32, %c0_i32_0 : i32, i32
  }
  func.func @transform_2(%arg0: i32) -> (i32, i32) {
    %c0_i32 = arith.constant 0 : i32
    %c0_i32_0 = arith.constant 0 : i32
    %c0_i32_1 = arith.constant 0 : i32
    return %c0_i32, %c0_i32_0 : i32, i32
  }
  func.func @transform_3(%arg0: i32) -> (i32, i32) {
    %c0_i32 = arith.constant 0 : i32
    %c0_i32_0 = arith.constant 0 : i32
    return %arg0, %c0_i32 : i32, i32
  }
}

module attributes {stable_mosaic.version = 11 : i64} {
  func.func @_enc_matmul_kernel(%arg0: i32, %arg1: memref<32x128xf32, #tpu.memory_space<vmem>>, %arg2: memref<128x384xbf16, #tpu.memory_space<vmem>>, %arg3: memref<1x384xf32, #tpu.memory_space<vmem>>, %arg4: memref<32x384xf32, #tpu.memory_space<vmem>>) attributes {dimension_semantics = [#tpu.dimension_semantics<parallel>], iteration_bounds = array<i64: 1>, scalar_prefetch = 0 : i64, scratch_operands = 0 : i64, tpu.core_type = #tpu.core_type<tc>, window_params = [{transform_indices = @transform_0, window_bounds = array<i64: 32, 128>}, {pipeline_mode = #tpu.pipeline_mode<synchronous>, transform_indices = @transform_1, window_bounds = array<i64: 128, 384>}, {pipeline_mode = #tpu.pipeline_mode<synchronous>, transform_indices = @transform_2, window_bounds = array<i64: 1, 384>}, {transform_indices = @transform_3, window_bounds = array<i64: 32, 384>}]} {
    %c0 = arith.constant 0 : index
    %c0_0 = arith.constant 0 : index
    %0 = vector.load %arg1[%c0, %c0_0] : memref<32x128xf32, #tpu.memory_space<vmem>>, vector<32x128xf32>
    %1 = arith.truncf %0 : vector<32x128xf32> to vector<32x128xbf16>
    %c0_1 = arith.constant 0 : index
    %c0_2 = arith.constant 0 : index
    %2 = vector.load %arg2[%c0_1, %c0_2] : memref<128x384xbf16, #tpu.memory_space<vmem>>, vector<128x384xbf16>
    %cst = arith.constant dense<0.000000e+00> : vector<32x384xf32>
    %3 = tpu.matmul %1, %2, %cst {dimension_numbers = #tpu.dot_dimension_numbers<[1], [0], [0], [1], [0, 0, 1, 1], [], []>} : vector<32x128xbf16>, vector<128x384xbf16>, vector<32x384xf32> -> vector<32x384xf32>
    %c0_3 = arith.constant 0 : index
    %c0_4 = arith.constant 0 : index
    %4 = vector.load %arg3[%c0_3, %c0_4] : memref<1x384xf32, #tpu.memory_space<vmem>>, vector<1x384xf32>
    %5 = vector.broadcast %4 : vector<1x384xf32> to vector<32x384xf32>
    %6 = arith.addf %3, %5 : vector<32x384xf32>
    %c0_5 = arith.constant 0 : index
    %c0_6 = arith.constant 0 : index
    %7 = vector.load %arg4[%c0_5, %c0_6] : memref<32x384xf32, #tpu.memory_space<vmem>>, vector<32x384xf32>
    tpu.vector_store %arg4[%c0_5, %c0_6], %6 {strides = array<i32>} : memref<32x384xf32, #tpu.memory_space<vmem>>, vector<32x384xf32>,
    return
  }
  func.func @transform_0(%arg0: i32) -> (i32, i32) {
    %c1_i32 = arith.constant 1 : i32
    %c0_i32 = arith.constant 0 : i32
    return %arg0, %c1_i32 : i32, i32
  }
  func.func @transform_1(%arg0: i32) -> (i32, i32) {
    %c0_i32 = arith.constant 0 : i32
    %c0_i32_0 = arith.constant 0 : i32
    %c0_i32_1 = arith.constant 0 : i32
    return %c0_i32, %c0_i32_0 : i32, i32
  }
  func.func @transform_2(%arg0: i32) -> (i32, i32) {
    %c0_i32 = arith.constant 0 : i32
    %c0_i32_0 = arith.constant 0 : i32
    %c0_i32_1 = arith.constant 0 : i32
    return %c0_i32, %c0_i32_0 : i32, i32
  }
  func.func @transform_3(%arg0: i32) -> (i32, i32) {
    %c0_i32 = arith.constant 0 : i32
    %c0_i32_0 = arith.constant 0 : i32
    return %arg0, %c0_i32 : i32, i32
  }
}

module attributes {stable_mosaic.version = 11 : i64} {
  func.func @_corr_contrib_kernel(%arg0: i32, %arg1: i32, %arg2: memref<1x1x16x128xbf16, #tpu.memory_space<vmem>>, %arg3: memref<1x1x16x128xbf16, #tpu.memory_space<vmem>>, %arg4: memref<16x128xbf16, #tpu.memory_space<vmem>>, %arg5: memref<1x128xf32, #tpu.memory_space<vmem>>, %arg6: memref<16x128xf32, #tpu.memory_space<vmem>>) attributes {dimension_semantics = [#tpu.dimension_semantics<parallel>, #tpu.dimension_semantics<parallel>], iteration_bounds = array<i64: 2, 1>, scalar_prefetch = 0 : i64, scratch_operands = 0 : i64, tpu.core_type = #tpu.core_type<tc>, window_params = [{transform_indices = @transform_0, window_bounds = array<i64: 1, 1, 16, 128>}, {transform_indices = @transform_1, window_bounds = array<i64: 1, 1, 16, 128>}, {pipeline_mode = #tpu.pipeline_mode<synchronous>, transform_indices = @transform_2, window_bounds = array<i64: 16, 128>}, {pipeline_mode = #tpu.pipeline_mode<synchronous>, transform_indices = @transform_3, window_bounds = array<i64: 1, 128>}, {transform_indices = @transform_4, window_bounds = array<i64: 16, 128>}]} {
    %c0 = arith.constant 0 : index
    %c0_0 = arith.constant 0 : index
    %c0_1 = arith.constant 0 : index
    %c0_2 = arith.constant 0 : index
    %0 = vector.load %arg2[%c0, %c0_0, %c0_1, %c0_2] : memref<1x1x16x128xbf16, #tpu.memory_space<vmem>>, vector<1x1x16x128xbf16>
    %1 = vector.shape_cast %0 : vector<1x1x16x128xbf16> to vector<16x128xbf16>
    %c0_3 = arith.constant 0 : index
    %c0_4 = arith.constant 0 : index
    %c0_5 = arith.constant 0 : index
    %c0_6 = arith.constant 0 : index
    %2 = vector.load %arg3[%c0_3, %c0_4, %c0_5, %c0_6] : memref<1x1x16x128xbf16, #tpu.memory_space<vmem>>, vector<1x1x16x128xbf16>
    %3 = vector.shape_cast %2 : vector<1x1x16x128xbf16> to vector<16x128xbf16>
    %cst = arith.constant dense<0.000000e+00> : vector<16x16xf32>
    %4 = tpu.matmul %1, %3, %cst {dimension_numbers = #tpu.dot_dimension_numbers<[1], [1], [0], [0], [0, 0, 1, 0], [], []>} : vector<16x128xbf16>, vector<16x128xbf16>, vector<16x16xf32> -> vector<16x16xf32>
    %5 = arith.truncf %4 : vector<16x16xf32> to vector<16x16xbf16>
    %c0_7 = arith.constant 0 : index
    %c0_8 = arith.constant 0 : index
    %6 = vector.load %arg4[%c0_7, %c0_8] : memref<16x128xbf16, #tpu.memory_space<vmem>>, vector<16x128xbf16>
    %cst_9 = arith.constant dense<0.000000e+00> : vector<16x128xf32>
    %7 = tpu.matmul %5, %6, %cst_9 {dimension_numbers = #tpu.dot_dimension_numbers<[1], [0], [0], [1], [0, 0, 1, 1], [], []>} : vector<16x16xbf16>, vector<16x128xbf16>, vector<16x128xf32> -> vector<16x128xf32>
    %c0_10 = arith.constant 0 : index
    %c0_11 = arith.constant 0 : index
    %8 = vector.load %arg5[%c0_10, %c0_11] : memref<1x128xf32, #tpu.memory_space<vmem>>, vector<1x128xf32>
    %9 = vector.broadcast %8 : vector<1x128xf32> to vector<16x128xf32>
    %10 = arith.addf %7, %9 : vector<16x128xf32>
    %c0_12 = arith.constant 0 : index
    %c0_13 = arith.constant 0 : index
    %11 = vector.load %arg6[%c0_12, %c0_13] : memref<16x128xf32, #tpu.memory_space<vmem>>, vector<16x128xf32>
    tpu.vector_store %arg6[%c0_12, %c0_13], %10 {strides = array<i32>} : memref<16x128xf32, #tpu.memory_space<vmem>>, vector<16x128xf32>,
    return
  }
  func.func @transform_0(%arg0: i32, %arg1: i32) -> (i32, i32, i32, i32) {
    %c0_i32 = arith.constant 0 : i32
    %c0_i32_0 = arith.constant 0 : i32
    %c0_i32_1 = arith.constant 0 : i32
    return %c0_i32, %arg0, %arg1, %c0_i32_0 : i32, i32, i32, i32
  }
  func.func @transform_1(%arg0: i32, %arg1: i32) -> (i32, i32, i32, i32) {
    %c1_i32 = arith.constant 1 : i32
    %c0_i32 = arith.constant 0 : i32
    %c0_i32_0 = arith.constant 0 : i32
    %c0_i32_1 = arith.constant 0 : i32
    return %c1_i32, %arg0, %c0_i32, %c0_i32_0 : i32, i32, i32, i32
  }
  func.func @transform_2(%arg0: i32, %arg1: i32) -> (i32, i32) {
    %c0_i32 = arith.constant 0 : i32
    %c0_i32_0 = arith.constant 0 : i32
    %c0_i32_1 = arith.constant 0 : i32
    return %c0_i32, %c0_i32_0 : i32, i32
  }
  func.func @transform_3(%arg0: i32, %arg1: i32) -> (i32, i32) {
    %c0_i32 = arith.constant 0 : i32
    %c0_i32_0 = arith.constant 0 : i32
    %c0_i32_1 = arith.constant 0 : i32
    return %c0_i32, %c0_i32_0 : i32, i32
  }
  func.func @transform_4(%arg0: i32, %arg1: i32) -> (i32, i32) {
    %c1_i32 = arith.constant 1 : i32
    %0 = arith.muli %arg0, %c1_i32 : i32
    %1 = arith.addi %0, %arg1 : i32
    %c0_i32 = arith.constant 0 : i32
    %c0_i32_0 = arith.constant 0 : i32
    return %1, %c0_i32 : i32, i32
  }
}

module attributes {stable_mosaic.version = 11 : i64} {
  func.func @_refine_kernel(%arg0: i32, %arg1: memref<32x128xf32, #tpu.memory_space<vmem>>, %arg2: memref<32x384xf32, #tpu.memory_space<vmem>>, %arg3: memref<32x128xf32, #tpu.memory_space<vmem>>, %arg4: memref<2x128xf32, #tpu.memory_space<vmem>>, %arg5: memref<128x384xbf16, #tpu.memory_space<vmem>>, %arg6: memref<128x256xbf16, #tpu.memory_space<vmem>>, %arg7: memref<128x128xbf16, #tpu.memory_space<vmem>>, %arg8: memref<2x128xf32, #tpu.memory_space<vmem>>, %arg9: memref<1x2xf32, #tpu.memory_space<vmem>>, %arg10: memref<32x2xf32, #tpu.memory_space<vmem>>) attributes {dimension_semantics = [#tpu.dimension_semantics<parallel>], iteration_bounds = array<i64: 1>, scalar_prefetch = 0 : i64, scratch_operands = 0 : i64, tpu.core_type = #tpu.core_type<tc>, window_params = [{transform_indices = @transform_0, window_bounds = array<i64: 32, 128>}, {transform_indices = @transform_1, window_bounds = array<i64: 32, 384>}, {transform_indices = @transform_2, window_bounds = array<i64: 32, 128>}, {pipeline_mode = #tpu.pipeline_mode<synchronous>, transform_indices = @transform_3, window_bounds = array<i64: 2, 128>}, {pipeline_mode = #tpu.pipeline_mode<synchronous>, transform_indices = @transform_4, window_bounds = array<i64: 128, 384>}, {pipeline_mode = #tpu.pipeline_mode<synchronous>, transform_indices = @transform_5, window_bounds = array<i64: 128, 256>}, {pipeline_mode = #tpu.pipeline_mode<synchronous>, transform_indices = @transform_6, window_bounds = array<i64: 128, 128>}, {pipeline_mode = #tpu.pipeline_mode<synchronous>, transform_indices = @transform_7, window_bounds = array<i64: 2, 128>}, {pipeline_mode = #tpu.pipeline_mode<synchronous>, transform_indices = @transform_8, window_bounds = array<i64: 1, 2>}, {transform_indices = @transform_9, window_bounds = array<i64: 32, 2>}]} {
    %c0 = arith.constant 0 : index
    %c0_0 = arith.constant 0 : index
    %0 = vector.load %arg1[%c0, %c0_0] : memref<32x128xf32, #tpu.memory_space<vmem>>, vector<32x128xf32>
    %c0_1 = arith.constant 0 : index
    %c0_2 = arith.constant 0 : index
    %1 = vector.load %arg2[%c0_1, %c0_2] : memref<32x384xf32, #tpu.memory_space<vmem>>, vector<32x384xf32>
    %c0_3 = arith.constant 0 : index
    %c0_4 = arith.constant 0 : index
    %2 = vector.load %arg3[%c0_3, %c0_4] : memref<32x128xf32, #tpu.memory_space<vmem>>, vector<32x128xf32>
    %c0_5 = arith.constant 0 : index
    %c0_6 = arith.constant 0 : index
    %3 = vector.load %arg4[%c0_5, %c0_6] : memref<2x128xf32, #tpu.memory_space<vmem>>, vector<1x128xf32>
    %c1 = arith.constant 1 : index
    %c0_7 = arith.constant 0 : index
    %4 = vector.load %arg4[%c1, %c0_7] : memref<2x128xf32, #tpu.memory_space<vmem>>, vector<1x128xf32>
    %c0_8 = arith.constant 0 : index
    %c0_9 = arith.constant 0 : index
    %5 = vector.load %arg5[%c0_8, %c0_9] : memref<128x384xbf16, #tpu.memory_space<vmem>>, vector<128x384xbf16>
    %c0_10 = arith.constant 0 : index
    %c0_11 = arith.constant 0 : index
    %6 = vector.load %arg6[%c0_10, %c0_11] : memref<128x256xbf16, #tpu.memory_space<vmem>>, vector<128x256xbf16>
    %c0_12 = arith.constant 0 : index
    %c0_13 = arith.constant 0 : index
    %7 = vector.load %arg7[%c0_12, %c0_13] : memref<128x128xbf16, #tpu.memory_space<vmem>>, vector<128x128xbf16>
    %c0_14 = arith.constant 0 : index
    %c0_15 = arith.constant 0 : index
    %8 = vector.load %arg8[%c0_14, %c0_15] : memref<2x128xf32, #tpu.memory_space<vmem>>, vector<1x128xf32>
    %c1_16 = arith.constant 1 : index
    %c0_17 = arith.constant 0 : index
    %9 = vector.load %arg8[%c1_16, %c0_17] : memref<2x128xf32, #tpu.memory_space<vmem>>, vector<1x128xf32>
    %c0_18 = arith.constant 0 : index
    %c0_19 = arith.constant 0 : index
    %10 = vector.load %arg9[%c0_18, %c0_19] : memref<1x2xf32, #tpu.memory_space<vmem>>, vector<1x1xf32>
    %c0_20 = arith.constant 0 : index
    %c1_21 = arith.constant 1 : index
    %11 = vector.load %arg9[%c0_20, %c1_21] : memref<1x2xf32, #tpu.memory_space<vmem>>, vector<1x1xf32>
    %cst = arith.constant 0.000000e+00 : f32
    %12 = vector.broadcast %cst : f32 to vector<32x1xf32>
    %c0_i32 = arith.constant 0 : i32
    %13 = vector.broadcast %12 : vector<32x1xf32> to vector<32x128xf32>
    %14 = vector.broadcast %3 : vector<1x128xf32> to vector<32x128xf32>
    %15 = arith.mulf %13, %14 : vector<32x128xf32>
    %16 = vector.broadcast %12 : vector<32x1xf32> to vector<32x128xf32>
    %17 = vector.broadcast %4 : vector<1x128xf32> to vector<32x128xf32>
    %18 = arith.mulf %16, %17 : vector<32x128xf32>
    %19 = arith.addf %15, %18 : vector<32x128xf32>
    %20 = arith.addf %2, %19 : vector<32x128xf32>
    %cst_22 = arith.constant 0.000000e+00 : f32
    %21 = vector.broadcast %cst_22 : f32 to vector<32x128xf32>
    %22 = arith.maximumf %20, %21 : vector<32x128xf32>
    %23 = arith.truncf %22 : vector<32x128xf32> to vector<32x128xbf16>
    %cst_23 = arith.constant dense<0.000000e+00> : vector<32x384xf32>
    %24 = tpu.matmul %23, %5, %cst_23 {dimension_numbers = #tpu.dot_dimension_numbers<[1], [0], [0], [1], [0, 0, 1, 1], [], []>} : vector<32x128xbf16>, vector<128x384xbf16>, vector<32x384xf32> -> vector<32x384xf32>
    %25 = arith.addf %1, %24 : vector<32x384xf32>
    %26 = arith.truncf %0 : vector<32x128xf32> to vector<32x128xbf16>
    %cst_24 = arith.constant dense<0.000000e+00> : vector<32x256xf32>
    %27 = tpu.matmul %26, %6, %cst_24 {dimension_numbers = #tpu.dot_dimension_numbers<[1], [0], [0], [1], [0, 0, 1, 1], [], []>} : vector<32x128xbf16>, vector<128x256xbf16>, vector<32x256xf32> -> vector<32x256xf32>
    %28 = vector.extract_strided_slice %25 {offsets = [0, 0], sizes = [32, 128], strides = [1, 1]} : vector<32x384xf32> to vector<32x128xf32>
    %29 = vector.extract_strided_slice %27 {offsets = [0, 0], sizes = [32, 128], strides = [1, 1]} : vector<32x256xf32> to vector<32x128xf32>
    %30 = arith.addf %28, %29 : vector<32x128xf32>
    %31 = arith.negf %30 : vector<32x128xf32>
    %32 = math.exp %31 : vector<32x128xf32>
    %cst_25 = arith.constant 1.000000e+00 : f32
    %33 = vector.broadcast %cst_25 : f32 to vector<32x128xf32>
    %34 = arith.addf %33, %32 : vector<32x128xf32>
    %35 = arith.divf %33, %34 : vector<32x128xf32>
    %36 = vector.extract_strided_slice %25 {offsets = [0, 128], sizes = [32, 128], strides = [1, 1]} : vector<32x384xf32> to vector<32x128xf32>
    %37 = vector.extract_strided_slice %27 {offsets = [0, 128], sizes = [32, 128], strides = [1, 1]} : vector<32x256xf32> to vector<32x128xf32>
    %38 = arith.addf %36, %37 : vector<32x128xf32>
    %39 = arith.negf %38 : vector<32x128xf32>
    %40 = math.exp %39 : vector<32x128xf32>
    %cst_26 = arith.constant 1.000000e+00 : f32
    %41 = vector.broadcast %cst_26 : f32 to vector<32x128xf32>
    %42 = arith.addf %41, %40 : vector<32x128xf32>
    %43 = arith.divf %41, %42 : vector<32x128xf32>
    %44 = vector.extract_strided_slice %25 {offsets = [0, 256], sizes = [32, 128], strides = [1, 1]} : vector<32x384xf32> to vector<32x128xf32>
    %45 = arith.mulf %43, %0 : vector<32x128xf32>
    %46 = arith.truncf %45 : vector<32x128xf32> to vector<32x128xbf16>
    %cst_27 = arith.constant dense<0.000000e+00> : vector<32x128xf32>
    %47 = tpu.matmul %46, %7, %cst_27 {dimension_numbers = #tpu.dot_dimension_numbers<[1], [0], [0], [1], [0, 0, 1, 1], [], []>} : vector<32x128xbf16>, vector<128x128xbf16>, vector<32x128xf32> -> vector<32x128xf32>
    %48 = arith.addf %44, %47 : vector<32x128xf32>
    %49 = math.tanh %48 : vector<32x128xf32>
    %cst_28 = arith.constant 1.000000e+00 : f32
    %50 = vector.broadcast %cst_28 : f32 to vector<32x128xf32>
    %51 = arith.subf %50, %35 : vector<32x128xf32>
    %52 = arith.mulf %51, %0 : vector<32x128xf32>
    %53 = arith.mulf %35, %49 : vector<32x128xf32>
    %54 = arith.addf %52, %53 : vector<32x128xf32>
    %55 = vector.broadcast %8 : vector<1x128xf32> to vector<32x128xf32>
    %56 = arith.mulf %54, %55 : vector<32x128xf32>
    %cst_29 = arith.constant dense<0.000000e+00> : vector<32xf32>
    %57 = vector.multi_reduction <add>, %56, %cst_29 [1] : vector<32x128xf32> to vector<32xf32>
    %58 = vector.shape_cast %57 : vector<32xf32> to vector<32x1xf32>
    %59 = vector.broadcast %10 : vector<1x1xf32> to vector<32x1xf32>
    %60 = arith.addf %58, %59 : vector<32x1xf32>
    %61 = vector.broadcast %9 : vector<1x128xf32> to vector<32x128xf32>
    %62 = arith.mulf %54, %61 : vector<32x128xf32>
    %cst_30 = arith.constant dense<0.000000e+00> : vector<32xf32>
    %63 = vector.multi_reduction <add>, %62, %cst_30 [1] : vector<32x128xf32> to vector<32xf32>
    %64 = vector.shape_cast %63 : vector<32xf32> to vector<32x1xf32>
    %65 = vector.broadcast %11 : vector<1x1xf32> to vector<32x1xf32>
    %66 = arith.addf %64, %65 : vector<32x1xf32>
    %67 = arith.addf %12, %60 : vector<32x1xf32>
    %68 = arith.addf %12, %66 : vector<32x1xf32>
    %c1_i32 = arith.constant 1 : i32
    %69 = vector.broadcast %67 : vector<32x1xf32> to vector<32x128xf32>
    %70 = vector.broadcast %3 : vector<1x128xf32> to vector<32x128xf32>
    %71 = arith.mulf %69, %70 : vector<32x128xf32>
    %72 = vector.broadcast %68 : vector<32x1xf32> to vector<32x128xf32>
    %73 = vector.broadcast %4 : vector<1x128xf32> to vector<32x128xf32>
    %74 = arith.mulf %72, %73 : vector<32x128xf32>
    %75 = arith.addf %71, %74 : vector<32x128xf32>
    %76 = arith.addf %2, %75 : vector<32x128xf32>
    %cst_31 = arith.constant 0.000000e+00 : f32
    %77 = vector.broadcast %cst_31 : f32 to vector<32x128xf32>
    %78 = arith.maximumf %76, %77 : vector<32x128xf32>
    %79 = arith.truncf %78 : vector<32x128xf32> to vector<32x128xbf16>
    %cst_32 = arith.constant dense<0.000000e+00> : vector<32x384xf32>
    %80 = tpu.matmul %79, %5, %cst_32 {dimension_numbers = #tpu.dot_dimension_numbers<[1], [0], [0], [1], [0, 0, 1, 1], [], []>} : vector<32x128xbf16>, vector<128x384xbf16>, vector<32x384xf32> -> vector<32x384xf32>
    %81 = arith.addf %1, %80 : vector<32x384xf32>
    %82 = arith.truncf %54 : vector<32x128xf32> to vector<32x128xbf16>
    %cst_33 = arith.constant dense<0.000000e+00> : vector<32x256xf32>
    %83 = tpu.matmul %82, %6, %cst_33 {dimension_numbers = #tpu.dot_dimension_numbers<[1], [0], [0], [1], [0, 0, 1, 1], [], []>} : vector<32x128xbf16>, vector<128x256xbf16>, vector<32x256xf32> -> vector<32x256xf32>
    %84 = vector.extract_strided_slice %81 {offsets = [0, 0], sizes = [32, 128], strides = [1, 1]} : vector<32x384xf32> to vector<32x128xf32>
    %85 = vector.extract_strided_slice %83 {offsets = [0, 0], sizes = [32, 128], strides = [1, 1]} : vector<32x256xf32> to vector<32x128xf32>
    %86 = arith.addf %84, %85 : vector<32x128xf32>
    %87 = arith.negf %86 : vector<32x128xf32>
    %88 = math.exp %87 : vector<32x128xf32>
    %cst_34 = arith.constant 1.000000e+00 : f32
    %89 = vector.broadcast %cst_34 : f32 to vector<32x128xf32>
    %90 = arith.addf %89, %88 : vector<32x128xf32>
    %91 = arith.divf %89, %90 : vector<32x128xf32>
    %92 = vector.extract_strided_slice %81 {offsets = [0, 128], sizes = [32, 128], strides = [1, 1]} : vector<32x384xf32> to vector<32x128xf32>
    %93 = vector.extract_strided_slice %83 {offsets = [0, 128], sizes = [32, 128], strides = [1, 1]} : vector<32x256xf32> to vector<32x128xf32>
    %94 = arith.addf %92, %93 : vector<32x128xf32>
    %95 = arith.negf %94 : vector<32x128xf32>
    %96 = math.exp %95 : vector<32x128xf32>
    %cst_35 = arith.constant 1.000000e+00 : f32
    %97 = vector.broadcast %cst_35 : f32 to vector<32x128xf32>
    %98 = arith.addf %97, %96 : vector<32x128xf32>
    %99 = arith.divf %97, %98 : vector<32x128xf32>
    %100 = vector.extract_strided_slice %81 {offsets = [0, 256], sizes = [32, 128], strides = [1, 1]} : vector<32x384xf32> to vector<32x128xf32>
    %101 = arith.mulf %99, %54 : vector<32x128xf32>
    %102 = arith.truncf %101 : vector<32x128xf32> to vector<32x128xbf16>
    %cst_36 = arith.constant dense<0.000000e+00> : vector<32x128xf32>
    %103 = tpu.matmul %102, %7, %cst_36 {dimension_numbers = #tpu.dot_dimension_numbers<[1], [0], [0], [1], [0, 0, 1, 1], [], []>} : vector<32x128xbf16>, vector<128x128xbf16>, vector<32x128xf32> -> vector<32x128xf32>
    %104 = arith.addf %100, %103 : vector<32x128xf32>
    %105 = math.tanh %104 : vector<32x128xf32>
    %cst_37 = arith.constant 1.000000e+00 : f32
    %106 = vector.broadcast %cst_37 : f32 to vector<32x128xf32>
    %107 = arith.subf %106, %91 : vector<32x128xf32>
    %108 = arith.mulf %107, %54 : vector<32x128xf32>
    %109 = arith.mulf %91, %105 : vector<32x128xf32>
    %110 = arith.addf %108, %109 : vector<32x128xf32>
    %111 = vector.broadcast %8 : vector<1x128xf32> to vector<32x128xf32>
    %112 = arith.mulf %110, %111 : vector<32x128xf32>
    %cst_38 = arith.constant dense<0.000000e+00> : vector<32xf32>
    %113 = vector.multi_reduction <add>, %112, %cst_38 [1] : vector<32x128xf32> to vector<32xf32>
    %114 = vector.shape_cast %113 : vector<32xf32> to vector<32x1xf32>
    %115 = vector.broadcast %10 : vector<1x1xf32> to vector<32x1xf32>
    %116 = arith.addf %114, %115 : vector<32x1xf32>
    %117 = vector.broadcast %9 : vector<1x128xf32> to vector<32x128xf32>
    %118 = arith.mulf %110, %117 : vector<32x128xf32>
    %cst_39 = arith.constant dense<0.000000e+00> : vector<32xf32>
    %119 = vector.multi_reduction <add>, %118, %cst_39 [1] : vector<32x128xf32> to vector<32xf32>
    %120 = vector.shape_cast %119 : vector<32xf32> to vector<32x1xf32>
    %121 = vector.broadcast %11 : vector<1x1xf32> to vector<32x1xf32>
    %122 = arith.addf %120, %121 : vector<32x1xf32>
    %123 = arith.addf %67, %116 : vector<32x1xf32>
    %124 = arith.addf %68, %122 : vector<32x1xf32>
    %c2_i32 = arith.constant 2 : i32
    %125 = vector.broadcast %123 : vector<32x1xf32> to vector<32x128xf32>
    %126 = vector.broadcast %3 : vector<1x128xf32> to vector<32x128xf32>
    %127 = arith.mulf %125, %126 : vector<32x128xf32>
    %128 = vector.broadcast %124 : vector<32x1xf32> to vector<32x128xf32>
    %129 = vector.broadcast %4 : vector<1x128xf32> to vector<32x128xf32>
    %130 = arith.mulf %128, %129 : vector<32x128xf32>
    %131 = arith.addf %127, %130 : vector<32x128xf32>
    %132 = arith.addf %2, %131 : vector<32x128xf32>
    %cst_40 = arith.constant 0.000000e+00 : f32
    %133 = vector.broadcast %cst_40 : f32 to vector<32x128xf32>
    %134 = arith.maximumf %132, %133 : vector<32x128xf32>
    %135 = arith.truncf %134 : vector<32x128xf32> to vector<32x128xbf16>
    %cst_41 = arith.constant dense<0.000000e+00> : vector<32x384xf32>
    %136 = tpu.matmul %135, %5, %cst_41 {dimension_numbers = #tpu.dot_dimension_numbers<[1], [0], [0], [1], [0, 0, 1, 1], [], []>} : vector<32x128xbf16>, vector<128x384xbf16>, vector<32x384xf32> -> vector<32x384xf32>
    %137 = arith.addf %1, %136 : vector<32x384xf32>
    %138 = arith.truncf %110 : vector<32x128xf32> to vector<32x128xbf16>
    %cst_42 = arith.constant dense<0.000000e+00> : vector<32x256xf32>
    %139 = tpu.matmul %138, %6, %cst_42 {dimension_numbers = #tpu.dot_dimension_numbers<[1], [0], [0], [1], [0, 0, 1, 1], [], []>} : vector<32x128xbf16>, vector<128x256xbf16>, vector<32x256xf32> -> vector<32x256xf32>
    %140 = vector.extract_strided_slice %137 {offsets = [0, 0], sizes = [32, 128], strides = [1, 1]} : vector<32x384xf32> to vector<32x128xf32>
    %141 = vector.extract_strided_slice %139 {offsets = [0, 0], sizes = [32, 128], strides = [1, 1]} : vector<32x256xf32> to vector<32x128xf32>
    %142 = arith.addf %140, %141 : vector<32x128xf32>
    %143 = arith.negf %142 : vector<32x128xf32>
    %144 = math.exp %143 : vector<32x128xf32>
    %cst_43 = arith.constant 1.000000e+00 : f32
    %145 = vector.broadcast %cst_43 : f32 to vector<32x128xf32>
    %146 = arith.addf %145, %144 : vector<32x128xf32>
    %147 = arith.divf %145, %146 : vector<32x128xf32>
    %148 = vector.extract_strided_slice %137 {offsets = [0, 128], sizes = [32, 128], strides = [1, 1]} : vector<32x384xf32> to vector<32x128xf32>
    %149 = vector.extract_strided_slice %139 {offsets = [0, 128], sizes = [32, 128], strides = [1, 1]} : vector<32x256xf32> to vector<32x128xf32>
    %150 = arith.addf %148, %149 : vector<32x128xf32>
    %151 = arith.negf %150 : vector<32x128xf32>
    %152 = math.exp %151 : vector<32x128xf32>
    %cst_44 = arith.constant 1.000000e+00 : f32
    %153 = vector.broadcast %cst_44 : f32 to vector<32x128xf32>
    %154 = arith.addf %153, %152 : vector<32x128xf32>
    %155 = arith.divf %153, %154 : vector<32x128xf32>
    %156 = vector.extract_strided_slice %137 {offsets = [0, 256], sizes = [32, 128], strides = [1, 1]} : vector<32x384xf32> to vector<32x128xf32>
    %157 = arith.mulf %155, %110 : vector<32x128xf32>
    %158 = arith.truncf %157 : vector<32x128xf32> to vector<32x128xbf16>
    %cst_45 = arith.constant dense<0.000000e+00> : vector<32x128xf32>
    %159 = tpu.matmul %158, %7, %cst_45 {dimension_numbers = #tpu.dot_dimension_numbers<[1], [0], [0], [1], [0, 0, 1, 1], [], []>} : vector<32x128xbf16>, vector<128x128xbf16>, vector<32x128xf32> -> vector<32x128xf32>
    %160 = arith.addf %156, %159 : vector<32x128xf32>
    %161 = math.tanh %160 : vector<32x128xf32>
    %cst_46 = arith.constant 1.000000e+00 : f32
    %162 = vector.broadcast %cst_46 : f32 to vector<32x128xf32>
    %163 = arith.subf %162, %147 : vector<32x128xf32>
    %164 = arith.mulf %163, %110 : vector<32x128xf32>
    %165 = arith.mulf %147, %161 : vector<32x128xf32>
    %166 = arith.addf %164, %165 : vector<32x128xf32>
    %167 = vector.broadcast %8 : vector<1x128xf32> to vector<32x128xf32>
    %168 = arith.mulf %166, %167 : vector<32x128xf32>
    %cst_47 = arith.constant dense<0.000000e+00> : vector<32xf32>
    %169 = vector.multi_reduction <add>, %168, %cst_47 [1] : vector<32x128xf32> to vector<32xf32>
    %170 = vector.shape_cast %169 : vector<32xf32> to vector<32x1xf32>
    %171 = vector.broadcast %10 : vector<1x1xf32> to vector<32x1xf32>
    %172 = arith.addf %170, %171 : vector<32x1xf32>
    %173 = vector.broadcast %9 : vector<1x128xf32> to vector<32x128xf32>
    %174 = arith.mulf %166, %173 : vector<32x128xf32>
    %cst_48 = arith.constant dense<0.000000e+00> : vector<32xf32>
    %175 = vector.multi_reduction <add>, %174, %cst_48 [1] : vector<32x128xf32> to vector<32xf32>
    %176 = vector.shape_cast %175 : vector<32xf32> to vector<32x1xf32>
    %177 = vector.broadcast %11 : vector<1x1xf32> to vector<32x1xf32>
    %178 = arith.addf %176, %177 : vector<32x1xf32>
    %179 = arith.addf %123, %172 : vector<32x1xf32>
    %180 = arith.addf %124, %178 : vector<32x1xf32>
    %c3_i32 = arith.constant 3 : i32
    %181 = vector.broadcast %179 : vector<32x1xf32> to vector<32x128xf32>
    %182 = vector.broadcast %3 : vector<1x128xf32> to vector<32x128xf32>
    %183 = arith.mulf %181, %182 : vector<32x128xf32>
    %184 = vector.broadcast %180 : vector<32x1xf32> to vector<32x128xf32>
    %185 = vector.broadcast %4 : vector<1x128xf32> to vector<32x128xf32>
    %186 = arith.mulf %184, %185 : vector<32x128xf32>
    %187 = arith.addf %183, %186 : vector<32x128xf32>
    %188 = arith.addf %2, %187 : vector<32x128xf32>
    %cst_49 = arith.constant 0.000000e+00 : f32
    %189 = vector.broadcast %cst_49 : f32 to vector<32x128xf32>
    %190 = arith.maximumf %188, %189 : vector<32x128xf32>
    %191 = arith.truncf %190 : vector<32x128xf32> to vector<32x128xbf16>
    %cst_50 = arith.constant dense<0.000000e+00> : vector<32x384xf32>
    %192 = tpu.matmul %191, %5, %cst_50 {dimension_numbers = #tpu.dot_dimension_numbers<[1], [0], [0], [1], [0, 0, 1, 1], [], []>} : vector<32x128xbf16>, vector<128x384xbf16>, vector<32x384xf32> -> vector<32x384xf32>
    %193 = arith.addf %1, %192 : vector<32x384xf32>
    %194 = arith.truncf %166 : vector<32x128xf32> to vector<32x128xbf16>
    %cst_51 = arith.constant dense<0.000000e+00> : vector<32x256xf32>
    %195 = tpu.matmul %194, %6, %cst_51 {dimension_numbers = #tpu.dot_dimension_numbers<[1], [0], [0], [1], [0, 0, 1, 1], [], []>} : vector<32x128xbf16>, vector<128x256xbf16>, vector<32x256xf32> -> vector<32x256xf32>
    %196 = vector.extract_strided_slice %193 {offsets = [0, 0], sizes = [32, 128], strides = [1, 1]} : vector<32x384xf32> to vector<32x128xf32>
    %197 = vector.extract_strided_slice %195 {offsets = [0, 0], sizes = [32, 128], strides = [1, 1]} : vector<32x256xf32> to vector<32x128xf32>
    %198 = arith.addf %196, %197 : vector<32x128xf32>
    %199 = arith.negf %198 : vector<32x128xf32>
    %200 = math.exp %199 : vector<32x128xf32>
    %cst_52 = arith.constant 1.000000e+00 : f32
    %201 = vector.broadcast %cst_52 : f32 to vector<32x128xf32>
    %202 = arith.addf %201, %200 : vector<32x128xf32>
    %203 = arith.divf %201, %202 : vector<32x128xf32>
    %204 = vector.extract_strided_slice %193 {offsets = [0, 128], sizes = [32, 128], strides = [1, 1]} : vector<32x384xf32> to vector<32x128xf32>
    %205 = vector.extract_strided_slice %195 {offsets = [0, 128], sizes = [32, 128], strides = [1, 1]} : vector<32x256xf32> to vector<32x128xf32>
    %206 = arith.addf %204, %205 : vector<32x128xf32>
    %207 = arith.negf %206 : vector<32x128xf32>
    %208 = math.exp %207 : vector<32x128xf32>
    %cst_53 = arith.constant 1.000000e+00 : f32
    %209 = vector.broadcast %cst_53 : f32 to vector<32x128xf32>
    %210 = arith.addf %209, %208 : vector<32x128xf32>
    %211 = arith.divf %209, %210 : vector<32x128xf32>
    %212 = vector.extract_strided_slice %193 {offsets = [0, 256], sizes = [32, 128], strides = [1, 1]} : vector<32x384xf32> to vector<32x128xf32>
    %213 = arith.mulf %211, %166 : vector<32x128xf32>
    %214 = arith.truncf %213 : vector<32x128xf32> to vector<32x128xbf16>
    %cst_54 = arith.constant dense<0.000000e+00> : vector<32x128xf32>
    %215 = tpu.matmul %214, %7, %cst_54 {dimension_numbers = #tpu.dot_dimension_numbers<[1], [0], [0], [1], [0, 0, 1, 1], [], []>} : vector<32x128xbf16>, vector<128x128xbf16>, vector<32x128xf32> -> vector<32x128xf32>
    %216 = arith.addf %212, %215 : vector<32x128xf32>
    %217 = math.tanh %216 : vector<32x128xf32>
    %cst_55 = arith.constant 1.000000e+00 : f32
    %218 = vector.broadcast %cst_55 : f32 to vector<32x128xf32>
    %219 = arith.subf %218, %203 : vector<32x128xf32>
    %220 = arith.mulf %219, %166 : vector<32x128xf32>
    %221 = arith.mulf %203, %217 : vector<32x128xf32>
    %222 = arith.addf %220, %221 : vector<32x128xf32>
    %223 = vector.broadcast %8 : vector<1x128xf32> to vector<32x128xf32>
    %224 = arith.mulf %222, %223 : vector<32x128xf32>
    %cst_56 = arith.constant dense<0.000000e+00> : vector<32xf32>
    %225 = vector.multi_reduction <add>, %224, %cst_56 [1] : vector<32x128xf32> to vector<32xf32>
    %226 = vector.shape_cast %225 : vector<32xf32> to vector<32x1xf32>
    %227 = vector.broadcast %10 : vector<1x1xf32> to vector<32x1xf32>
    %228 = arith.addf %226, %227 : vector<32x1xf32>
    %229 = vector.broadcast %9 : vector<1x128xf32> to vector<32x128xf32>
    %230 = arith.mulf %222, %229 : vector<32x128xf32>
    %cst_57 = arith.constant dense<0.000000e+00> : vector<32xf32>
    %231 = vector.multi_reduction <add>, %230, %cst_57 [1] : vector<32x128xf32> to vector<32xf32>
    %232 = vector.shape_cast %231 : vector<32xf32> to vector<32x1xf32>
    %233 = vector.broadcast %11 : vector<1x1xf32> to vector<32x1xf32>
    %234 = arith.addf %232, %233 : vector<32x1xf32>
    %235 = arith.addf %179, %228 : vector<32x1xf32>
    %236 = arith.addf %180, %234 : vector<32x1xf32>
    %c4_i32 = arith.constant 4 : i32
    %237 = vector.broadcast %235 : vector<32x1xf32> to vector<32x128xf32>
    %238 = vector.broadcast %3 : vector<1x128xf32> to vector<32x128xf32>
    %239 = arith.mulf %237, %238 : vector<32x128xf32>
    %240 = vector.broadcast %236 : vector<32x1xf32> to vector<32x128xf32>
    %241 = vector.broadcast %4 : vector<1x128xf32> to vector<32x128xf32>
    %242 = arith.mulf %240, %241 : vector<32x128xf32>
    %243 = arith.addf %239, %242 : vector<32x128xf32>
    %244 = arith.addf %2, %243 : vector<32x128xf32>
    %cst_58 = arith.constant 0.000000e+00 : f32
    %245 = vector.broadcast %cst_58 : f32 to vector<32x128xf32>
    %246 = arith.maximumf %244, %245 : vector<32x128xf32>
    %247 = arith.truncf %246 : vector<32x128xf32> to vector<32x128xbf16>
    %cst_59 = arith.constant dense<0.000000e+00> : vector<32x384xf32>
    %248 = tpu.matmul %247, %5, %cst_59 {dimension_numbers = #tpu.dot_dimension_numbers<[1], [0], [0], [1], [0, 0, 1, 1], [], []>} : vector<32x128xbf16>, vector<128x384xbf16>, vector<32x384xf32> -> vector<32x384xf32>
    %249 = arith.addf %1, %248 : vector<32x384xf32>
    %250 = arith.truncf %222 : vector<32x128xf32> to vector<32x128xbf16>
    %cst_60 = arith.constant dense<0.000000e+00> : vector<32x256xf32>
    %251 = tpu.matmul %250, %6, %cst_60 {dimension_numbers = #tpu.dot_dimension_numbers<[1], [0], [0], [1], [0, 0, 1, 1], [], []>} : vector<32x128xbf16>, vector<128x256xbf16>, vector<32x256xf32> -> vector<32x256xf32>
    %252 = vector.extract_strided_slice %249 {offsets = [0, 0], sizes = [32, 128], strides = [1, 1]} : vector<32x384xf32> to vector<32x128xf32>
    %253 = vector.extract_strided_slice %251 {offsets = [0, 0], sizes = [32, 128], strides = [1, 1]} : vector<32x256xf32> to vector<32x128xf32>
    %254 = arith.addf %252, %253 : vector<32x128xf32>
    %255 = arith.negf %254 : vector<32x128xf32>
    %256 = math.exp %255 : vector<32x128xf32>
    %cst_61 = arith.constant 1.000000e+00 : f32
    %257 = vector.broadcast %cst_61 : f32 to vector<32x128xf32>
    %258 = arith.addf %257, %256 : vector<32x128xf32>
    %259 = arith.divf %257, %258 : vector<32x128xf32>
    %260 = vector.extract_strided_slice %249 {offsets = [0, 128], sizes = [32, 128], strides = [1, 1]} : vector<32x384xf32> to vector<32x128xf32>
    %261 = vector.extract_strided_slice %251 {offsets = [0, 128], sizes = [32, 128], strides = [1, 1]} : vector<32x256xf32> to vector<32x128xf32>
    %262 = arith.addf %260, %261 : vector<32x128xf32>
    %263 = arith.negf %262 : vector<32x128xf32>
    %264 = math.exp %263 : vector<32x128xf32>
    %cst_62 = arith.constant 1.000000e+00 : f32
    %265 = vector.broadcast %cst_62 : f32 to vector<32x128xf32>
    %266 = arith.addf %265, %264 : vector<32x128xf32>
    %267 = arith.divf %265, %266 : vector<32x128xf32>
    %268 = vector.extract_strided_slice %249 {offsets = [0, 256], sizes = [32, 128], strides = [1, 1]} : vector<32x384xf32> to vector<32x128xf32>
    %269 = arith.mulf %267, %222 : vector<32x128xf32>
    %270 = arith.truncf %269 : vector<32x128xf32> to vector<32x128xbf16>
    %cst_63 = arith.constant dense<0.000000e+00> : vector<32x128xf32>
    %271 = tpu.matmul %270, %7, %cst_63 {dimension_numbers = #tpu.dot_dimension_numbers<[1], [0], [0], [1], [0, 0, 1, 1], [], []>} : vector<32x128xbf16>, vector<128x128xbf16>, vector<32x128xf32> -> vector<32x128xf32>
    %272 = arith.addf %268, %271 : vector<32x128xf32>
    %273 = math.tanh %272 : vector<32x128xf32>
    %cst_64 = arith.constant 1.000000e+00 : f32
    %274 = vector.broadcast %cst_64 : f32 to vector<32x128xf32>
    %275 = arith.subf %274, %259 : vector<32x128xf32>
    %276 = arith.mulf %275, %222 : vector<32x128xf32>
    %277 = arith.mulf %259, %273 : vector<32x128xf32>
    %278 = arith.addf %276, %277 : vector<32x128xf32>
    %279 = vector.broadcast %8 : vector<1x128xf32> to vector<32x128xf32>
    %280 = arith.mulf %278, %279 : vector<32x128xf32>
    %cst_65 = arith.constant dense<0.000000e+00> : vector<32xf32>
    %281 = vector.multi_reduction <add>, %280, %cst_65 [1] : vector<32x128xf32> to vector<32xf32>
    %282 = vector.shape_cast %281 : vector<32xf32> to vector<32x1xf32>
    %283 = vector.broadcast %10 : vector<1x1xf32> to vector<32x1xf32>
    %284 = arith.addf %282, %283 : vector<32x1xf32>
    %285 = vector.broadcast %9 : vector<1x128xf32> to vector<32x128xf32>
    %286 = arith.mulf %278, %285 : vector<32x128xf32>
    %cst_66 = arith.constant dense<0.000000e+00> : vector<32xf32>
    %287 = vector.multi_reduction <add>, %286, %cst_66 [1] : vector<32x128xf32> to vector<32xf32>
    %288 = vector.shape_cast %287 : vector<32xf32> to vector<32x1xf32>
    %289 = vector.broadcast %11 : vector<1x1xf32> to vector<32x1xf32>
    %290 = arith.addf %288, %289 : vector<32x1xf32>
    %291 = arith.addf %235, %284 : vector<32x1xf32>
    %292 = arith.addf %236, %290 : vector<32x1xf32>
    %c0_67 = arith.constant 0 : index
    %c0_68 = arith.constant 0 : index
    %293 = vector.load %arg10[%c0_67, %c0_68] : memref<32x2xf32, #tpu.memory_space<vmem>>, vector<32x1xf32>
    tpu.vector_store %arg10[%c0_67, %c0_68], %291 {strides = array<i32>} : memref<32x2xf32, #tpu.memory_space<vmem>>, vector<32x1xf32>,
    %c0_69 = arith.constant 0 : index
    %c1_70 = arith.constant 1 : index
    %294 = vector.load %arg10[%c0_69, %c1_70] : memref<32x2xf32, #tpu.memory_space<vmem>>, vector<32x1xf32>
    tpu.vector_store %arg10[%c0_69, %c1_70], %292 {strides = array<i32>} : memref<32x2xf32, #tpu.memory_space<vmem>>, vector<32x1xf32>,
    return
  }
  func.func @transform_0(%arg0: i32) -> (i32, i32) {
    %c0_i32 = arith.constant 0 : i32
    %c0_i32_0 = arith.constant 0 : i32
    return %arg0, %c0_i32 : i32, i32
  }
  func.func @transform_1(%arg0: i32) -> (i32, i32) {
    %c0_i32 = arith.constant 0 : i32
    %c0_i32_0 = arith.constant 0 : i32
    return %arg0, %c0_i32 : i32, i32
  }
  func.func @transform_2(%arg0: i32) -> (i32, i32) {
    %c0_i32 = arith.constant 0 : i32
    %c0_i32_0 = arith.constant 0 : i32
    return %arg0, %c0_i32 : i32, i32
  }
  func.func @transform_3(%arg0: i32) -> (i32, i32) {
    %c0_i32 = arith.constant 0 : i32
    %c0_i32_0 = arith.constant 0 : i32
    %c0_i32_1 = arith.constant 0 : i32
    return %c0_i32, %c0_i32_0 : i32, i32
  }
  func.func @transform_4(%arg0: i32) -> (i32, i32) {
    %c0_i32 = arith.constant 0 : i32
    %c0_i32_0 = arith.constant 0 : i32
    %c0_i32_1 = arith.constant 0 : i32
    return %c0_i32, %c0_i32_0 : i32, i32
  }
  func.func @transform_5(%arg0: i32) -> (i32, i32) {
    %c0_i32 = arith.constant 0 : i32
    %c0_i32_0 = arith.constant 0 : i32
    %c0_i32_1 = arith.constant 0 : i32
    return %c0_i32, %c0_i32_0 : i32, i32
  }
  func.func @transform_6(%arg0: i32) -> (i32, i32) {
    %c0_i32 = arith.constant 0 : i32
    %c0_i32_0 = arith.constant 0 : i32
    %c0_i32_1 = arith.constant 0 : i32
    return %c0_i32, %c0_i32_0 : i32, i32
  }
  func.func @transform_7(%arg0: i32) -> (i32, i32) {
    %c0_i32 = arith.constant 0 : i32
    %c0_i32_0 = arith.constant 0 : i32
    %c0_i32_1 = arith.constant 0 : i32
    return %c0_i32, %c0_i32_0 : i32, i32
  }
  func.func @transform_8(%arg0: i32) -> (i32, i32) {
    %c0_i32 = arith.constant 0 : i32
    %c0_i32_0 = arith.constant 0 : i32
    %c0_i32_1 = arith.constant 0 : i32
    return %c0_i32, %c0_i32_0 : i32, i32
  }
  func.func @transform_9(%arg0: i32) -> (i32, i32) {
    %c0_i32 = arith.constant 0 : i32
    %c0_i32_0 = arith.constant 0 : i32
    return %arg0, %c0_i32 : i32, i32
  }
}

module attributes {stable_mosaic.version = 11 : i64} {
  func.func @_upsample_kernel(%arg0: i32, %arg1: i32, %arg2: memref<1x4x2xf32, #tpu.memory_space<vmem>>, %arg3: memref<4x32xf32, #tpu.memory_space<vmem>>, %arg4: memref<1x2x8x32xf32, #tpu.memory_space<vmem>>) attributes {dimension_semantics = [#tpu.dimension_semantics<parallel>, #tpu.dimension_semantics<parallel>], iteration_bounds = array<i64: 2, 4>, scalar_prefetch = 0 : i64, scratch_operands = 0 : i64, tpu.core_type = #tpu.core_type<tc>, window_params = [{transform_indices = @transform_0, window_bounds = array<i64: 1, 4, 2>}, {pipeline_mode = #tpu.pipeline_mode<synchronous>, transform_indices = @transform_1, window_bounds = array<i64: 4, 32>}, {transform_indices = @transform_2, window_bounds = array<i64: 1, 2, 8, 32>}]} {
    %c0 = arith.constant 0 : index
    %c0_0 = arith.constant 0 : index
    %c0_1 = arith.constant 0 : index
    %0 = vector.load %arg2[%c0, %c0_0, %c0_1] : memref<1x4x2xf32, #tpu.memory_space<vmem>>, vector<1x4x2xf32>
    %1 = vector.shape_cast %0 : vector<1x4x2xf32> to vector<4x2xf32>
    %c0_2 = arith.constant 0 : index
    %c0_3 = arith.constant 0 : index
    %2 = vector.load %arg3[%c0_2, %c0_3] : memref<4x32xf32, #tpu.memory_space<vmem>>, vector<4x32xf32>
    %3 = vector.extract_strided_slice %1 {offsets = [0, 0], sizes = [4, 1], strides = [1, 1]} : vector<4x2xf32> to vector<4x1xf32>
    %4 = vector.broadcast %3 : vector<4x1xf32> to vector<4x32xf32>
    %5 = arith.mulf %4, %2 : vector<4x32xf32>
    %cst = arith.constant dense<0.000000e+00> : vector<32xf32>
    %6 = vector.multi_reduction <add>, %5, %cst [0] : vector<4x32xf32> to vector<32xf32>
    %7 = vector.shape_cast %6 : vector<32xf32> to vector<1x32xf32>
    %8 = vector.extract_strided_slice %1 {offsets = [0, 1], sizes = [4, 1], strides = [1, 1]} : vector<4x2xf32> to vector<4x1xf32>
    %9 = vector.broadcast %8 : vector<4x1xf32> to vector<4x32xf32>
    %10 = arith.mulf %9, %2 : vector<4x32xf32>
    %cst_4 = arith.constant dense<0.000000e+00> : vector<32xf32>
    %11 = vector.multi_reduction <add>, %10, %cst_4 [0] : vector<4x32xf32> to vector<32xf32>
    %12 = vector.shape_cast %11 : vector<32xf32> to vector<1x32xf32>
    %13 = vector.shape_cast %7 : vector<1x32xf32> to vector<1x32xf32>
    %14 = vector.broadcast %13 : vector<1x32xf32> to vector<8x32xf32>
    %c0_5 = arith.constant 0 : index
    %c0_6 = arith.constant 0 : index
    %c0_7 = arith.constant 0 : index
    %c0_8 = arith.constant 0 : index
    %15 = vector.load %arg4[%c0_5, %c0_6, %c0_7, %c0_8] : memref<1x2x8x32xf32, #tpu.memory_space<vmem>>, vector<1x1x8x32xf32>
    %16 = vector.shape_cast %15 : vector<1x1x8x32xf32> to vector<8x32xf32>
    %17 = vector.shape_cast %14 : vector<8x32xf32> to vector<1x1x8x32xf32>
    tpu.vector_store %arg4[%c0_5, %c0_6, %c0_7, %c0_8], %17 {strides = array<i32>} : memref<1x2x8x32xf32, #tpu.memory_space<vmem>>, vector<1x1x8x32xf32>,
    %18 = vector.shape_cast %12 : vector<1x32xf32> to vector<1x32xf32>
    %19 = vector.broadcast %18 : vector<1x32xf32> to vector<8x32xf32>
    %c0_9 = arith.constant 0 : index
    %c1 = arith.constant 1 : index
    %c0_10 = arith.constant 0 : index
    %c0_11 = arith.constant 0 : index
    %20 = vector.load %arg4[%c0_9, %c1, %c0_10, %c0_11] : memref<1x2x8x32xf32, #tpu.memory_space<vmem>>, vector<1x1x8x32xf32>
    %21 = vector.shape_cast %20 : vector<1x1x8x32xf32> to vector<8x32xf32>
    %22 = vector.shape_cast %19 : vector<8x32xf32> to vector<1x1x8x32xf32>
    tpu.vector_store %arg4[%c0_9, %c1, %c0_10, %c0_11], %22 {strides = array<i32>} : memref<1x2x8x32xf32, #tpu.memory_space<vmem>>, vector<1x1x8x32xf32>,
    return
  }
  func.func @transform_0(%arg0: i32, %arg1: i32) -> (i32, i32, i32) {
    %c4_i32 = arith.constant 4 : i32
    %0 = arith.muli %arg0, %c4_i32 : i32
    %1 = arith.addi %0, %arg1 : i32
    %c0_i32 = arith.constant 0 : i32
    %c0_i32_0 = arith.constant 0 : i32
    %c0_i32_1 = arith.constant 0 : i32
    return %1, %c0_i32, %c0_i32_0 : i32, i32, i32
  }
  func.func @transform_1(%arg0: i32, %arg1: i32) -> (i32, i32) {
    %c0_i32 = arith.constant 0 : i32
    %c0_i32_0 = arith.constant 0 : i32
    %c0_i32_1 = arith.constant 0 : i32
    return %c0_i32, %c0_i32_0 : i32, i32
  }
  func.func @transform_2(%arg0: i32, %arg1: i32) -> (i32, i32, i32, i32) {
    %c0_i32 = arith.constant 0 : i32
    %c0_i32_0 = arith.constant 0 : i32
    %c0_i32_1 = arith.constant 0 : i32
    return %arg0, %c0_i32, %arg1, %c0_i32_0 : i32, i32, i32, i32
  }
}

</mosaic_0001>

<llo_original>
// kernel: raft_forward.9
$region0: #{raft_forward.9}
  #allocation0 [shape = 'u32[]', space=smem, size = 0x4, offset = 0x4, fixed_abs, tag = 'smem constant byte address 0x4 - core index']
  #allocation1 [shape = 'u32[72,128]{1,0:T(1,128)}', space=vmem, size = 0x9000, scoped, tag = 'internal scratch']
  %s0 = inlined_call_operand.vmem [shape: f32[32,256], index: 0, kind: input, shape index: {}]
  %s1 = inlined_call_operand.vmem [shape: bf16[128,384], index: 1, kind: input, shape index: {}]
  %s2 = inlined_call_operand.vmem [shape: f32[1,384], index: 2, kind: input, shape index: {}]
  %s3 = inlined_call_operand.vmem [shape: f32[32,384], index: 3, kind: output, shape index: {}]
  %s4 = sld [smem:[#allocation0]]
  $region60: #{raft_forward.9} parent=0
    _
  %s6 = ssub.s32 1, %s4
  %s7 = scalar_select 0, %s6, %s4
  $region1: #{raft_forward.9} parent=0
    #allocation2 [shape = 'u8[16384]{0}', space=vmem, size = 0x4000, scoped, tag = 'input window, operand 0, single buffered']
    // Predicated region
    $region2: #{raft_forward.9} parent=1 // pred_check
      _
    $region3: #{raft_forward.9} parent=1 // pred_check_branch
      %9 = sbr.rel (0) target = $region5
    $region4: #{raft_forward.9} parent=1 // pred_region
      %s10 = scalar_lea.vmem %s0, 8
      // Predicated region
      $region6: #{raft_forward.9} parent=4 // pred_check
        _
      $region7: #{raft_forward.9} parent=4 // pred_check_branch
        %12 = sbr.rel (0) target = $region9
      $region8: #{raft_forward.9} parent=4 // pred_region
        // Predicated region
        $region10: #{raft_forward.9} parent=8 // pred_check
          _
        $region11: #{raft_forward.9} parent=8 // pred_check_branch
          %14 = sbr.rel (0) target = $region13
        $region12: #{raft_forward.9} parent=8 // pred_region
          // Predicated region
          $region25: #{raft_forward.9} parent=12 // pred_check
            _
          $region26: #{raft_forward.9} parent=12 // pred_check_branch
            %36 = sbr.rel (0) target = $region28
          $region27: #{raft_forward.9} parent=12 // pred_region
            loop: start=0, step=1, limit=1
            $region29: #{raft_forward.9} parent=27 // loop_pre_header
              _
            $region30: #{raft_forward.9} parent=27 // loop_header
              %s38 = sphi 0, %s42
              %p39 = scmp.ge.s32.totalorder %s38, 1
              %s43 = sphi %s10, %s10
              %s44 = sphi [#allocation2], [#allocation2]
            $region31: #{raft_forward.9} parent=27 // loop_header_branch
              %41 = sbr.rel (%p39) target = $region35
            $region32: #{raft_forward.9} parent=27 // loop_body
              %v45 = vld [vmem:[%s43] sm:$0xff]
              %46 = vst [vmem:[%s44] sm:$0xff] %v45
              %v47 = vld [vmem:[%s43 + $0x10] sm:$0xff]
              %48 = vst [vmem:[%s44 + $0x8] sm:$0xff] %v47
              %v49 = vld [vmem:[%s43 + $0x20] sm:$0xff]
              %50 = vst [vmem:[%s44 + $0x10] sm:$0xff] %v49
              %v51 = vld [vmem:[%s43 + $0x30] sm:$0xff]
              %52 = vst [vmem:[%s44 + $0x18] sm:$0xff] %v51
            $region33: #{raft_forward.9} parent=27 // loop_footer
              %s42 = sadd.s32 1, %s38
            $region34: #{raft_forward.9} parent=27 // loop_footer_branch
              %37 = sbr.rel target = $region30
            $region35: #{raft_forward.9} parent=27 // loop_exit
              _
          $region28: #{raft_forward.9} parent=12 // pred_fallthru
            _
          // Predicated region
          $region36: #{raft_forward.9} parent=12 // pred_check
            _
          $region37: #{raft_forward.9} parent=12 // pred_check_branch
            %54 = sbr.rel target = $region39
          $region38: #{raft_forward.9} parent=12 // pred_region
            _
          $region39: #{raft_forward.9} parent=12 // pred_fallthru
            _
        $region13: #{raft_forward.9} parent=8 // pred_fallthru
          _
        // Predicated region
        $region14: #{raft_forward.9} parent=8 // pred_check
          _
        $region15: #{raft_forward.9} parent=8 // pred_check_branch
          %16 = sbr.rel target = $region17
        $region16: #{raft_forward.9} parent=8 // pred_region
          %s18 = ssub.s32 256, 1
          loop: start=0, step=1, limit=1
          $region18: #{raft_forward.9} parent=16 // loop_pre_header
            _
          $region19: #{raft_forward.9} parent=16 // loop_header
            %s20 = sphi 0, %s24
            %p21 = scmp.ge.s32.totalorder %s20, 1
            %s25 = sphi %s10, %s10
            %s26 = sphi [#allocation2], [#allocation2]
          $region20: #{raft_forward.9} parent=16 // loop_header_branch
            %23 = sbr.rel (%p21) target = $region24
          $region21: #{raft_forward.9} parent=16 // loop_body
            %v27 = vld [vmem:[%s25] sm:%s18]
            %28 = vst [vmem:[%s26] sm:%s18] %v27
            %v29 = vld [vmem:[%s25 + $0x10] sm:%s18]
            %30 = vst [vmem:[%s26 + $0x8] sm:%s18] %v29
            %v31 = vld [vmem:[%s25 + $0x20] sm:%s18]
            %32 = vst [vmem:[%s26 + $0x10] sm:%s18] %v31
            %v33 = vld [vmem:[%s25 + $0x30] sm:%s18]
            %34 = vst [vmem:[%s26 + $0x18] sm:%s18] %v33
          $region22: #{raft_forward.9} parent=16 // loop_footer
            %s24 = sadd.s32 1, %s20
          $region23: #{raft_forward.9} parent=16 // loop_footer_branch
            %19 = sbr.rel target = $region19
          $region24: #{raft_forward.9} parent=16 // loop_exit
            _
        $region17: #{raft_forward.9} parent=8 // pred_fallthru
          _
      $region9: #{raft_forward.9} parent=4 // pred_fallthru
        _
      %55 = vnop
    $region5: #{raft_forward.9} parent=1 // pred_fallthru
      _
    // Predicated region
    $region40: #{raft_forward.9} parent=1 // pred_check
      _
    $region41: #{raft_forward.9} parent=1 // pred_check_branch
      %57 = sbr.rel (0) target = $region43
    $region42: #{raft_forward.9} parent=1 // pred_region
      _
    $region43: #{raft_forward.9} parent=1 // pred_fallthru
      _
    // Predicated region
    $region44: #{raft_forward.9} parent=1 // pred_check
      _
    $region45: #{raft_forward.9} parent=1 // pred_check_branch
      %59 = sbr.rel (0) target = $region47
    $region46: #{raft_forward.9} parent=1 // pred_region
      _
    $region47: #{raft_forward.9} parent=1 // pred_fallthru
      _
    // Predicated region
    $region48: #{raft_forward.9} parent=1 // pred_check
      _
    $region49: #{raft_forward.9} parent=1 // pred_check_branch
      %61 = sbr.rel (0) target = $region51
    $region50: #{raft_forward.9} parent=1 // pred_region
      _
    $region51: #{raft_forward.9} parent=1 // pred_fallthru
      _
    %v62 = vld [vmem:[#allocation2] sm:$0xff]
    %v63 = vld [vmem:[#allocation2 + $0x8] sm:$0xff]
    %v64 = vld [vmem:[#allocation2 + $0x10] sm:$0xff]
    %v65 = vld [vmem:[#allocation2 + $0x18] sm:$0xff]
    %v66 = vpack.c.bf16 %v63, %v62
    %v67 = vpack.c.bf16 %v65, %v64
    %v68 = vld [vmem:[%s1] sm:$0xff]
    %v69 = vld [vmem:[%s1 + $0x8] sm:$0xf]
    %v70 = vld [vmem:[%s1 + $0xc] sm:$0xff]
    %v71 = vld [vmem:[%s1 + $0x14] sm:$0xf]
    %v72 = vld [vmem:[%s1 + $0x18] sm:$0xff]
    %v73 = vld [vmem:[%s1 + $0x20] sm:$0xf]
    %v74 = vld [vmem:[%s1 + $0x24] sm:$0xff]
    %v75 = vld [vmem:[%s1 + $0x2c] sm:$0xf]
    %v76 = vld [vmem:[%s1 + $0x30] sm:$0xff]
    %v77 = vld [vmem:[%s1 + $0x38] sm:$0xf]
    %v78 = vld [vmem:[%s1 + $0x3c] sm:$0xff]
    %v79 = vld [vmem:[%s1 + $0x44] sm:$0xf]
    %v80 = vld [vmem:[%s1 + $0x48] sm:$0xff]
    %v81 = vld [vmem:[%s1 + $0x50] sm:$0xf]
    %v82 = vld [vmem:[%s1 + $0x54] sm:$0xff]
    %v83 = vld [vmem:[%s1 + $0x5c] sm:$0xf]
    %v84 = vld [vmem:[%s1 + $0x60] sm:$0xff]
    %v85 = vld [vmem:[%s1 + $0x68] sm:$0xf]
    %v86 = vld [vmem:[%s1 + $0x6c] sm:$0xff]
    %v87 = vld [vmem:[%s1 + $0x74] sm:$0xf]
    %v88 = vld [vmem:[%s1 + $0x78] sm:$0xff]
    %v89 = vld [vmem:[%s1 + $0x80] sm:$0xf]
    %v90 = vld [vmem:[%s1 + $0x84] sm:$0xff]
    %v91 = vld [vmem:[%s1 + $0x8c] sm:$0xf]
    %v92 = vld [vmem:[%s1 + $0x90] sm:$0xff]
    %v93 = vld [vmem:[%s1 + $0x98] sm:$0xf]
    %v94 = vld [vmem:[%s1 + $0x9c] sm:$0xff]
    %v95 = vld [vmem:[%s1 + $0xa4] sm:$0xf]
    %v96 = vld [vmem:[%s1 + $0xa8] sm:$0xff]
    %v97 = vld [vmem:[%s1 + $0xb0] sm:$0xf]
    %v98 = vld [vmem:[%s1 + $0xb4] sm:$0xff]
    %v99 = vld [vmem:[%s1 + $0xbc] sm:$0xf]
    %v100 = vld [vmem:[%s2] sm:$0x7]
    %v102 = vperm.slane %v100, 0
    %v103 = vperm.slane %v100, 1
    %v104 = vperm.slane %v100, 2
    %v140 = vunpack.c.l.b16 %v68
    %v141 = vunpack.c.h.b16 %v68
    %v142 = vunpack.c.l.b16 %v69
    %v143 = vunpack.c.l.b16 %v70
    %v144 = vunpack.c.h.b16 %v70
    %v145 = vunpack.c.l.b16 %v71
    %v146 = vunpack.c.l.b16 %v72
    %v147 = vunpack.c.h.b16 %v72
    %v148 = vunpack.c.l.b16 %v73
    %v149 = vunpack.c.l.b16 %v74
    %v150 = vunpack.c.h.b16 %v74
    %v151 = vunpack.c.l.b16 %v75
    %v152 = vunpack.c.l.b16 %v76
    %v153 = vunpack.c.h.b16 %v76
    %v154 = vunpack.c.l.b16 %v77
    %v155 = vunpack.c.l.b16 %v78
    %v156 = vunpack.c.h.b16 %v78
    %v157 = vunpack.c.l.b16 %v79
    %v158 = vunpack.c.l.b16 %v80
    %v159 = vunpack.c.h.b16 %v80
    %v160 = vunpack.c.l.b16 %v81
    %v161 = vunpack.c.l.b16 %v82
    %v162 = vunpack.c.h.b16 %v82
    %v163 = vunpack.c.l.b16 %v83
    %v164 = vunpack.c.l.b16 %v84
    %v165 = vunpack.c.h.b16 %v84
    %v166 = vunpack.c.l.b16 %v85
    %v167 = vunpack.c.l.b16 %v86
    %v168 = vunpack.c.h.b16 %v86
    %v169 = vunpack.c.l.b16 %v87
    %v170 = vunpack.c.l.b16 %v88
    %v171 = vunpack.c.h.b16 %v88
    %v172 = vunpack.c.l.b16 %v89
    %v173 = vunpack.c.l.b16 %v90
    %v174 = vunpack.c.h.b16 %v90
    %v175 = vunpack.c.l.b16 %v91
    %v176 = vunpack.c.l.b16 %v92
    %v177 = vunpack.c.h.b16 %v92
    %v178 = vunpack.c.l.b16 %v93
    %v179 = vunpack.c.l.b16 %v94
    %v180 = vunpack.c.h.b16 %v94
    %v181 = vunpack.c.l.b16 %v95
    %v182 = vunpack.c.l.b16 %v96
    %v183 = vunpack.c.h.b16 %v96
    %v184 = vunpack.c.l.b16 %v97
    %v185 = vunpack.c.l.b16 %v98
    %v186 = vunpack.c.h.b16 %v98
    %v187 = vunpack.c.l.b16 %v99
    %v188 = vpack.c.b16 %v143, %v140
    %v189 = vpack.c.b16 %v144, %v141
    %v190 = vpack.c.b16 %v145, %v142
    %v191 = vpack.c.b16 %v149, %v146
    %v192 = vpack.c.b16 %v150, %v147
    %v193 = vpack.c.b16 %v151, %v148
    %v194 = vpack.c.b16 %v155, %v152
    %v195 = vpack.c.b16 %v156, %v153
    %v196 = vpack.c.b16 %v157, %v154
    %v197 = vpack.c.b16 %v161, %v158
    %v198 = vpack.c.b16 %v162, %v159
    %v199 = vpack.c.b16 %v163, %v160
    %v200 = vpack.c.b16 %v167, %v164
    %v201 = vpack.c.b16 %v168, %v165
    %v202 = vpack.c.b16 %v169, %v166
    %v203 = vpack.c.b16 %v173, %v170
    %v204 = vpack.c.b16 %v174, %v171
    %v205 = vpack.c.b16 %v175, %v172
    %v206 = vpack.c.b16 %v179, %v176
    %v207 = vpack.c.b16 %v180, %v177
    %v208 = vpack.c.b16 %v181, %v178
    %v209 = vpack.c.b16 %v185, %v182
    %v210 = vpack.c.b16 %v186, %v183
    %v211 = vpack.c.b16 %v187, %v184
    %236 = vmatpush.bf16.msra.mxu0 %v209
    %237 = vmatpush.bf16.msra.mxu0 %v206
    %238 = vmatpush.bf16.msra.mxu0 %v203
    %239 = vmatpush.bf16.msra.mxu0 %v200
    %240 = vmatpush.bf16.msra.mxu0 %v197
    %241 = vmatpush.bf16.msra.mxu0 %v194
    %242 = vmatpush.bf16.msra.mxu0 %v191
    %243 = vmatpush.bf16.msra.mxu0 %v188
    %244 = vmatmul.bf16.gmra.mxu0 %v66
    %v245 = vpop.f32.mrf.mxu0
    %v246 = vadd.f32 %v102, %v245
    %v247 = vpop.f32.mrf.mxu0
    %v248 = vadd.f32 %v102, %v247
    %249 = vmatmul.bf16.gmra.mxu0 %v67
    %v250 = vpop.f32.mrf.mxu0
    %v251 = vadd.f32 %v102, %v250
    %v252 = vpop.f32.mrf.mxu0
    %v253 = vadd.f32 %v102, %v252
    %254 = vdwg.mxu0
    %255 = vmatpush.bf16.msra.mxu0 %v210
    %256 = vmatpush.bf16.msra.mxu0 %v207
    %257 = vmatpush.bf16.msra.mxu0 %v204
    %258 = vmatpush.bf16.msra.mxu0 %v201
    %259 = vmatpush.bf16.msra.mxu0 %v198
    %260 = vmatpush.bf16.msra.mxu0 %v195
    %261 = vmatpush.bf16.msra.mxu0 %v192
    %262 = vmatpush.bf16.msra.mxu0 %v189
    %263 = vmatmul.bf16.gmra.mxu0 %v66
    %v264 = vpop.f32.mrf.mxu0
    %v265 = vadd.f32 %v103, %v264
    %v266 = vpop.f32.mrf.mxu0
    %v267 = vadd.f32 %v103, %v266
    %268 = vmatmul.bf16.gmra.mxu0 %v67
    %v269 = vpop.f32.mrf.mxu0
    %v270 = vadd.f32 %v103, %v269
    %v271 = vpop.f32.mrf.mxu0
    %v272 = vadd.f32 %v103, %v271
    %273 = vdwg.mxu0
    %274 = vmatpush.bf16.msra.mxu0 %v211
    %275 = vmatpush.bf16.msra.mxu0 %v208
    %276 = vmatpush.bf16.msra.mxu0 %v205
    %277 = vmatpush.bf16.msra.mxu0 %v202
    %278 = vmatpush.bf16.msra.mxu0 %v199
    %279 = vmatpush.bf16.msra.mxu0 %v196
    %280 = vmatpush.bf16.msra.mxu0 %v193
    %281 = vmatpush.bf16.msra.mxu0 %v190
    %282 = vmatmul.bf16.gmra.mxu0 %v66
    %v283 = vpop.f32.mrf.mxu0
    %v284 = vadd.f32 %v104, %v283
    %v285 = vpop.f32.mrf.mxu0
    %v286 = vadd.f32 %v104, %v285
    %287 = vmatmul.bf16.gmra.mxu0 %v67
    %v288 = vpop.f32.mrf.mxu0
    %v289 = vadd.f32 %v104, %v288
    %v290 = vpop.f32.mrf.mxu0
    %v291 = vadd.f32 %v104, %v290
    %292 = vdwg.mxu0
    %293 = vst [vmem:[%s3] sm:$0xff] %v246
    %294 = vst [vmem:[%s3 + $0x8] sm:$0xff] %v265
    %295 = vst [vmem:[%s3 + $0x10] sm:$0xff] %v284
    %296 = vst [vmem:[%s3 + $0x18] sm:$0xff] %v248
    %297 = vst [vmem:[%s3 + $0x20] sm:$0xff] %v267
    %298 = vst [vmem:[%s3 + $0x28] sm:$0xff] %v286
    %299 = vst [vmem:[%s3 + $0x30] sm:$0xff] %v251
    %300 = vst [vmem:[%s3 + $0x38] sm:$0xff] %v270
    %301 = vst [vmem:[%s3 + $0x40] sm:$0xff] %v289
    %302 = vst [vmem:[%s3 + $0x48] sm:$0xff] %v253
    %303 = vst [vmem:[%s3 + $0x50] sm:$0xff] %v272
    %304 = vst [vmem:[%s3 + $0x58] sm:$0xff] %v291
    // Predicated region
    $region52: #{raft_forward.9} parent=1 // pred_check
      _
    $region53: #{raft_forward.9} parent=1 // pred_check_branch
      %306 = sbr.rel (0) target = $region55
    $region54: #{raft_forward.9} parent=1 // pred_region
      _
    $region55: #{raft_forward.9} parent=1 // pred_fallthru
      _
    // Predicated region
    $region56: #{raft_forward.9} parent=1 // pred_check
      _
    $region57: #{raft_forward.9} parent=1 // pred_check_branch
      %308 = sbr.rel (0) target = $region59
    $region58: #{raft_forward.9} parent=1 // pred_region
      _
    $region59: #{raft_forward.9} parent=1 // pred_fallthru
      _

// kernel: raft_forward.7
$region0: #{raft_forward.7}
  #allocation0 [shape = 'u32[]', space=smem, size = 0x4, offset = 0x4, fixed_abs, tag = 'smem constant byte address 0x4 - core index']
  #allocation1 [shape = 'u32[72,128]{1,0:T(1,128)}', space=vmem, size = 0x9000, scoped, tag = 'internal scratch']
  %s0 = inlined_call_operand.vmem [shape: bf16[64,192], index: 0, kind: input, shape index: {}]
  %s1 = inlined_call_operand.vmem [shape: bf16[192,256], index: 1, kind: input, shape index: {}]
  %s2 = inlined_call_operand.vmem [shape: f32[1,256], index: 2, kind: input, shape index: {}]
  %s3 = inlined_call_operand.vmem [shape: f32[32,256], index: 3, kind: output, shape index: {}]
  %s4 = sld [smem:[#allocation0]]
  $region22: #{raft_forward.7} parent=0
    _
  %s6 = ssub.s32 1, %s4
  %s7 = scalar_select 0, %s6, %s4
  // Predicated region
  $region2: #{raft_forward.7} parent=0 // pred_check
    _
  $region3: #{raft_forward.7} parent=0 // pred_check_branch
    %9 = sbr.rel (0) target = $region5
  $region4: #{raft_forward.7} parent=0 // pred_region
    _
  $region5: #{raft_forward.7} parent=0 // pred_fallthru
    _
  // Predicated region
  $region6: #{raft_forward.7} parent=0 // pred_check
    _
  $region7: #{raft_forward.7} parent=0 // pred_check_branch
    %11 = sbr.rel (0) target = $region9
  $region8: #{raft_forward.7} parent=0 // pred_region
    _
  $region9: #{raft_forward.7} parent=0 // pred_fallthru
    _
  // Predicated region
  $region10: #{raft_forward.7} parent=0 // pred_check
    _
  $region11: #{raft_forward.7} parent=0 // pred_check_branch
    %13 = sbr.rel (0) target = $region13
  $region12: #{raft_forward.7} parent=0 // pred_region
    _
  $region13: #{raft_forward.7} parent=0 // pred_fallthru
    _
  %v15 = vld [vmem:[%s0] sm:$0xff]
  %v16 = vld [vmem:[%s0 + $0x8] sm:$0xff]
  %v17 = vld [vmem:[%s0 + $0x10] sm:$0xff]
  %v18 = vld [vmem:[%s0 + $0x18] sm:$0xff]
  %v19 = vunpack.c.l.bf16 %v15
  %v20 = vunpack.c.h.bf16 %v15
  %v21 = vunpack.c.l.bf16 %v16
  %v22 = vunpack.c.h.bf16 %v16
  %v23 = vunpack.c.l.bf16 %v17
  %v24 = vunpack.c.h.bf16 %v17
  %v25 = vunpack.c.l.bf16 %v18
  %v26 = vunpack.c.h.bf16 %v18
  %v27 = vmul.f32 %v19, 2.0
  %v28 = vmul.f32 %v20, 2.0
  %v29 = vmul.f32 %v21, 2.0
  %v30 = vmul.f32 %v22, 2.0
  %v31 = vmul.f32 %v23, 2.0
  %v32 = vmul.f32 %v24, 2.0
  %v33 = vmul.f32 %v25, 2.0
  %v34 = vmul.f32 %v26, 2.0
  %v35 = vsub.f32 %v27, 1.0
  %v36 = vsub.f32 %v28, 1.0
  %v37 = vsub.f32 %v29, 1.0
  %v38 = vsub.f32 %v30, 1.0
  %v39 = vsub.f32 %v31, 1.0
  %v40 = vsub.f32 %v32, 1.0
  %v41 = vsub.f32 %v33, 1.0
  %v42 = vsub.f32 %v34, 1.0
  %v43 = vpack.c.bf16 %v37, %v35
  %v44 = vpack.c.bf16 %v38, %v36
  %v45 = vpack.c.bf16 %v41, %v39
  %v46 = vpack.c.bf16 %v42, %v40
  %v47 = vld [vmem:[%s1] sm:$0xff]
  %v48 = vld [vmem:[%s1 + $0x8] sm:$0xff]
  %v49 = vld [vmem:[%s1 + $0x10] sm:$0xff]
  %v50 = vld [vmem:[%s1 + $0x18] sm:$0xff]
  %v51 = vld [vmem:[%s1 + $0x20] sm:$0xff]
  %v52 = vld [vmem:[%s1 + $0x28] sm:$0xff]
  %v53 = vld [vmem:[%s1 + $0x30] sm:$0xff]
  %v54 = vld [vmem:[%s1 + $0x38] sm:$0xff]
  %v55 = vld [vmem:[%s1 + $0x40] sm:$0xff]
  %v56 = vld [vmem:[%s1 + $0x48] sm:$0xff]
  %v57 = vld [vmem:[%s1 + $0x50] sm:$0xff]
  %v58 = vld [vmem:[%s1 + $0x58] sm:$0xff]
  %v59 = vld [vmem:[%s1 + $0x60] sm:$0xff]
  %v60 = vld [vmem:[%s1 + $0x68] sm:$0xff]
  %v61 = vld [vmem:[%s1 + $0x70] sm:$0xff]
  %v62 = vld [vmem:[%s1 + $0x78] sm:$0xff]
  %v63 = vld [vmem:[%s1 + $0x80] sm:$0xff]
  %v64 = vld [vmem:[%s1 + $0x88] sm:$0xff]
  %v65 = vld [vmem:[%s1 + $0x90] sm:$0xff]
  %v66 = vld [vmem:[%s1 + $0x98] sm:$0xff]
  %v67 = vld [vmem:[%s1 + $0xa0] sm:$0xff]
  %v68 = vld [vmem:[%s1 + $0xa8] sm:$0xff]
  %v69 = vld [vmem:[%s1 + $0xb0] sm:$0xff]
  %v70 = vld [vmem:[%s1 + $0xb8] sm:$0xff]
  %v71 = vld [vmem:[%s2] sm:$0x3]
  %v73 = vperm.slane %v71, 0
  %v74 = vperm.slane %v71, 1
  %v101 = vunpack.c.l.b16 %v47
  %v102 = vunpack.c.h.b16 %v47
  %v103 = vunpack.c.l.b16 %v48
  %v104 = vunpack.c.h.b16 %v48
  %v105 = vunpack.c.l.b16 %v49
  %v106 = vunpack.c.h.b16 %v49
  %v107 = vunpack.c.l.b16 %v50
  %v108 = vunpack.c.h.b16 %v50
  %v109 = vunpack.c.l.b16 %v51
  %v110 = vunpack.c.h.b16 %v51
  %v111 = vunpack.c.l.b16 %v52
  %v112 = vunpack.c.h.b16 %v52
  %v113 = vunpack.c.l.b16 %v53
  %v114 = vunpack.c.h.b16 %v53
  %v115 = vunpack.c.l.b16 %v54
  %v116 = vunpack.c.h.b16 %v54
  %v117 = vunpack.c.l.b16 %v55
  %v118 = vunpack.c.h.b16 %v55
  %v119 = vunpack.c.l.b16 %v56
  %v120 = vunpack.c.h.b16 %v56
  %v121 = vunpack.c.l.b16 %v57
  %v122 = vunpack.c.h.b16 %v57
  %v123 = vunpack.c.l.b16 %v58
  %v124 = vunpack.c.h.b16 %v58
  %v125 = vunpack.c.l.b16 %v59
  %v126 = vunpack.c.h.b16 %v59
  %v127 = vunpack.c.l.b16 %v60
  %v128 = vunpack.c.h.b16 %v60
  %v129 = vunpack.c.l.b16 %v61
  %v130 = vunpack.c.h.b16 %v61
  %v131 = vunpack.c.l.b16 %v62
  %v132 = vunpack.c.h.b16 %v62
  %v133 = vunpack.c.l.b16 %v63
  %v134 = vunpack.c.h.b16 %v63
  %v135 = vunpack.c.l.b16 %v64
  %v136 = vunpack.c.h.b16 %v64
  %v137 = vunpack.c.l.b16 %v65
  %v138 = vunpack.c.h.b16 %v65
  %v139 = vunpack.c.l.b16 %v66
  %v140 = vunpack.c.h.b16 %v66
  %v141 = vunpack.c.l.b16 %v67
  %v142 = vunpack.c.h.b16 %v67
  %v143 = vunpack.c.l.b16 %v68
  %v144 = vunpack.c.h.b16 %v68
  %v145 = vunpack.c.l.b16 %v69
  %v146 = vunpack.c.h.b16 %v69
  %v147 = vunpack.c.l.b16 %v70
  %v148 = vunpack.c.h.b16 %v70
  %v149 = vpack.c.b16 %v103, %v101
  %v150 = vpack.c.b16 %v104, %v102
  %v151 = vpack.c.b16 %v107, %v105
  %v152 = vpack.c.b16 %v108, %v106
  %v153 = vpack.c.b16 %v111, %v109
  %v154 = vpack.c.b16 %v112, %v110
  %v155 = vpack.c.b16 %v115, %v113
  %v156 = vpack.c.b16 %v116, %v114
  %v157 = vpack.c.b16 %v119, %v117
  %v158 = vpack.c.b16 %v120, %v118
  %v159 = vpack.c.b16 %v123, %v121
  %v160 = vpack.c.b16 %v124, %v122
  %v161 = vpack.c.b16 %v127, %v125
  %v162 = vpack.c.b16 %v128, %v126
  %v163 = vpack.c.b16 %v131, %v129
  %v164 = vpack.c.b16 %v132, %v130
  %v165 = vpack.c.b16 %v135, %v133
  %v166 = vpack.c.b16 %v136, %v134
  %v167 = vpack.c.b16 %v139, %v137
  %v168 = vpack.c.b16 %v140, %v138
  %v169 = vpack.c.b16 %v143, %v141
  %v170 = vpack.c.b16 %v144, %v142
  %v171 = vpack.c.b16 %v147, %v145
  %v172 = vpack.c.b16 %v148, %v146
  %vm197 = vcmask 523264
  %v199 = vsel %vm197, %v44, 0
  %v202 = vsel %vm197, %v46, 0
  %204 = vmatpush.bf16.msra.mxu0 %v163
  %205 = vmatpush.bf16.msra.mxu0 %v161
  %206 = vmatpush.bf16.msra.mxu0 %v159
  %207 = vmatpush.bf16.msra.mxu0 %v157
  %208 = vmatpush.bf16.msra.mxu0 %v155
  %209 = vmatpush.bf16.msra.mxu0 %v153
  %210 = vmatpush.bf16.msra.mxu0 %v151
  %211 = vmatpush.bf16.msra.mxu0 %v149
  %212 = vmatmul.bf16.gmra.mxu0 %v43
  %v213 = vpop.f32.mrf.mxu0
  %v214 = vadd.f32 %v73, %v213
  %v215 = vpop.f32.mrf.mxu0
  %v216 = vadd.f32 %v73, %v215
  %217 = vmatmul.bf16.gmra.mxu0 %v45
  %v218 = vpop.f32.mrf.mxu0
  %v219 = vadd.f32 %v73, %v218
  %v220 = vpop.f32.mrf.mxu0
  %v221 = vadd.f32 %v73, %v220
  %222 = vdwg.mxu0
  %223 = vmatpush.bf16.msra.mxu0 0
  %224 = vmatpush.bf16.msra.mxu0 0
  %225 = vmatpush.bf16.msra.mxu0 0
  %226 = vmatpush.bf16.msra.mxu0 0
  %227 = vmatpush.bf16.msra.mxu0 %v171
  %228 = vmatpush.bf16.msra.mxu0 %v169
  %229 = vmatpush.bf16.msra.mxu0 %v167
  %230 = vmatpush.bf16.msra.mxu0 %v165
  %231 = vmatmul.bf16.gmra.mxu0 %v199
  %v232 = vpop.f32.mrf.mxu0
  %v233 = vadd.f32 %v214, %v232
  %v234 = vpop.f32.mrf.mxu0
  %v235 = vadd.f32 %v216, %v234
  %236 = vmatmul.bf16.gmra.mxu0 %v202
  %v237 = vpop.f32.mrf.mxu0
  %v238 = vadd.f32 %v219, %v237
  %v239 = vpop.f32.mrf.mxu0
  %v240 = vadd.f32 %v221, %v239
  %241 = vdwg.mxu0
  %242 = vmatpush.bf16.msra.mxu0 %v164
  %243 = vmatpush.bf16.msra.mxu0 %v162
  %244 = vmatpush.bf16.msra.mxu0 %v160
  %245 = vmatpush.bf16.msra.mxu0 %v158
  %246 = vmatpush.bf16.msra.mxu0 %v156
  %247 = vmatpush.bf16.msra.mxu0 %v154
  %248 = vmatpush.bf16.msra.mxu0 %v152
  %249 = vmatpush.bf16.msra.mxu0 %v150
  %250 = vmatmul.bf16.gmra.mxu0 %v43
  %v251 = vpop.f32.mrf.mxu0
  %v252 = vadd.f32 %v74, %v251
  %v253 = vpop.f32.mrf.mxu0
  %v254 = vadd.f32 %v74, %v253
  %255 = vmatmul.bf16.gmra.mxu0 %v45
  %v256 = vpop.f32.mrf.mxu0
  %v257 = vadd.f32 %v74, %v256
  %v258 = vpop.f32.mrf.mxu0
  %v259 = vadd.f32 %v74, %v258
  %260 = vdwg.mxu0
  %261 = vmatpush.bf16.msra.mxu0 0
  %262 = vmatpush.bf16.msra.mxu0 0
  %263 = vmatpush.bf16.msra.mxu0 0
  %264 = vmatpush.bf16.msra.mxu0 0
  %265 = vmatpush.bf16.msra.mxu0 %v172
  %266 = vmatpush.bf16.msra.mxu0 %v170
  %267 = vmatpush.bf16.msra.mxu0 %v168
  %268 = vmatpush.bf16.msra.mxu0 %v166
  %269 = vmatmul.bf16.gmra.mxu0 %v199
  %v270 = vpop.f32.mrf.mxu0
  %v271 = vadd.f32 %v252, %v270
  %v272 = vpop.f32.mrf.mxu0
  %v273 = vadd.f32 %v254, %v272
  %274 = vmatmul.bf16.gmra.mxu0 %v202
  %v275 = vpop.f32.mrf.mxu0
  %v276 = vadd.f32 %v257, %v275
  %v277 = vpop.f32.mrf.mxu0
  %v278 = vadd.f32 %v259, %v277
  %279 = vdwg.mxu0
  %v280 = vtanh.pop %v233
  %v281 = vtanh.pop %v235
  %v282 = vtanh.pop %v238
  %v283 = vtanh.pop %v240
  %284 = vst [vmem:[%s3] sm:$0xff] %v280
  %285 = vst [vmem:[%s3 + $0x10] sm:$0xff] %v281
  %286 = vst [vmem:[%s3 + $0x20] sm:$0xff] %v282
  %287 = vst [vmem:[%s3 + $0x30] sm:$0xff] %v283
  %v288 = vmax.f32 %v271, 0.0
  %v289 = vmax.f32 %v273, 0.0
  %v290 = vmax.f32 %v276, 0.0
  %v291 = vmax.f32 %v278, 0.0
  %292 = vst [vmem:[%s3 + $0x8] sm:$0xff] %v288
  %293 = vst [vmem:[%s3 + $0x18] sm:$0xff] %v289
  %294 = vst [vmem:[%s3 + $0x28] sm:$0xff] %v290
  %295 = vst [vmem:[%s3 + $0x38] sm:$0xff] %v291
  // Predicated region
  $region14: #{raft_forward.7} parent=0 // pred_check
    _
  $region15: #{raft_forward.7} parent=0 // pred_check_branch
    %297 = sbr.rel (0) target = $region17
  $region16: #{raft_forward.7} parent=0 // pred_region
    _
  $region17: #{raft_forward.7} parent=0 // pred_fallthru
    _
  // Predicated region
  $region18: #{raft_forward.7} parent=0 // pred_check
    _
  $region19: #{raft_forward.7} parent=0 // pred_check_branch
    %299 = sbr.rel (0) target = $region21
  $region20: #{raft_forward.7} parent=0 // pred_region
    _
  $region21: #{raft_forward.7} parent=0 // pred_fallthru
    _

// kernel: raft_forward.6
$region0: #{raft_forward.6}
  #allocation0 [shape = 'u32[]', space=smem, size = 0x4, offset = 0x4, fixed_abs, tag = 'smem constant byte address 0x4 - core index']
  #allocation1 [shape = 'u32[72,128]{1,0:T(1,128)}', space=vmem, size = 0x9000, scoped, tag = 'internal scratch']
  %s0 = inlined_call_operand.vmem [shape: bf16[64,192], index: 0, kind: input, shape index: {}]
  %s1 = inlined_call_operand.vmem [shape: bf16[192,128], index: 1, kind: input, shape index: {}]
  %s2 = inlined_call_operand.vmem [shape: f32[1,128], index: 2, kind: input, shape index: {}]
  %s3 = inlined_call_operand.vmem [shape: bf16[64,128], index: 3, kind: output, shape index: {}]
  %s4 = sld [smem:[#allocation0]]
  $region22: #{raft_forward.6} parent=0
    _
  %s6 = ssub.s32 1, %s4
  %s7 = scalar_select 0, %s6, %s4
  // Predicated region
  $region2: #{raft_forward.6} parent=0 // pred_check
    _
  $region3: #{raft_forward.6} parent=0 // pred_check_branch
    %9 = sbr.rel (0) target = $region5
  $region4: #{raft_forward.6} parent=0 // pred_region
    _
  $region5: #{raft_forward.6} parent=0 // pred_fallthru
    _
  // Predicated region
  $region6: #{raft_forward.6} parent=0 // pred_check
    _
  $region7: #{raft_forward.6} parent=0 // pred_check_branch
    %11 = sbr.rel (0) target = $region9
  $region8: #{raft_forward.6} parent=0 // pred_region
    _
  $region9: #{raft_forward.6} parent=0 // pred_fallthru
    _
  // Predicated region
  $region10: #{raft_forward.6} parent=0 // pred_check
    _
  $region11: #{raft_forward.6} parent=0 // pred_check_branch
    %13 = sbr.rel (0) target = $region13
  $region12: #{raft_forward.6} parent=0 // pred_region
    _
  $region13: #{raft_forward.6} parent=0 // pred_fallthru
    _
  %v15 = vld [vmem:[%s0] sm:$0xff]
  %v16 = vld [vmem:[%s0 + $0x8] sm:$0xff]
  %v17 = vld [vmem:[%s0 + $0x10] sm:$0xff]
  %v18 = vld [vmem:[%s0 + $0x18] sm:$0xff]
  %v19 = vld [vmem:[%s0 + $0x20] sm:$0xff]
  %v20 = vld [vmem:[%s0 + $0x28] sm:$0xff]
  %v21 = vld [vmem:[%s0 + $0x30] sm:$0xff]
  %v22 = vld [vmem:[%s0 + $0x38] sm:$0xff]
  %v23 = vunpack.c.l.bf16 %v15
  %v24 = vunpack.c.h.bf16 %v15
  %v25 = vunpack.c.l.bf16 %v16
  %v26 = vunpack.c.h.bf16 %v16
  %v27 = vunpack.c.l.bf16 %v17
  %v28 = vunpack.c.h.bf16 %v17
  %v29 = vunpack.c.l.bf16 %v18
  %v30 = vunpack.c.h.bf16 %v18
  %v31 = vunpack.c.l.bf16 %v19
  %v32 = vunpack.c.h.bf16 %v19
  %v33 = vunpack.c.l.bf16 %v20
  %v34 = vunpack.c.h.bf16 %v20
  %v35 = vunpack.c.l.bf16 %v21
  %v36 = vunpack.c.h.bf16 %v21
  %v37 = vunpack.c.l.bf16 %v22
  %v38 = vunpack.c.h.bf16 %v22
  %v39 = vmul.f32 %v23, 2.0
  %v40 = vmul.f32 %v24, 2.0
  %v41 = vmul.f32 %v25, 2.0
  %v42 = vmul.f32 %v26, 2.0
  %v43 = vmul.f32 %v27, 2.0
  %v44 = vmul.f32 %v28, 2.0
  %v45 = vmul.f32 %v29, 2.0
  %v46 = vmul.f32 %v30, 2.0
  %v47 = vmul.f32 %v31, 2.0
  %v48 = vmul.f32 %v32, 2.0
  %v49 = vmul.f32 %v33, 2.0
  %v50 = vmul.f32 %v34, 2.0
  %v51 = vmul.f32 %v35, 2.0
  %v52 = vmul.f32 %v36, 2.0
  %v53 = vmul.f32 %v37, 2.0
  %v54 = vmul.f32 %v38, 2.0
  %v55 = vsub.f32 %v39, 1.0
  %v56 = vsub.f32 %v40, 1.0
  %v57 = vsub.f32 %v41, 1.0
  %v58 = vsub.f32 %v42, 1.0
  %v59 = vsub.f32 %v43, 1.0
  %v60 = vsub.f32 %v44, 1.0
  %v61 = vsub.f32 %v45, 1.0
  %v62 = vsub.f32 %v46, 1.0
  %v63 = vsub.f32 %v47, 1.0
  %v64 = vsub.f32 %v48, 1.0
  %v65 = vsub.f32 %v49, 1.0
  %v66 = vsub.f32 %v50, 1.0
  %v67 = vsub.f32 %v51, 1.0
  %v68 = vsub.f32 %v52, 1.0
  %v69 = vsub.f32 %v53, 1.0
  %v70 = vsub.f32 %v54, 1.0
  %v71 = vpack.c.bf16 %v57, %v55
  %v72 = vpack.c.bf16 %v58, %v56
  %v73 = vpack.c.bf16 %v61, %v59
  %v74 = vpack.c.bf16 %v62, %v60
  %v75 = vpack.c.bf16 %v65, %v63
  %v76 = vpack.c.bf16 %v66, %v64
  %v77 = vpack.c.bf16 %v69, %v67
  %v78 = vpack.c.bf16 %v70, %v68
  %v79 = vld [vmem:[%s1] sm:$0xf]
  %v80 = vld [vmem:[%s1 + $0x4] sm:$0xf]
  %v81 = vld [vmem:[%s1 + $0x8] sm:$0xf]
  %v82 = vld [vmem:[%s1 + $0xc] sm:$0xf]
  %v83 = vld [vmem:[%s1 + $0x10] sm:$0xf]
  %v84 = vld [vmem:[%s1 + $0x14] sm:$0xf]
  %v85 = vld [vmem:[%s1 + $0x18] sm:$0xf]
  %v86 = vld [vmem:[%s1 + $0x1c] sm:$0xf]
  %v87 = vld [vmem:[%s1 + $0x20] sm:$0xf]
  %v88 = vld [vmem:[%s1 + $0x24] sm:$0xf]
  %v89 = vld [vmem:[%s1 + $0x28] sm:$0xf]
  %v90 = vld [vmem:[%s1 + $0x2c] sm:$0xf]
  %v91 = vld [vmem:[%s1 + $0x30] sm:$0xf]
  %v92 = vld [vmem:[%s1 + $0x34] sm:$0xf]
  %v93 = vld [vmem:[%s1 + $0x38] sm:$0xf]
  %v94 = vld [vmem:[%s1 + $0x3c] sm:$0xf]
  %v95 = vld [vmem:[%s1 + $0x40] sm:$0xf]
  %v96 = vld [vmem:[%s1 + $0x44] sm:$0xf]
  %v97 = vld [vmem:[%s1 + $0x48] sm:$0xf]
  %v98 = vld [vmem:[%s1 + $0x4c] sm:$0xf]
  %v99 = vld [vmem:[%s1 + $0x50] sm:$0xf]
  %v100 = vld [vmem:[%s1 + $0x54] sm:$0xf]
  %v101 = vld [vmem:[%s1 + $0x58] sm:$0xf]
  %v102 = vld [vmem:[%s1 + $0x5c] sm:$0xf]
  %v103 = vld [vmem:[%s2] sm:$0x1]
  %v105 = vperm.slane %v103, 0
  %v131 = vunpack.c.l.b16 %v79
  %v132 = vunpack.c.l.b16 %v80
  %v133 = vunpack.c.l.b16 %v81
  %v134 = vunpack.c.l.b16 %v82
  %v135 = vunpack.c.l.b16 %v83
  %v136 = vunpack.c.l.b16 %v84
  %v137 = vunpack.c.l.b16 %v85
  %v138 = vunpack.c.l.b16 %v86
  %v139 = vunpack.c.l.b16 %v87
  %v140 = vunpack.c.l.b16 %v88
  %v141 = vunpack.c.l.b16 %v89
  %v142 = vunpack.c.l.b16 %v90
  %v143 = vunpack.c.l.b16 %v91
  %v144 = vunpack.c.l.b16 %v92
  %v145 = vunpack.c.l.b16 %v93
  %v146 = vunpack.c.l.b16 %v94
  %v147 = vunpack.c.l.b16 %v95
  %v148 = vunpack.c.l.b16 %v96
  %v149 = vunpack.c.l.b16 %v97
  %v150 = vunpack.c.l.b16 %v98
  %v151 = vunpack.c.l.b16 %v99
  %v152 = vunpack.c.l.b16 %v100
  %v153 = vunpack.c.l.b16 %v101
  %v154 = vunpack.c.l.b16 %v102
  %v155 = vpack.c.b16 %v132, %v131
  %v156 = vpack.c.b16 %v134, %v133
  %v157 = vpack.c.b16 %v136, %v135
  %v158 = vpack.c.b16 %v138, %v137
  %v159 = vpack.c.b16 %v140, %v139
  %v160 = vpack.c.b16 %v142, %v141
  %v161 = vpack.c.b16 %v144, %v143
  %v162 = vpack.c.b16 %v146, %v145
  %v163 = vpack.c.b16 %v148, %v147
  %v164 = vpack.c.b16 %v150, %v149
  %v165 = vpack.c.b16 %v152, %v151
  %v166 = vpack.c.b16 %v154, %v153
  %vm179 = vcmask 523264
  %v181 = vsel %vm179, %v72, 0
  %v184 = vsel %vm179, %v74, 0
  %v187 = vsel %vm179, %v76, 0
  %v190 = vsel %vm179, %v78, 0
  %192 = vmatpush.bf16.msra.mxu0 %v162
  %193 = vmatpush.bf16.msra.mxu0 %v161
  %194 = vmatpush.bf16.msra.mxu0 %v160
  %195 = vmatpush.bf16.msra.mxu0 %v159
  %196 = vmatpush.bf16.msra.mxu0 %v158
  %197 = vmatpush.bf16.msra.mxu0 %v157
  %198 = vmatpush.bf16.msra.mxu0 %v156
  %199 = vmatpush.bf16.msra.mxu0 %v155
  %200 = vmatmul.bf16.gmra.mxu0 %v71
  %v201 = vpop.f32.mrf.mxu0
  %v202 = vadd.f32 %v105, %v201
  %v203 = vpop.f32.mrf.mxu0
  %v204 = vadd.f32 %v105, %v203
  %205 = vmatmul.bf16.gmra.mxu0 %v73
  %v206 = vpop.f32.mrf.mxu0
  %v207 = vadd.f32 %v105, %v206
  %v208 = vpop.f32.mrf.mxu0
  %v209 = vadd.f32 %v105, %v208
  %210 = vmatmul.bf16.gmra.mxu0 %v75
  %v211 = vpop.f32.mrf.mxu0
  %v212 = vadd.f32 %v105, %v211
  %v213 = vpop.f32.mrf.mxu0
  %v214 = vadd.f32 %v105, %v213
  %215 = vmatmul.bf16.gmra.mxu0 %v77
  %v216 = vpop.f32.mrf.mxu0
  %v217 = vadd.f32 %v105, %v216
  %v218 = vpop.f32.mrf.mxu0
  %v219 = vadd.f32 %v105, %v218
  %220 = vdwg.mxu0
  %221 = vmatpush.bf16.msra.mxu0 0
  %222 = vmatpush.bf16.msra.mxu0 0
  %223 = vmatpush.bf16.msra.mxu0 0
  %224 = vmatpush.bf16.msra.mxu0 0
  %225 = vmatpush.bf16.msra.mxu0 %v166
  %226 = vmatpush.bf16.msra.mxu0 %v165
  %227 = vmatpush.bf16.msra.mxu0 %v164
  %228 = vmatpush.bf16.msra.mxu0 %v163
  %229 = vmatmul.bf16.gmra.mxu0 %v181
  %v230 = vpop.f32.mrf.mxu0
  %v231 = vadd.f32 %v202, %v230
  %v232 = vpop.f32.mrf.mxu0
  %v233 = vadd.f32 %v204, %v232
  %234 = vmatmul.bf16.gmra.mxu0 %v184
  %v235 = vpop.f32.mrf.mxu0
  %v236 = vadd.f32 %v207, %v235
  %v237 = vpop.f32.mrf.mxu0
  %v238 = vadd.f32 %v209, %v237
  %239 = vmatmul.bf16.gmra.mxu0 %v187
  %v240 = vpop.f32.mrf.mxu0
  %v241 = vadd.f32 %v212, %v240
  %v242 = vpop.f32.mrf.mxu0
  %v243 = vadd.f32 %v214, %v242
  %244 = vmatmul.bf16.gmra.mxu0 %v190
  %v245 = vpop.f32.mrf.mxu0
  %v246 = vadd.f32 %v217, %v245
  %v247 = vpop.f32.mrf.mxu0
  %v248 = vadd.f32 %v219, %v247
  %249 = vdwg.mxu0
  %v250 = vmax.f32 %v231, 0.0
  %v251 = vmax.f32 %v233, 0.0
  %v252 = vmax.f32 %v236, 0.0
  %v253 = vmax.f32 %v238, 0.0
  %v254 = vmax.f32 %v241, 0.0
  %v255 = vmax.f32 %v243, 0.0
  %v256 = vmax.f32 %v246, 0.0
  %v257 = vmax.f32 %v248, 0.0
  %v258 = vpack.c.bf16 %v250, %v250
  %v259 = vpack.c.bf16 %v251, %v251
  %v260 = vpack.c.bf16 %v252, %v252
  %v261 = vpack.c.bf16 %v253, %v253
  %v262 = vpack.c.bf16 %v254, %v254
  %v263 = vpack.c.bf16 %v255, %v255
  %v264 = vpack.c.bf16 %v256, %v256
  %v265 = vpack.c.bf16 %v257, %v257
  %266 = vst [vmem:[%s3] sm:$0xf] %v258
  %267 = vst [vmem:[%s3 + $0x4] sm:$0xf] %v259
  %268 = vst [vmem:[%s3 + $0x8] sm:$0xf] %v260
  %269 = vst [vmem:[%s3 + $0xc] sm:$0xf] %v261
  %270 = vst [vmem:[%s3 + $0x10] sm:$0xf] %v262
  %271 = vst [vmem:[%s3 + $0x14] sm:$0xf] %v263
  %272 = vst [vmem:[%s3 + $0x18] sm:$0xf] %v264
  %273 = vst [vmem:[%s3 + $0x1c] sm:$0xf] %v265
  // Predicated region
  $region14: #{raft_forward.6} parent=0 // pred_check
    _
  $region15: #{raft_forward.6} parent=0 // pred_check_branch
    %275 = sbr.rel (0) target = $region17
  $region16: #{raft_forward.6} parent=0 // pred_region
    _
  $region17: #{raft_forward.6} parent=0 // pred_fallthru
    _
  // Predicated region
  $region18: #{raft_forward.6} parent=0 // pred_check
    _
  $region19: #{raft_forward.6} parent=0 // pred_check_branch
    %277 = sbr.rel (0) target = $region21
  $region20: #{raft_forward.6} parent=0 // pred_region
    _
  $region21: #{raft_forward.6} parent=0 // pred_fallthru
    _

// kernel: raft_forward.8
$region0: #{raft_forward.8}
  #allocation0 [shape = 'u32[]', space=smem, size = 0x4, offset = 0x4, fixed_abs, tag = 'smem constant byte address 0x4 - core index']
  #allocation1 [shape = 'u32[72,128]{1,0:T(1,128)}', space=vmem, size = 0x9000, scoped, tag = 'internal scratch']
  %s0 = inlined_call_operand.vmem [shape: bf16[2,2,16,128], index: 0, kind: input, shape index: {}, may-alias: {0,1}]
  %s1 = inlined_call_operand.vmem [shape: bf16[2,2,16,128], index: 1, kind: input, shape index: {}, may-alias: {0,1}]
  %s2 = inlined_call_operand.vmem [shape: bf16[16,128], index: 2, kind: input, shape index: {}]
  %s3 = inlined_call_operand.vmem [shape: f32[1,128], index: 3, kind: input, shape index: {}]
  %s4 = inlined_call_operand.vmem [shape: f32[32,128], index: 4, kind: output, shape index: {}]
  %s5 = sld [smem:[#allocation0]]
  $region49: #{raft_forward.8} parent=0
    _
  %s7 = ssub.s32 1, %s5
  %s8 = scalar_select 0, %s7, %s5
  loop: start=0, step=1, limit=4
  $region2: #{raft_forward.8} parent=0 // loop_pre_header
    _
  $region3: #{raft_forward.8} parent=0 // loop_header
    %s10 = sphi 0, %s14
    %p11 = scmp.ge.s32.totalorder %s10, 4
    %s17 = sphi 0, %s29
    %s18 = sphi 0, %s25
    %s19 = sphi 0, %s17
    %s20 = sphi 0, %s18
    %s21 = sphi 0, %s19
    %s22 = sphi 0, %s20
    %s34 = sphi 0, %s36
    %s37 = sphi 0, %s34
    %s38 = sphi 0, %s37
    %s54 = sphi 0, %s38
    %s60 = sphi 0, %s62
    %s63 = sphi 0, %s60
    %s64 = sphi 0, %s63
    %s80 = sphi 0, %s64
    %s84 = sphi 0, %s84
    %s86 = sphi 0, %s84
    %s87 = sphi 0, %s86
    %s101 = sphi 0, %s87
    %s105 = sphi 0, %s105
    %s107 = sphi 0, %s105
    %s108 = sphi 0, %s107
    %s122 = sphi 0, %s108
    %s130 = sphi 0, %s132
    %s133 = sphi 0, %s130
    %s134 = sphi 0, %s133
    %s150 = sphi 0, %s134
  $region4: #{raft_forward.8} parent=0 // loop_header_branch
    %13 = sbr.rel (%p11) target = $region8
  $region5: #{raft_forward.8} parent=0 // loop_body
    %s15 = ssub.s32 %s10, 1
    %s16 = ssub.s32 %s10, 2
    %s23 = sadd.s32 1, %s18
    %p24 = scmp.ge.s32.totalorder %s23, 1
    %s25 = scalar_select %p24, 0, %s23
    %s26 = sadd.s32 1, %s17
    %s27 = scalar_select %p24, %s26, %s17
    %p28 = scmp.ge.s32.totalorder %s27, 2
    %s29 = scalar_select %p28, 0, %s27
    %s30 = ssub.s32 %s17, %s29
    %s31 = ssub.s32 %s18, %s25
    %s32 = sor.u32 %s30, %s31
    %p33 = scmp.eq.s32.totalorder %s32, 0
    %s35 = sadd.s32 %s34, 1
    %s36 = scalar_select %p33, %s34, %s35
    %p39 = pneg %p33
    %p40 = scmp.eq.s32.totalorder %s10, 1
    %p41 = por %p39, %p40
    %p42 = scmp.ne.s32.totalorder %s34, %s37
    %p43 = scmp.eq.s32.totalorder %s10, 0
    %p44 = por %p42, %p43
    %p45 = scmp.ne.s32.totalorder %s34, %s37
    %p46 = scmp.eq.s32.totalorder %s15, 1
    %p47 = por %p45, %p46
    %p48 = scmp.ne.s32.totalorder %s37, %s38
    %p49 = scmp.eq.s32.totalorder %s15, 0
    %p50 = por %p48, %p49
    %p51 = scmp.ne.s32.totalorder %s37, %s38
    %p52 = scmp.eq.s32.totalorder %s16, 1
    %p53 = por %p51, %p52
    %p55 = scmp.ne.s32.totalorder %s38, %s54
    %p56 = scmp.eq.s32.totalorder %s16, 0
    %p57 = por %p55, %p56
    %s58 = ssub.s32 %s17, %s29
    %p59 = scmp.eq.s32.totalorder %s58, 0
    %s61 = sadd.s32 %s60, 1
    %s62 = scalar_select %p59, %s60, %s61
    %p65 = pneg %p59
    %p66 = scmp.eq.s32.totalorder %s10, 1
    %p67 = por %p65, %p66
    %p68 = scmp.ne.s32.totalorder %s60, %s63
    %p69 = scmp.eq.s32.totalorder %s10, 0
    %p70 = por %p68, %p69
    %p71 = scmp.ne.s32.totalorder %s60, %s63
    %p72 = scmp.eq.s32.totalorder %s15, 1
    %p73 = por %p71, %p72
    %p74 = scmp.ne.s32.totalorder %s63, %s64
    %p75 = scmp.eq.s32.totalorder %s15, 0
    %p76 = por %p74, %p75
    %p77 = scmp.ne.s32.totalorder %s63, %s64
    %p78 = scmp.eq.s32.totalorder %s16, 1
    %p79 = por %p77, %p78
    %p81 = scmp.ne.s32.totalorder %s64, %s80
    %p82 = scmp.eq.s32.totalorder %s16, 0
    %p83 = por %p81, %p82
    %s85 = sadd.s32 %s84, 1
    %p88 = scmp.eq.s32.totalorder %s10, 1
    %p89 = scmp.ne.s32.totalorder %s84, %s86
    %p90 = scmp.eq.s32.totalorder %s10, 0
    %p91 = por %p89, %p90
    %p92 = scmp.ne.s32.totalorder %s84, %s86
    %p93 = scmp.eq.s32.totalorder %s15, 1
    %p94 = por %p92, %p93
    %p95 = scmp.ne.s32.totalorder %s86, %s87
    %p96 = scmp.eq.s32.totalorder %s15, 0
    %p97 = por %p95, %p96
    %p98 = scmp.ne.s32.totalorder %s86, %s87
    %p99 = scmp.eq.s32.totalorder %s16, 1
    %p100 = por %p98, %p99
    %p102 = scmp.ne.s32.totalorder %s87, %s101
    %p103 = scmp.eq.s32.totalorder %s16, 0
    %p104 = por %p102, %p103
    %s106 = sadd.s32 %s105, 1
    %p109 = scmp.eq.s32.totalorder %s10, 1
    %p110 = scmp.ne.s32.totalorder %s105, %s107
    %p111 = scmp.eq.s32.totalorder %s10, 0
    %p112 = por %p110, %p111
    %p113 = scmp.ne.s32.totalorder %s105, %s107
    %p114 = scmp.eq.s32.totalorder %s15, 1
    %p115 = por %p113, %p114
    %p116 = scmp.ne.s32.totalorder %s107, %s108
    %p117 = scmp.eq.s32.totalorder %s15, 0
    %p118 = por %p116, %p117
    %p119 = scmp.ne.s32.totalorder %s107, %s108
    %p120 = scmp.eq.s32.totalorder %s16, 1
    %p121 = por %p119, %p120
    %p123 = scmp.ne.s32.totalorder %s108, %s122
    %p124 = scmp.eq.s32.totalorder %s16, 0
    %p125 = por %p123, %p124
    %s126 = sadd.s32 %s17, %s18
    %s127 = sadd.s32 %s29, %s25
    %s128 = ssub.s32 %s126, %s127
    %p129 = scmp.eq.s32.totalorder %s128, 0
    %s131 = sadd.s32 %s130, 1
    %s132 = scalar_select %p129, %s130, %s131
    %p135 = pneg %p129
    %p136 = scmp.eq.s32.totalorder %s10, 1
    %p137 = por %p135, %p136
    %p138 = scmp.ne.s32.totalorder %s130, %s133
    %p139 = scmp.eq.s32.totalorder %s10, 0
    %p140 = por %p138, %p139
    %p141 = scmp.ne.s32.totalorder %s130, %s133
    %p142 = scmp.eq.s32.totalorder %s15, 1
    %p143 = por %p141, %p142
    %p144 = scmp.ne.s32.totalorder %s133, %s134
    %p145 = scmp.eq.s32.totalorder %s15, 0
    %p146 = por %p144, %p145
    %p147 = scmp.ne.s32.totalorder %s133, %s134
    %p148 = scmp.eq.s32.totalorder %s16, 1
    %p149 = por %p147, %p148
    %p151 = scmp.ne.s32.totalorder %s134, %s150
    %p152 = scmp.eq.s32.totalorder %s16, 0
    %p153 = por %p151, %p152
    %p154 = scmp.le.s32.totalorder 1, %s10
    %p155 = scmp.lt.s32.totalorder %s10, 3
    %p156 = pnand %p154, %p155
    %p157 = pneg %p156
    // Predicated region
    $region9: #{raft_forward.8} parent=5 // pred_check
      _
    $region10: #{raft_forward.8} parent=5 // pred_check_branch
      %159 = sbr.rel (%p156) target = $region12
    $region11: #{raft_forward.8} parent=5 // pred_region
      %s160 = ssub.s32 %s10, 1
      // Predicated region
      $region13: #{raft_forward.8} parent=11 // pred_check
        %p161 = pneg %p97
      $region14: #{raft_forward.8} parent=11 // pred_check_branch
        %163 = sbr.rel (%p161) target = $region16
      $region15: #{raft_forward.8} parent=11 // pred_region
        _
      $region16: #{raft_forward.8} parent=11 // pred_fallthru
        _
      // Predicated region
      $region17: #{raft_forward.8} parent=11 // pred_check
        %p164 = pneg %p118
      $region18: #{raft_forward.8} parent=11 // pred_check_branch
        %166 = sbr.rel (%p164) target = $region20
      $region19: #{raft_forward.8} parent=11 // pred_region
        _
      $region20: #{raft_forward.8} parent=11 // pred_fallthru
        _
    $region12: #{raft_forward.8} parent=5 // pred_fallthru
      _
    %p167 = scmp.lt.s32.totalorder %s10, 2
    // Predicated region
    $region21: #{raft_forward.8} parent=5 // pred_check
      %p168 = pneg %p167
    $region22: #{raft_forward.8} parent=5 // pred_check_branch
      %170 = sbr.rel (%p168) target = $region24
    $region23: #{raft_forward.8} parent=5 // pred_region
      // Predicated region
      $region25: #{raft_forward.8} parent=23 // pred_check
        %p171 = pneg %p44
      $region26: #{raft_forward.8} parent=23 // pred_check_branch
        %173 = sbr.rel (%p171) target = $region28
      $region27: #{raft_forward.8} parent=23 // pred_region
        %s174 = smul.u32 2, %s18
        %p175 = scmp.lt.s32.totalorder %s17, 1
        %s176 = scalar_select %p175, %s17, 1
        %p177 = scmp.lt.s32.totalorder %s174, 1
        %s178 = scalar_select %p177, %s174, 1
        %s179 = smul.addr %s176, 2
        %s180 = sadd.s32 %s178, %s179
        %s181 = smul.addr %s180, 4
        %s182 = scalar_lea.vmem %s0, %s181
        %s183 = smul.u32 2, %s18
      $region28: #{raft_forward.8} parent=23 // pred_fallthru
        _
      // Predicated region
      $region29: #{raft_forward.8} parent=23 // pred_check
        %p184 = pneg %p70
      $region30: #{raft_forward.8} parent=23 // pred_check_branch
        %186 = sbr.rel (%p184) target = $region32
      $region31: #{raft_forward.8} parent=23 // pred_region
        %p187 = scmp.lt.s32.totalorder %s17, 1
        %s188 = scalar_select %p187, %s17, 1
        %s189 = smul.addr %s188, 2
        %s190 = sadd.s32 %s189, 4
        %s191 = smul.addr %s190, 4
        %s192 = scalar_lea.vmem %s1, %s191
      $region32: #{raft_forward.8} parent=23 // pred_fallthru
        _
    $region24: #{raft_forward.8} parent=5 // pred_fallthru
      _
    %p193 = scmp.le.s32.totalorder 1, %s10
    %p194 = scmp.lt.s32.totalorder %s10, 3
    %p195 = pnand %p193, %p194
    %p196 = pneg %p195
    // Predicated region
    $region33: #{raft_forward.8} parent=5 // pred_check
      _
    $region34: #{raft_forward.8} parent=5 // pred_check_branch
      %198 = sbr.rel (%p195) target = $region36
    $region35: #{raft_forward.8} parent=5 // pred_region
      %s199 = ssub.s32 %s10, 1
      %s200 = smul.u32 2, %s20
      %p201 = scmp.lt.s32.totalorder %s19, 1
      %s202 = scalar_select %p201, %s19, 1
      %p203 = scmp.lt.s32.totalorder %s200, 1
      %s204 = scalar_select %p203, %s200, 1
      %s205 = smul.addr %s202, 2
      %s206 = sadd.s32 %s204, %s205
      %s207 = smul.addr %s206, 4
      %s208 = scalar_lea.vmem %s0, %s207
      %p209 = pneg %p50
      %p210 = pneg %p47
      %p211 = scmp.lt.s32.totalorder %s19, 1
      %s212 = scalar_select %p211, %s19, 1
      %s213 = smul.addr %s212, 2
      %s214 = sadd.s32 %s213, 4
      %s215 = smul.addr %s214, 4
      %s216 = scalar_lea.vmem %s1, %s215
      %p217 = pneg %p76
      %p218 = pneg %p73
      %p219 = pneg %p97
      %p220 = pneg %p94
      %p221 = pneg %p118
      %p222 = pneg %p115
      %p223 = pneg %p146
      %p224 = pneg %p143
      %s225 = sadd.s32 %s19, %s20
      %s226 = smul.u32 2, %s225
      %p227 = scmp.lt.s32.totalorder %s226, 3
      %s228 = scalar_select %p227, %s226, 3
      %s229 = smul.addr %s228, 8
      %s230 = scalar_lea.vmem %s4, %s229
      %s231 = smul.u32 2, %s20
      %p232 = scmp.lt.s32.totalorder %s19, 1
      %s233 = scalar_select %p232, %s19, 1
      %p234 = scmp.lt.s32.totalorder %s231, 1
      %s235 = scalar_select %p234, %s231, 1
      %s236 = smul.addr %s233, 2
      %s237 = sadd.s32 %s235, %s236
      %s238 = smul.addr %s237, 4
      %s239 = scalar_lea.vmem %s0, %s238
      %s240 = smul.u32 2, %s20
      %p241 = scmp.lt.s32.totalorder %s19, 1
      %s242 = scalar_select %p241, %s19, 1
      %s243 = smul.addr %s242, 2
      %s244 = sadd.s32 %s243, 4
      %s245 = smul.addr %s244, 4
      %s246 = scalar_lea.vmem %s1, %s245
      %s247 = sadd.s32 %s19, %s20
      %s248 = smul.u32 2, %s247
      %p249 = scmp.lt.s32.totalorder %s248, 3
      %s250 = scalar_select %p249, %s248, 3
      %s251 = smul.addr %s250, 8
      %s252 = scalar_lea.vmem %s4, %s251
      %s253 = sadd.s32 %s19, %s20
      %s254 = smul.u32 2, %s253
      %v256 = vld [vmem:[%s239] sm:$0xf]
      %v257 = vld [vmem:[%s239 + $0x4] sm:$0xf]
      %v258 = vld [vmem:[%s246] sm:$0xf]
      %v259 = vld [vmem:[%s246 + $0x4] sm:$0xf]
      %v262 = vunpack.c.l.b16 %v256
      %v263 = vunpack.c.l.b16 %v257
      %v264 = vpack.c.b16 %v263, %v262
      %v268 = vunpack.c.l.b16 %v258
      %v269 = vunpack.c.l.b16 %v259
      %v270 = vpack.c.b16 %v269, %v268
      %272 = vmatpush.bf16.xpose.msra.mxu0 0
      %273 = vmatpush.bf16.xpose.msra.mxu0 0
      %274 = vmatpush.bf16.xpose.msra.mxu0 0
      %275 = vmatpush.bf16.xpose.msra.mxu0 0
      %276 = vmatpush.bf16.xpose.msra.mxu0 0
      %277 = vmatpush.bf16.xpose.msra.mxu0 0
      %278 = vmatpush.bf16.xpose.msra.mxu0 0
      %279 = vmatpush.bf16.xpose.msra.mxu0 %v270
      %280 = vmatmul.bf16.gmra.mxu0 %v264
      %v281 = vpop.f32.mrf.mxu0
      %v282 = vadd.f32 0.0, %v281
      %v283 = vpop.f32.mrf.mxu0
      %v284 = vadd.f32 0.0, %v283
      %285 = vdwg.mxu0
      %v286 = vpack.c.bf16 %v284, %v282
      %v287 = vld [vmem:[%s2] sm:$0xf]
      %v288 = vld [vmem:[%s2 + $0x4] sm:$0xf]
      %v289 = vld [vmem:[%s3] sm:$0x1]
      %v291 = vperm.slane %v289, 0
      %v295 = vunpack.c.l.b16 %v287
      %v296 = vunpack.c.l.b16 %v288
      %v297 = vpack.c.b16 %v296, %v295
      %vm299 = vcmask 130048
      %v301 = vsel %vm299, %v286, 0
      %303 = vmatpush.bf16.msra.mxu0 0
      %304 = vmatpush.bf16.msra.mxu0 0
      %305 = vmatpush.bf16.msra.mxu0 0
      %306 = vmatpush.bf16.msra.mxu0 0
      %307 = vmatpush.bf16.msra.mxu0 0
      %308 = vmatpush.bf16.msra.mxu0 0
      %309 = vmatpush.bf16.msra.mxu0 0
      %310 = vmatpush.bf16.msra.mxu0 %v297
      %311 = vmatmul.bf16.gmra.mxu0 %v301
      %v312 = vpop.f32.mrf.mxu0
      %v313 = vadd.f32 %v291, %v312
      %v314 = vpop.f32.mrf.mxu0
      %v315 = vadd.f32 %v291, %v314
      %316 = vdwg.mxu0
      %317 = vst [vmem:[%s252] sm:$0xff] %v313
      %318 = vst [vmem:[%s252 + $0x8] sm:$0xff] %v315
      %s319 = sadd.s32 %s19, %s20
      %s320 = smul.u32 2, %s319
      %p321 = scmp.lt.s32.totalorder %s320, 3
      %s322 = scalar_select %p321, %s320, 3
      %s323 = smul.addr %s322, 8
      %s324 = scalar_lea.vmem %s4, %s323
      // Predicated region
      $region37: #{raft_forward.8} parent=35 // pred_check
        %p325 = pneg %p143
      $region38: #{raft_forward.8} parent=35 // pred_check_branch
        %327 = sbr.rel (%p325) target = $region40
      $region39: #{raft_forward.8} parent=35 // pred_region
        %s328 = sadd.s32 %s19, %s20
        %s329 = smul.u32 2, %s328
      $region40: #{raft_forward.8} parent=35 // pred_fallthru
        _
    $region36: #{raft_forward.8} parent=5 // pred_fallthru
      _
    %p330 = scmp.le.s32.totalorder 2, %s10
    // Predicated region
    $region41: #{raft_forward.8} parent=5 // pred_check
      %p331 = pneg %p330
    $region42: #{raft_forward.8} parent=5 // pred_check_branch
      %333 = sbr.rel (%p331) target = $region44
    $region43: #{raft_forward.8} parent=5 // pred_region
      %s334 = ssub.s32 %s10, 2
      // Predicated region
      $region45: #{raft_forward.8} parent=43 // pred_check
        %p335 = pneg %p149
      $region46: #{raft_forward.8} parent=43 // pred_check_branch
        %337 = sbr.rel (%p335) target = $region48
      $region47: #{raft_forward.8} parent=43 // pred_region
        %s338 = sadd.s32 %s21, %s22
        %s339 = smul.u32 2, %s338
        %p340 = scmp.lt.s32.totalorder %s339, 3
        %s341 = scalar_select %p340, %s339, 3
        %s342 = smul.addr %s341, 8
        %s343 = scalar_lea.vmem %s4, %s342
      $region48: #{raft_forward.8} parent=43 // pred_fallthru
        _
    $region44: #{raft_forward.8} parent=5 // pred_fallthru
      _
  $region6: #{raft_forward.8} parent=0 // loop_footer
    %s14 = sadd.s32 1, %s10
  $region7: #{raft_forward.8} parent=0 // loop_footer_branch
    %9 = sbr.rel target = $region3
  $region8: #{raft_forward.8} parent=0 // loop_exit
    _

// kernel: raft_forward.11
$region0: #{raft_forward.11}
  #allocation0 [shape = 'u32[]', space=smem, size = 0x4, offset = 0x4, fixed_abs, tag = 'smem constant byte address 0x4 - core index']
  #allocation1 [shape = 'u32[72,128]{1,0:T(1,128)}', space=vmem, size = 0x9000, scoped, tag = 'internal scratch']
  %s0 = inlined_call_operand.vmem [shape: f32[8,4,2], index: 0, kind: input, shape index: {}]
  %s1 = inlined_call_operand.vmem [shape: f32[4,32], index: 1, kind: input, shape index: {}]
  %s2 = inlined_call_operand.hbm [shape: f32[2,2,32,32], index: 2, kind: output, shape index: {}]
  %s3 = sld [smem:[#allocation0]]
  $region41: #{raft_forward.11} parent=0
    _
  %s5 = ssub.s32 1, %s3
  %s6 = scalar_select 0, %s5, %s3
  $region1: #{raft_forward.11} parent=0
    #allocation2 [shape = 'u8[16384]{0}', space=vmem, size = 0x4000, scoped, tag = 'output window, operand 0']
    #allocation3 [shape = 's32[2]{0}', space=sflag, size = 0x8, scoped, tag = 'scoped memory for raft_forward.11']
    %7 = vsyncpa [#allocation3], 0
    %s8 = scalar_lea.sflag [#allocation3], 1
    %9 = vsyncpa %s8, 0
    loop: start=0, step=1, limit=10
    $region2: #{raft_forward.11} parent=1 // loop_pre_header
      _
    $region3: #{raft_forward.11} parent=1 // loop_header
      %s11 = sphi 0, %s15
      %p12 = scmp.ge.s32.totalorder %s11, 10
      %s18 = sphi 0, %s30
      %s19 = sphi 0, %s26
      %s20 = sphi 0, %s18
      %s21 = sphi 0, %s19
      %s22 = sphi 0, %s20
      %s23 = sphi 0, %s21
      %s37 = sphi 0, %s39
      %s40 = sphi 0, %s37
      %s41 = sphi 0, %s40
      %s57 = sphi 0, %s41
      %s61 = sphi 0, %s61
      %s63 = sphi 0, %s61
      %s64 = sphi 0, %s63
      %s78 = sphi 0, %s64
      %s86 = sphi 0, %s88
      %s89 = sphi 0, %s86
      %s90 = sphi 0, %s89
      %s106 = sphi 0, %s90
    $region4: #{raft_forward.11} parent=1 // loop_header_branch
      %14 = sbr.rel (%p12) target = $region8
    $region5: #{raft_forward.11} parent=1 // loop_body
      %s16 = ssub.s32 %s11, 1
      %s17 = ssub.s32 %s11, 2
      %s24 = sadd.s32 1, %s19
      %p25 = scmp.ge.s32.totalorder %s24, 4
      %s26 = scalar_select %p25, 0, %s24
      %s27 = sadd.s32 1, %s18
      %s28 = scalar_select %p25, %s27, %s18
      %p29 = scmp.ge.s32.totalorder %s28, 2
      %s30 = scalar_select %p29, 0, %s28
      %s31 = smul.u32 %s18, 4
      %s32 = sadd.s32 %s31, %s19
      %s33 = smul.u32 %s30, 4
      %s34 = sadd.s32 %s33, %s26
      %s35 = ssub.s32 %s32, %s34
      %p36 = scmp.eq.s32.totalorder %s35, 0
      %s38 = sadd.s32 %s37, 1
      %s39 = scalar_select %p36, %s37, %s38
      %p42 = pneg %p36
      %p43 = scmp.eq.s32.totalorder %s11, 7
      %p44 = por %p42, %p43
      %p45 = scmp.ne.s32.totalorder %s37, %s40
      %p46 = scmp.eq.s32.totalorder %s11, 0
      %p47 = por %p45, %p46
      %p48 = scmp.ne.s32.totalorder %s37, %s40
      %p49 = scmp.eq.s32.totalorder %s16, 7
      %p50 = por %p48, %p49
      %p51 = scmp.ne.s32.totalorder %s40, %s41
      %p52 = scmp.eq.s32.totalorder %s16, 0
      %p53 = por %p51, %p52
      %p54 = scmp.ne.s32.totalorder %s40, %s41
      %p55 = scmp.eq.s32.totalorder %s17, 7
      %p56 = por %p54, %p55
      %p58 = scmp.ne.s32.totalorder %s41, %s57
      %p59 = scmp.eq.s32.totalorder %s17, 0
      %p60 = por %p58, %p59
      %s62 = sadd.s32 %s61, 1
      %p65 = scmp.eq.s32.totalorder %s11, 7
      %p66 = scmp.ne.s32.totalorder %s61, %s63
      %p67 = scmp.eq.s32.totalorder %s11, 0
      %p68 = por %p66, %p67
      %p69 = scmp.ne.s32.totalorder %s61, %s63
      %p70 = scmp.eq.s32.totalorder %s16, 7
      %p71 = por %p69, %p70
      %p72 = scmp.ne.s32.totalorder %s63, %s64
      %p73 = scmp.eq.s32.totalorder %s16, 0
      %p74 = por %p72, %p73
      %p75 = scmp.ne.s32.totalorder %s63, %s64
      %p76 = scmp.eq.s32.totalorder %s17, 7
      %p77 = por %p75, %p76
      %p79 = scmp.ne.s32.totalorder %s64, %s78
      %p80 = scmp.eq.s32.totalorder %s17, 0
      %p81 = por %p79, %p80
      %s82 = ssub.s32 %s18, %s30
      %s83 = ssub.s32 %s19, %s26
      %s84 = sor.u32 %s82, %s83
      %p85 = scmp.eq.s32.totalorder %s84, 0
      %s87 = sadd.s32 %s86, 1
      %s88 = scalar_select %p85, %s86, %s87
      %p91 = pneg %p85
      %p92 = scmp.eq.s32.totalorder %s11, 7
      %p93 = por %p91, %p92
      %p94 = scmp.ne.s32.totalorder %s86, %s89
      %p95 = scmp.eq.s32.totalorder %s11, 0
      %p96 = por %p94, %p95
      %p97 = scmp.ne.s32.totalorder %s86, %s89
      %p98 = scmp.eq.s32.totalorder %s16, 7
      %p99 = por %p97, %p98
      %p100 = scmp.ne.s32.totalorder %s89, %s90
      %p101 = scmp.eq.s32.totalorder %s16, 0
      %p102 = por %p100, %p101
      %p103 = scmp.ne.s32.totalorder %s89, %s90
      %p104 = scmp.eq.s32.totalorder %s17, 7
      %p105 = por %p103, %p104
      %p107 = scmp.ne.s32.totalorder %s90, %s106
      %p108 = scmp.eq.s32.totalorder %s17, 0
      %p109 = por %p107, %p108
      %p110 = scmp.le.s32.totalorder 1, %s11
      %p111 = scmp.lt.s32.totalorder %s11, 9
      %p112 = pnand %p110, %p111
      %p113 = pneg %p112
      // Predicated region
      $region9: #{raft_forward.11} parent=5 // pred_check
        _
      $region10: #{raft_forward.11} parent=5 // pred_check_branch
        %115 = sbr.rel (%p112) target = $region12
      $region11: #{raft_forward.11} parent=5 // pred_region
        %s116 = ssub.s32 %s11, 1
        // Predicated region
        $region13: #{raft_forward.11} parent=11 // pred_check
          %p117 = pneg %p74
        $region14: #{raft_forward.11} parent=11 // pred_check_branch
          %119 = sbr.rel (%p117) target = $region16
        $region15: #{raft_forward.11} parent=11 // pred_region
          _
        $region16: #{raft_forward.11} parent=11 // pred_fallthru
          _
      $region12: #{raft_forward.11} parent=5 // pred_fallthru
        _
      %p120 = scmp.lt.s32.totalorder %s11, 8
      // Predicated region
      $region17: #{raft_forward.11} parent=5 // pred_check
        %p121 = pneg %p120
      $region18: #{raft_forward.11} parent=5 // pred_check_branch
        %123 = sbr.rel (%p121) target = $region20
      $region19: #{raft_forward.11} parent=5 // pred_region
        // Predicated region
        $region21: #{raft_forward.11} parent=19 // pred_check
          %p124 = pneg %p47
        $region22: #{raft_forward.11} parent=19 // pred_check_branch
          %126 = sbr.rel (%p124) target = $region24
        $region23: #{raft_forward.11} parent=19 // pred_region
          %s127 = smul.u32 %s18, 4
          %s128 = sadd.s32 %s127, %s19
          %p129 = scmp.lt.s32.totalorder %s128, 7
          %s130 = scalar_select %p129, %s128, 7
          %s131 = smul.addr %s130, 4
          %s132 = scalar_lea.vmem %s0, %s131
          %s133 = smul.u32 %s18, 4
          %s134 = sadd.s32 %s133, %s19
        $region24: #{raft_forward.11} parent=19 // pred_fallthru
          _
      $region20: #{raft_forward.11} parent=5 // pred_fallthru
        _
      %p135 = scmp.le.s32.totalorder 1, %s11
      %p136 = scmp.lt.s32.totalorder %s11, 9
      %p137 = pnand %p135, %p136
      %p138 = pneg %p137
      // Predicated region
      $region25: #{raft_forward.11} parent=5 // pred_check
        _
      $region26: #{raft_forward.11} parent=5 // pred_check_branch
        %140 = sbr.rel (%p137) target = $region28
      $region27: #{raft_forward.11} parent=5 // pred_region
        %s141 = ssub.s32 %s11, 1
        %s142 = smul.u32 %s20, 4
        %s143 = sadd.s32 %s142, %s21
        %p144 = scmp.lt.s32.totalorder %s143, 7
        %s145 = scalar_select %p144, %s143, 7
        %s146 = smul.addr %s145, 4
        %s147 = scalar_lea.vmem %s0, %s146
        %p148 = pneg %p53
        %p149 = pneg %p50
        %p150 = pneg %p74
        %p151 = pneg %p71
        %p152 = pneg %p102
        %p153 = pneg %p99
        %s154 = sand.u32 %s89, 1
        %s155 = scalar_lea.sflag [#allocation3], %s154
        %s156 = sand.u32 %s89, 1
        %s157 = smul.addr %s156, 16
        %s158 = scalar_lea.vmem [#allocation2], %s157
        %s159 = smul.u32 %s20, 4
        %s160 = sadd.s32 %s159, %s21
        %p161 = scmp.lt.s32.totalorder %s160, 7
        %s162 = scalar_select %p161, %s160, 7
        %s163 = smul.addr %s162, 4
        %s164 = scalar_lea.vmem %s0, %s163
        %s165 = smul.u32 %s20, 4
        %s166 = sadd.s32 %s165, %s21
        %v167 = vld [vmem:[%s164] sm:$0xf]
        %v168 = vld [vmem:[%s1] sm:$0xf]
        %170 = vset.pattern.permute.xlu0 0
        %171 = vperm.xlu0 %170, %v167
        %v172 = vpop.permute.xlu0 %171
        %v174 = vmul.f32 %v172, %v168
        %vm175 = vcmask 257024
        %v176 = vsel %vm175, %v174, 0.0
        %v177 = vrot.slane %v176, 4
        %v178 = vadd.f32 %v176, %v177
        %v179 = vrot.slane %v178, 2
        %v180 = vadd.f32 %v178, %v179
        %v181 = vrot.slane %v180, 1
        %v182 = vadd.f32 %v180, %v181
        %183 = vset.pattern.permute.xlu0 1
        %184 = vperm.xlu0 %183, %v167
        %v185 = vpop.permute.xlu0 %184
        %v187 = vmul.f32 %v185, %v168
        %v188 = vsel %vm175, %v187, 0.0
        %v189 = vrot.slane %v188, 4
        %v190 = vadd.f32 %v188, %v189
        %v191 = vrot.slane %v190, 2
        %v192 = vadd.f32 %v190, %v191
        %v193 = vrot.slane %v192, 1
        %v194 = vadd.f32 %v192, %v193
        %vm195 = vcmask 261120
        %196 = vst.msk [vmem:[%s158] sm:$0xff] %vm195, %v182
        %s197 = scalar_lea.vmem %s158, 8 [#allocation2]
        %198 = vst.msk [vmem:[%s197] sm:$0xff] %vm195, %v194
        %s199 = sand.u32 %s89, 1
        %s200 = scalar_lea.sflag [#allocation3], %s199
        %s201 = sand.u32 %s89, 1
        %s202 = smul.addr %s201, 16
        %s203 = scalar_lea.vmem [#allocation2], %s202
        // Predicated region
        $region29: #{raft_forward.11} parent=27 // pred_check
          %p204 = pneg %p99
        $region30: #{raft_forward.11} parent=27 // pred_check_branch
          %206 = sbr.rel (%p204) target = $region32
        $region31: #{raft_forward.11} parent=27 // pred_region
          %208 = vsyncadd %s200, 0
          %s209 = smul.addr %s20, 8
          %s210 = sadd.s32 %s21, %s209
          %s211 = smul.addr %s210, 8
          %s212 = scalar_lea.hbm %s2, %s211
          %s213 = sshll.u32 %s203, 4
          %s214 = int_to_ptr.vmem [resolvable:$true] %s213
          %s215 = sshll.u32 %s212, 4
          %s216 = int_to_ptr.hbm [resolvable:$true] %s215
          %221 = dma.vmem_to_hbm [thread:$0]  %s214, 256, %s216, %s200, 128, 512, 8
        $region32: #{raft_forward.11} parent=27 // pred_fallthru
          _
      $region28: #{raft_forward.11} parent=5 // pred_fallthru
        _
      %p222 = scmp.le.s32.totalorder 2, %s11
      // Predicated region
      $region33: #{raft_forward.11} parent=5 // pred_check
        %p223 = pneg %p222
      $region34: #{raft_forward.11} parent=5 // pred_check_branch
        %225 = sbr.rel (%p223) target = $region36
      $region35: #{raft_forward.11} parent=5 // pred_region
        %s226 = ssub.s32 %s11, 2
        // Predicated region
        $region37: #{raft_forward.11} parent=35 // pred_check
          %p227 = pneg %p105
        $region38: #{raft_forward.11} parent=35 // pred_check_branch
          %229 = sbr.rel (%p227) target = $region40
        $region39: #{raft_forward.11} parent=35 // pred_region
          %s230 = sand.u32 %s90, 1
          %s231 = scalar_lea.sflag [#allocation3], %s230
          %s232 = sand.u32 %s90, 1
          %s233 = smul.addr %s232, 16
          %s234 = scalar_lea.vmem [#allocation2], %s233
          %236 = dma.done %s231, 256
        $region40: #{raft_forward.11} parent=35 // pred_fallthru
          _
      $region36: #{raft_forward.11} parent=5 // pred_fallthru
        _
    $region6: #{raft_forward.11} parent=1 // loop_footer
      %s15 = sadd.s32 1, %s11
    $region7: #{raft_forward.11} parent=1 // loop_footer_branch
      %10 = sbr.rel target = $region3
    $region8: #{raft_forward.11} parent=1 // loop_exit
      _
    %237 = vsyncpa [#allocation3], 1
    %s238 = scalar_lea.sflag [#allocation3], 1
    %239 = vsyncpa %s238, 1

// kernel: raft_forward.10
$region0: #{raft_forward.10}
  #allocation0 [shape = 'u32[]', space=smem, size = 0x4, offset = 0x4, fixed_abs, tag = 'smem constant byte address 0x4 - core index']
  #allocation1 [shape = 'u32[72,128]{1,0:T(1,128)}', space=vmem, size = 0x9000, scoped, tag = 'internal scratch']
  %s0 = inlined_call_operand.vmem [shape: f32[32,256], index: 0, kind: input, shape index: {}]
  %s1 = inlined_call_operand.vmem [shape: f32[32,384], index: 1, kind: input, shape index: {}]
  %s2 = inlined_call_operand.vmem [shape: f32[32,128], index: 2, kind: input, shape index: {}]
  %s3 = inlined_call_operand.vmem [shape: f32[2,128], index: 3, kind: input, shape index: {}]
  %s4 = inlined_call_operand.vmem [shape: bf16[128,384], index: 4, kind: input, shape index: {}]
  %s5 = inlined_call_operand.vmem [shape: bf16[128,256], index: 5, kind: input, shape index: {}]
  %s6 = inlined_call_operand.vmem [shape: bf16[128,128], index: 6, kind: input, shape index: {}]
  %s7 = inlined_call_operand.vmem [shape: f32[2,128], index: 7, kind: input, shape index: {}]
  %s8 = inlined_call_operand.vmem [shape: f32[1,2], index: 8, kind: input, shape index: {}]
  %s9 = inlined_call_operand.vmem [shape: f32[32,2], index: 9, kind: output, shape index: {}]
  %s10 = sld [smem:[#allocation0]]
  $region84: #{raft_forward.10} parent=0
    _
  %s12 = ssub.s32 1, %s10
  %s13 = scalar_select 0, %s12, %s10
  $region1: #{raft_forward.10} parent=0
    #allocation2 [shape = 'u8[16384]{0}', space=vmem, size = 0x4000, scoped, tag = 'input window, operand 0, single buffered']
    // Predicated region
    $region2: #{raft_forward.10} parent=1 // pred_check
      _
    $region3: #{raft_forward.10} parent=1 // pred_check_branch
      %15 = sbr.rel (0) target = $region5
    $region4: #{raft_forward.10} parent=1 // pred_region
      // Predicated region
      $region6: #{raft_forward.10} parent=4 // pred_check
        _
      $region7: #{raft_forward.10} parent=4 // pred_check_branch
        %17 = sbr.rel (0) target = $region9
      $region8: #{raft_forward.10} parent=4 // pred_region
        // Predicated region
        $region10: #{raft_forward.10} parent=8 // pred_check
          _
        $region11: #{raft_forward.10} parent=8 // pred_check_branch
          %19 = sbr.rel (0) target = $region13
        $region12: #{raft_forward.10} parent=8 // pred_region
          // Predicated region
          $region25: #{raft_forward.10} parent=12 // pred_check
            _
          $region26: #{raft_forward.10} parent=12 // pred_check_branch
            %41 = sbr.rel (0) target = $region28
          $region27: #{raft_forward.10} parent=12 // pred_region
            loop: start=0, step=1, limit=1
            $region29: #{raft_forward.10} parent=27 // loop_pre_header
              _
            $region30: #{raft_forward.10} parent=27 // loop_header
              %s43 = sphi 0, %s47
              %p44 = scmp.ge.s32.totalorder %s43, 1
              %s48 = sphi %s0, %s0
              %s49 = sphi [#allocation2], [#allocation2]
            $region31: #{raft_forward.10} parent=27 // loop_header_branch
              %46 = sbr.rel (%p44) target = $region35
            $region32: #{raft_forward.10} parent=27 // loop_body
              %v50 = vld [vmem:[%s48] sm:$0xff]
              %51 = vst [vmem:[%s49] sm:$0xff] %v50
              %v52 = vld [vmem:[%s48 + $0x10] sm:$0xff]
              %53 = vst [vmem:[%s49 + $0x8] sm:$0xff] %v52
              %v54 = vld [vmem:[%s48 + $0x20] sm:$0xff]
              %55 = vst [vmem:[%s49 + $0x10] sm:$0xff] %v54
              %v56 = vld [vmem:[%s48 + $0x30] sm:$0xff]
              %57 = vst [vmem:[%s49 + $0x18] sm:$0xff] %v56
            $region33: #{raft_forward.10} parent=27 // loop_footer
              %s47 = sadd.s32 1, %s43
            $region34: #{raft_forward.10} parent=27 // loop_footer_branch
              %42 = sbr.rel target = $region30
            $region35: #{raft_forward.10} parent=27 // loop_exit
              _
          $region28: #{raft_forward.10} parent=12 // pred_fallthru
            _
          // Predicated region
          $region36: #{raft_forward.10} parent=12 // pred_check
            _
          $region37: #{raft_forward.10} parent=12 // pred_check_branch
            %59 = sbr.rel target = $region39
          $region38: #{raft_forward.10} parent=12 // pred_region
            _
          $region39: #{raft_forward.10} parent=12 // pred_fallthru
            _
        $region13: #{raft_forward.10} parent=8 // pred_fallthru
          _
        // Predicated region
        $region14: #{raft_forward.10} parent=8 // pred_check
          _
        $region15: #{raft_forward.10} parent=8 // pred_check_branch
          %21 = sbr.rel target = $region17
        $region16: #{raft_forward.10} parent=8 // pred_region
          %s23 = ssub.s32 256, 1
          loop: start=0, step=1, limit=1
          $region18: #{raft_forward.10} parent=16 // loop_pre_header
            _
          $region19: #{raft_forward.10} parent=16 // loop_header
            %s25 = sphi 0, %s29
            %p26 = scmp.ge.s32.totalorder %s25, 1
            %s30 = sphi %s0, %s0
            %s31 = sphi [#allocation2], [#allocation2]
          $region20: #{raft_forward.10} parent=16 // loop_header_branch
            %28 = sbr.rel (%p26) target = $region24
          $region21: #{raft_forward.10} parent=16 // loop_body
            %v32 = vld [vmem:[%s30] sm:%s23]
            %33 = vst [vmem:[%s31] sm:%s23] %v32
            %v34 = vld [vmem:[%s30 + $0x10] sm:%s23]
            %35 = vst [vmem:[%s31 + $0x8] sm:%s23] %v34
            %v36 = vld [vmem:[%s30 + $0x20] sm:%s23]
            %37 = vst [vmem:[%s31 + $0x10] sm:%s23] %v36
            %v38 = vld [vmem:[%s30 + $0x30] sm:%s23]
            %39 = vst [vmem:[%s31 + $0x18] sm:%s23] %v38
          $region22: #{raft_forward.10} parent=16 // loop_footer
            %s29 = sadd.s32 1, %s25
          $region23: #{raft_forward.10} parent=16 // loop_footer_branch
            %24 = sbr.rel target = $region19
          $region24: #{raft_forward.10} parent=16 // loop_exit
            _
        $region17: #{raft_forward.10} parent=8 // pred_fallthru
          _
      $region9: #{raft_forward.10} parent=4 // pred_fallthru
        _
      %60 = vnop
    $region5: #{raft_forward.10} parent=1 // pred_fallthru
      _
    // Predicated region
    $region40: #{raft_forward.10} parent=1 // pred_check
      _
    $region41: #{raft_forward.10} parent=1 // pred_check_branch
      %62 = sbr.rel (0) target = $region43
    $region42: #{raft_forward.10} parent=1 // pred_region
      _
    $region43: #{raft_forward.10} parent=1 // pred_fallthru
      _
    // Predicated region
    $region44: #{raft_forward.10} parent=1 // pred_check
      _
    $region45: #{raft_forward.10} parent=1 // pred_check_branch
      %64 = sbr.rel (0) target = $region47
    $region46: #{raft_forward.10} parent=1 // pred_region
      _
    $region47: #{raft_forward.10} parent=1 // pred_fallthru
      _
    // Predicated region
    $region48: #{raft_forward.10} parent=1 // pred_check
      _
    $region49: #{raft_forward.10} parent=1 // pred_check_branch
      %66 = sbr.rel (0) target = $region51
    $region50: #{raft_forward.10} parent=1 // pred_region
      _
    $region51: #{raft_forward.10} parent=1 // pred_fallthru
      _
    // Predicated region
    $region52: #{raft_forward.10} parent=1 // pred_check
      _
    $region53: #{raft_forward.10} parent=1 // pred_check_branch
      %68 = sbr.rel (0) target = $region55
    $region54: #{raft_forward.10} parent=1 // pred_region
      _
    $region55: #{raft_forward.10} parent=1 // pred_fallthru
      _
    // Predicated region
    $region56: #{raft_forward.10} parent=1 // pred_check
      _
    $region57: #{raft_forward.10} parent=1 // pred_check_branch
      %70 = sbr.rel (0) target = $region59
    $region58: #{raft_forward.10} parent=1 // pred_region
      _
    $region59: #{raft_forward.10} parent=1 // pred_fallthru
      _
    // Predicated region
    $region60: #{raft_forward.10} parent=1 // pred_check
      _
    $region61: #{raft_forward.10} parent=1 // pred_check_branch
      %72 = sbr.rel (0) target = $region63
    $region62: #{raft_forward.10} parent=1 // pred_region
      _
    $region63: #{raft_forward.10} parent=1 // pred_fallthru
      _
    // Predicated region
    $region64: #{raft_forward.10} parent=1 // pred_check
      _
    $region65: #{raft_forward.10} parent=1 // pred_check_branch
      %74 = sbr.rel (0) target = $region67
    $region66: #{raft_forward.10} parent=1 // pred_region
      _
    $region67: #{raft_forward.10} parent=1 // pred_fallthru
      _
    // Predicated region
    $region68: #{raft_forward.10} parent=1 // pred_check
      _
    $region69: #{raft_forward.10} parent=1 // pred_check_branch
      %76 = sbr.rel (0) target = $region71
    $region70: #{raft_forward.10} parent=1 // pred_region
      _
    $region71: #{raft_forward.10} parent=1 // pred_fallthru
      _
    // Predicated region
    $region72: #{raft_forward.10} parent=1 // pred_check
      _
    $region73: #{raft_forward.10} parent=1 // pred_check_branch
      %78 = sbr.rel (0) target = $region75
    $region74: #{raft_forward.10} parent=1 // pred_region
      _
    $region75: #{raft_forward.10} parent=1 // pred_fallthru
      _
    %v79 = vld [vmem:[#allocation2] sm:$0xff]
    %v80 = vld [vmem:[#allocation2 + $0x8] sm:$0xff]
    %v81 = vld [vmem:[#allocation2 + $0x10] sm:$0xff]
    %v82 = vld [vmem:[#allocation2 + $0x18] sm:$0xff]
    %v83 = vld [vmem:[%s1] sm:$0xff]
    %v84 = vld [vmem:[%s1 + $0x8] sm:$0xff]
    %v85 = vld [vmem:[%s1 + $0x10] sm:$0xff]
    %v86 = vld [vmem:[%s1 + $0x18] sm:$0xff]
    %v87 = vld [vmem:[%s1 + $0x20] sm:$0xff]
    %v88 = vld [vmem:[%s1 + $0x28] sm:$0xff]
    %v89 = vld [vmem:[%s1 + $0x30] sm:$0xff]
    %v90 = vld [vmem:[%s1 + $0x38] sm:$0xff]
    %v91 = vld [vmem:[%s1 + $0x40] sm:$0xff]
    %v92 = vld [vmem:[%s1 + $0x48] sm:$0xff]
    %v93 = vld [vmem:[%s1 + $0x50] sm:$0xff]
    %v94 = vld [vmem:[%s1 + $0x58] sm:$0xff]
    %v95 = vld [vmem:[%s2] sm:$0xff]
    %v96 = vld [vmem:[%s2 + $0x8] sm:$0xff]
    %v97 = vld [vmem:[%s2 + $0x10] sm:$0xff]
    %v98 = vld [vmem:[%s2 + $0x18] sm:$0xff]
    %v99 = vld [vmem:[%s3] sm:$0x1]
    %v100 = vld [vmem:[%s3 + $0x1] sm:$0x1]
    %v101 = vld [vmem:[%s4] sm:$0xff]
    %v102 = vld [vmem:[%s4 + $0x8] sm:$0xf]
    %v103 = vld [vmem:[%s4 + $0xc] sm:$0xff]
    %v104 = vld [vmem:[%s4 + $0x14] sm:$0xf]
    %v105 = vld [vmem:[%s4 + $0x18] sm:$0xff]
    %v106 = vld [vmem:[%s4 + $0x20] sm:$0xf]
    %v107 = vld [vmem:[%s4 + $0x24] sm:$0xff]
    %v108 = vld [vmem:[%s4 + $0x2c] sm:$0xf]
    %v109 = vld [vmem:[%s4 + $0x30] sm:$0xff]
    %v110 = vld [vmem:[%s4 + $0x38] sm:$0xf]
    %v111 = vld [vmem:[%s4 + $0x3c] sm:$0xff]
    %v112 = vld [vmem:[%s4 + $0x44] sm:$0xf]
    %v113 = vld [vmem:[%s4 + $0x48] sm:$0xff]
    %v114 = vld [vmem:[%s4 + $0x50] sm:$0xf]
    %v115 = vld [vmem:[%s4 + $0x54] sm:$0xff]
    %v116 = vld [vmem:[%s4 + $0x5c] sm:$0xf]
    %v117 = vld [vmem:[%s4 + $0x60] sm:$0xff]
    %v118 = vld [vmem:[%s4 + $0x68] sm:$0xf]
    %v119 = vld [vmem:[%s4 + $0x6c] sm:$0xff]
    %v120 = vld [vmem:[%s4 + $0x74] sm:$0xf]
    %v121 = vld [vmem:[%s4 + $0x78] sm:$0xff]
    %v122 = vld [vmem:[%s4 + $0x80] sm:$0xf]
    %v123 = vld [vmem:[%s4 + $0x84] sm:$0xff]
    %v124 = vld [vmem:[%s4 + $0x8c] sm:$0xf]
    %v125 = vld [vmem:[%s4 + $0x90] sm:$0xff]
    %v126 = vld [vmem:[%s4 + $0x98] sm:$0xf]
    %v127 = vld [vmem:[%s4 + $0x9c] sm:$0xff]
    %v128 = vld [vmem:[%s4 + $0xa4] sm:$0xf]
    %v129 = vld [vmem:[%s4 + $0xa8] sm:$0xff]
    %v130 = vld [vmem:[%s4 + $0xb0] sm:$0xf]
    %v131 = vld [vmem:[%s4 + $0xb4] sm:$0xff]
    %v132 = vld [vmem:[%s4 + $0xbc] sm:$0xf]
    %v133 = vld [vmem:[%s5] sm:$0xff]
    %v134 = vld [vmem:[%s5 + $0x8] sm:$0xff]
    %v135 = vld [vmem:[%s5 + $0x10] sm:$0xff]
    %v136 = vld [vmem:[%s5 + $0x18] sm:$0xff]
    %v137 = vld [vmem:[%s5 + $0x20] sm:$0xff]
    %v138 = vld [vmem:[%s5 + $0x28] sm:$0xff]
    %v139 = vld [vmem:[%s5 + $0x30] sm:$0xff]
    %v140 = vld [vmem:[%s5 + $0x38] sm:$0xff]
    %v141 = vld [vmem:[%s5 + $0x40] sm:$0xff]
    %v142 = vld [vmem:[%s5 + $0x48] sm:$0xff]
    %v143 = vld [vmem:[%s5 + $0x50] sm:$0xff]
    %v144 = vld [vmem:[%s5 + $0x58] sm:$0xff]
    %v145 = vld [vmem:[%s5 + $0x60] sm:$0xff]
    %v146 = vld [vmem:[%s5 + $0x68] sm:$0xff]
    %v147 = vld [vmem:[%s5 + $0x70] sm:$0xff]
    %v148 = vld [vmem:[%s5 + $0x78] sm:$0xff]
    %v149 = vld [vmem:[%s6] sm:$0xf]
    %v150 = vld [vmem:[%s6 + $0x4] sm:$0xf]
    %v151 = vld [vmem:[%s6 + $0x8] sm:$0xf]
    %v152 = vld [vmem:[%s6 + $0xc] sm:$0xf]
    %v153 = vld [vmem:[%s6 + $0x10] sm:$0xf]
    %v154 = vld [vmem:[%s6 + $0x14] sm:$0xf]
    %v155 = vld [vmem:[%s6 + $0x18] sm:$0xf]
    %v156 = vld [vmem:[%s6 + $0x1c] sm:$0xf]
    %v157 = vld [vmem:[%s6 + $0x20] sm:$0xf]
    %v158 = vld [vmem:[%s6 + $0x24] sm:$0xf]
    %v159 = vld [vmem:[%s6 + $0x28] sm:$0xf]
    %v160 = vld [vmem:[%s6 + $0x2c] sm:$0xf]
    %v161 = vld [vmem:[%s6 + $0x30] sm:$0xf]
    %v162 = vld [vmem:[%s6 + $0x34] sm:$0xf]
    %v163 = vld [vmem:[%s6 + $0x38] sm:$0xf]
    %v164 = vld [vmem:[%s6 + $0x3c] sm:$0xf]
    %v165 = vld [vmem:[%s7] sm:$0x1]
    %v166 = vld [vmem:[%s7 + $0x1] sm:$0x1]
    %v167 = vld [vmem:[%s8] sm:$0x1]
    %v168 = vperm.slane %v99, 0
    %v169 = vmul.f32 %v168, 0.0
    %v170 = vperm.slane %v100, 0
    %v171 = vmul.f32 %v170, 0.0
    %v172 = vadd.f32 %v169, %v171
    %v173 = vadd.f32 %v95, %v172
    %v174 = vadd.f32 %v96, %v172
    %v175 = vadd.f32 %v97, %v172
    %v176 = vadd.f32 %v98, %v172
    %v177 = vmax.f32 %v173, 0.0
    %v178 = vmax.f32 %v174, 0.0
    %v179 = vmax.f32 %v175, 0.0
    %v180 = vmax.f32 %v176, 0.0
    %v181 = vpack.c.bf16 %v178, %v177
    %v182 = vpack.c.bf16 %v180, %v179
    %v215 = vunpack.c.l.b16 %v101
    %v216 = vunpack.c.h.b16 %v101
    %v217 = vunpack.c.l.b16 %v102
    %v218 = vunpack.c.l.b16 %v103
    %v219 = vunpack.c.h.b16 %v103
    %v220 = vunpack.c.l.b16 %v104
    %v221 = vunpack.c.l.b16 %v105
    %v222 = vunpack.c.h.b16 %v105
    %v223 = vunpack.c.l.b16 %v106
    %v224 = vunpack.c.l.b16 %v107
    %v225 = vunpack.c.h.b16 %v107
    %v226 = vunpack.c.l.b16 %v108
    %v227 = vunpack.c.l.b16 %v109
    %v228 = vunpack.c.h.b16 %v109
    %v229 = vunpack.c.l.b16 %v110
    %v230 = vunpack.c.l.b16 %v111
    %v231 = vunpack.c.h.b16 %v111
    %v232 = vunpack.c.l.b16 %v112
    %v233 = vunpack.c.l.b16 %v113
    %v234 = vunpack.c.h.b16 %v113
    %v235 = vunpack.c.l.b16 %v114
    %v236 = vunpack.c.l.b16 %v115
    %v237 = vunpack.c.h.b16 %v115
    %v238 = vunpack.c.l.b16 %v116
    %v239 = vunpack.c.l.b16 %v117
    %v240 = vunpack.c.h.b16 %v117
    %v241 = vunpack.c.l.b16 %v118
    %v242 = vunpack.c.l.b16 %v119
    %v243 = vunpack.c.h.b16 %v119
    %v244 = vunpack.c.l.b16 %v120
    %v245 = vunpack.c.l.b16 %v121
    %v246 = vunpack.c.h.b16 %v121
    %v247 = vunpack.c.l.b16 %v122
    %v248 = vunpack.c.l.b16 %v123
    %v249 = vunpack.c.h.b16 %v123
    %v250 = vunpack.c.l.b16 %v124
    %v251 = vunpack.c.l.b16 %v125
    %v252 = vunpack.c.h.b16 %v125
    %v253 = vunpack.c.l.b16 %v126
    %v254 = vunpack.c.l.b16 %v127
    %v255 = vunpack.c.h.b16 %v127
    %v256 = vunpack.c.l.b16 %v128
    %v257 = vunpack.c.l.b16 %v129
    %v258 = vunpack.c.h.b16 %v129
    %v259 = vunpack.c.l.b16 %v130
    %v260 = vunpack.c.l.b16 %v131
    %v261 = vunpack.c.h.b16 %v131
    %v262 = vunpack.c.l.b16 %v132
    %v263 = vpack.c.b16 %v218, %v215
    %v264 = vpack.c.b16 %v219, %v216
    %v265 = vpack.c.b16 %v220, %v217
    %v266 = vpack.c.b16 %v224, %v221
    %v267 = vpack.c.b16 %v225, %v222
    %v268 = vpack.c.b16 %v226, %v223
    %v269 = vpack.c.b16 %v230, %v227
    %v270 = vpack.c.b16 %v231, %v228
    %v271 = vpack.c.b16 %v232, %v229
    %v272 = vpack.c.b16 %v236, %v233
    %v273 = vpack.c.b16 %v237, %v234
    %v274 = vpack.c.b16 %v238, %v235
    %v275 = vpack.c.b16 %v242, %v239
    %v276 = vpack.c.b16 %v243, %v240
    %v277 = vpack.c.b16 %v244, %v241
    %v278 = vpack.c.b16 %v248, %v245
    %v279 = vpack.c.b16 %v249, %v246
    %v280 = vpack.c.b16 %v250, %v247
    %v281 = vpack.c.b16 %v254, %v251
    %v282 = vpack.c.b16 %v255, %v252
    %v283 = vpack.c.b16 %v256, %v253
    %v284 = vpack.c.b16 %v260, %v257
    %v285 = vpack.c.b16 %v261, %v258
    %v286 = vpack.c.b16 %v262, %v259
    %311 = vmatpush.bf16.msra.mxu0 %v284
    %312 = vmatpush.bf16.msra.mxu0 %v281
    %313 = vmatpush.bf16.msra.mxu0 %v278
    %314 = vmatpush.bf16.msra.mxu0 %v275
    %315 = vmatpush.bf16.msra.mxu0 %v272
    %316 = vmatpush.bf16.msra.mxu0 %v269
    %317 = vmatpush.bf16.msra.mxu0 %v266
    %318 = vmatpush.bf16.msra.mxu0 %v263
    %319 = vmatmul.bf16.gmra.mxu0 %v181
    %v320 = vpop.f32.mrf.mxu0
    %v321 = vadd.f32 0.0, %v320
    %v322 = vpop.f32.mrf.mxu0
    %v323 = vadd.f32 0.0, %v322
    %324 = vmatmul.bf16.gmra.mxu0 %v182
    %v325 = vpop.f32.mrf.mxu0
    %v326 = vadd.f32 0.0, %v325
    %v327 = vpop.f32.mrf.mxu0
    %v328 = vadd.f32 0.0, %v327
    %329 = vdwg.mxu0
    %330 = vmatpush.bf16.msra.mxu0 %v285
    %331 = vmatpush.bf16.msra.mxu0 %v282
    %332 = vmatpush.bf16.msra.mxu0 %v279
    %333 = vmatpush.bf16.msra.mxu0 %v276
    %334 = vmatpush.bf16.msra.mxu0 %v273
    %335 = vmatpush.bf16.msra.mxu0 %v270
    %336 = vmatpush.bf16.msra.mxu0 %v267
    %337 = vmatpush.bf16.msra.mxu0 %v264
    %338 = vmatmul.bf16.gmra.mxu0 %v181
    %v339 = vpop.f32.mrf.mxu0
    %v340 = vadd.f32 0.0, %v339
    %v341 = vpop.f32.mrf.mxu0
    %v342 = vadd.f32 0.0, %v341
    %343 = vmatmul.bf16.gmra.mxu0 %v182
    %v344 = vpop.f32.mrf.mxu0
    %v345 = vadd.f32 0.0, %v344
    %v346 = vpop.f32.mrf.mxu0
    %v347 = vadd.f32 0.0, %v346
    %348 = vdwg.mxu0
    %349 = vmatpush.bf16.msra.mxu0 %v286
    %350 = vmatpush.bf16.msra.mxu0 %v283
    %351 = vmatpush.bf16.msra.mxu0 %v280
    %352 = vmatpush.bf16.msra.mxu0 %v277
    %353 = vmatpush.bf16.msra.mxu0 %v274
    %354 = vmatpush.bf16.msra.mxu0 %v271
    %355 = vmatpush.bf16.msra.mxu0 %v268
    %356 = vmatpush.bf16.msra.mxu0 %v265
    %357 = vmatmul.bf16.gmra.mxu0 %v181
    %v358 = vpop.f32.mrf.mxu0
    %v359 = vadd.f32 0.0, %v358
    %v360 = vpop.f32.mrf.mxu0
    %v361 = vadd.f32 0.0, %v360
    %362 = vmatmul.bf16.gmra.mxu0 %v182
    %v363 = vpop.f32.mrf.mxu0
    %v364 = vadd.f32 0.0, %v363
    %v365 = vpop.f32.mrf.mxu0
    %v366 = vadd.f32 0.0, %v365
    %367 = vdwg.mxu0
    %v368 = vadd.f32 %v83, %v321
    %v369 = vadd.f32 %v84, %v340
    %v370 = vadd.f32 %v85, %v359
    %v371 = vadd.f32 %v86, %v323
    %v372 = vadd.f32 %v87, %v342
    %v373 = vadd.f32 %v88, %v361
    %v374 = vadd.f32 %v89, %v326
    %v375 = vadd.f32 %v90, %v345
    %v376 = vadd.f32 %v91, %v364
    %v377 = vadd.f32 %v92, %v328
    %v378 = vadd.f32 %v93, %v347
    %v379 = vadd.f32 %v94, %v366
    %v380 = vpack.c.bf16 %v80, %v79
    %v381 = vpack.c.bf16 %v82, %v81
    %v398 = vunpack.c.l.b16 %v133
    %v399 = vunpack.c.h.b16 %v133
    %v400 = vunpack.c.l.b16 %v134
    %v401 = vunpack.c.h.b16 %v134
    %v402 = vunpack.c.l.b16 %v135
    %v403 = vunpack.c.h.b16 %v135
    %v404 = vunpack.c.l.b16 %v136
    %v405 = vunpack.c.h.b16 %v136
    %v406 = vunpack.c.l.b16 %v137
    %v407 = vunpack.c.h.b16 %v137
    %v408 = vunpack.c.l.b16 %v138
    %v409 = vunpack.c.h.b16 %v138
    %v410 = vunpack.c.l.b16 %v139
    %v411 = vunpack.c.h.b16 %v139
    %v412 = vunpack.c.l.b16 %v140
    %v413 = vunpack.c.h.b16 %v140
    %v414 = vunpack.c.l.b16 %v141
    %v415 = vunpack.c.h.b16 %v141
    %v416 = vunpack.c.l.b16 %v142
    %v417 = vunpack.c.h.b16 %v142
    %v418 = vunpack.c.l.b16 %v143
    %v419 = vunpack.c.h.b16 %v143
    %v420 = vunpack.c.l.b16 %v144
    %v421 = vunpack.c.h.b16 %v144
    %v422 = vunpack.c.l.b16 %v145
    %v423 = vunpack.c.h.b16 %v145
    %v424 = vunpack.c.l.b16 %v146
    %v425 = vunpack.c.h.b16 %v146
    %v426 = vunpack.c.l.b16 %v147
    %v427 = vunpack.c.h.b16 %v147
    %v428 = vunpack.c.l.b16 %v148
    %v429 = vunpack.c.h.b16 %v148
    %v430 = vpack.c.b16 %v400, %v398
    %v431 = vpack.c.b16 %v401, %v399
    %v432 = vpack.c.b16 %v404, %v402
    %v433 = vpack.c.b16 %v405, %v403
    %v434 = vpack.c.b16 %v408, %v406
    %v435 = vpack.c.b16 %v409, %v407
    %v436 = vpack.c.b16 %v412, %v410
    %v437 = vpack.c.b16 %v413, %v411
    %v438 = vpack.c.b16 %v416, %v414
    %v439 = vpack.c.b16 %v417, %v415
    %v440 = vpack.c.b16 %v420, %v418
    %v441 = vpack.c.b16 %v421, %v419
    %v442 = vpack.c.b16 %v424, %v422
    %v443 = vpack.c.b16 %v425, %v423
    %v444 = vpack.c.b16 %v428, %v426
    %v445 = vpack.c.b16 %v429, %v427
    %462 = vmatpush.bf16.msra.mxu0 %v444
    %463 = vmatpush.bf16.msra.mxu0 %v442
    %464 = vmatpush.bf16.msra.mxu0 %v440
    %465 = vmatpush.bf16.msra.mxu0 %v438
    %466 = vmatpush.bf16.msra.mxu0 %v436
    %467 = vmatpush.bf16.msra.mxu0 %v434
    %468 = vmatpush.bf16.msra.mxu0 %v432
    %469 = vmatpush.bf16.msra.mxu0 %v430
    %470 = vmatmul.bf16.gmra.mxu0 %v380
    %v471 = vpop.f32.mrf.mxu0
    %v472 = vadd.f32 0.0, %v471
    %v473 = vpop.f32.mrf.mxu0
    %v474 = vadd.f32 0.0, %v473
    %475 = vmatmul.bf16.gmra.mxu0 %v381
    %v476 = vpop.f32.mrf.mxu0
    %v477 = vadd.f32 0.0, %v476
    %v478 = vpop.f32.mrf.mxu0
    %v479 = vadd.f32 0.0, %v478
    %480 = vdwg.mxu0
    %481 = vmatpush.bf16.msra.mxu0 %v445
    %482 = vmatpush.bf16.msra.mxu0 %v443
    %483 = vmatpush.bf16.msra.mxu0 %v441
    %484 = vmatpush.bf16.msra.mxu0 %v439
    %485 = vmatpush.bf16.msra.mxu0 %v437
    %486 = vmatpush.bf16.msra.mxu0 %v435
    %487 = vmatpush.bf16.msra.mxu0 %v433
    %488 = vmatpush.bf16.msra.mxu0 %v431
    %489 = vmatmul.bf16.gmra.mxu0 %v380
    %v490 = vpop.f32.mrf.mxu0
    %v491 = vadd.f32 0.0, %v490
    %v492 = vpop.f32.mrf.mxu0
    %v493 = vadd.f32 0.0, %v492
    %494 = vmatmul.bf16.gmra.mxu0 %v381
    %v495 = vpop.f32.mrf.mxu0
    %v496 = vadd.f32 0.0, %v495
    %v497 = vpop.f32.mrf.mxu0
    %v498 = vadd.f32 0.0, %v497
    %499 = vdwg.mxu0
    %v500 = vadd.f32 %v368, %v472
    %v501 = vadd.f32 %v371, %v474
    %v502 = vadd.f32 %v374, %v477
    %v503 = vadd.f32 %v377, %v479
    %v504 = vxor.u32 %v500, 2147483648
    %v505 = vxor.u32 %v501, 2147483648
    %v506 = vxor.u32 %v502, 2147483648
    %v507 = vxor.u32 %v503, 2147483648
    %v508 = vmul.f32 %v504, 1.442695
    %v509 = vpow.pop %v508
    %v510 = vmul.f32 %v505, 1.442695
    %v511 = vpow.pop %v510
    %v512 = vmul.f32 %v506, 1.442695
    %v513 = vpow.pop %v512
    %v514 = vmul.f32 %v507, 1.442695
    %v515 = vpow.pop %v514
    %v516 = vadd.f32 %v509, 1.0
    %v517 = vadd.f32 %v511, 1.0
    %v518 = vadd.f32 %v513, 1.0
    %v519 = vadd.f32 %v515, 1.0
    %v520 = vrcp.pop %v516
    %v521 = vmul.f32 %v516, %v520
    %v522 = vsub.f32 1.0, %v521
    %v523 = vmul.f32 %v520, %v522
    %v524 = vadd.f32 %v520, %v523
    %vm525 = vweird.f32 %v516
    %vm526 = vweird.f32 %v520
    %vm527 = vmor %vm525, %vm526
    %v528 = vsel %vm527, %v520, %v524
    %v529 = vand.u32 2147483647, %v516
    %vm530 = vcmp.eq.f32.partialorder %v529, 8.507059e+37
    %v531 = vand.u32 %v516, 2147483648
    %v532 = vor.u32 1.1754944e-38, %v531
    %v533 = vsel %vm530, %v532, %v528
    %v534 = vmul.f32 1.0, %v533
    %v535 = vrcp.pop %v517
    %v536 = vmul.f32 %v517, %v535
    %v537 = vsub.f32 1.0, %v536
    %v538 = vmul.f32 %v535, %v537
    %v539 = vadd.f32 %v535, %v538
    %vm540 = vweird.f32 %v517
    %vm541 = vweird.f32 %v535
    %vm542 = vmor %vm540, %vm541
    %v543 = vsel %vm542, %v535, %v539
    %v544 = vand.u32 2147483647, %v517
    %vm545 = vcmp.eq.f32.partialorder %v544, 8.507059e+37
    %v546 = vand.u32 %v517, 2147483648
    %v547 = vor.u32 1.1754944e-38, %v546
    %v548 = vsel %vm545, %v547, %v543
    %v549 = vmul.f32 1.0, %v548
    %v550 = vrcp.pop %v518
    %v551 = vmul.f32 %v518, %v550
    %v552 = vsub.f32 1.0, %v551
    %v553 = vmul.f32 %v550, %v552
    %v554 = vadd.f32 %v550, %v553
    %vm555 = vweird.f32 %v518
    %vm556 = vweird.f32 %v550
    %vm557 = vmor %vm555, %vm556
    %v558 = vsel %vm557, %v550, %v554
    %v559 = vand.u32 2147483647, %v518
    %vm560 = vcmp.eq.f32.partialorder %v559, 8.507059e+37
    %v561 = vand.u32 %v518, 2147483648
    %v562 = vor.u32 1.1754944e-38, %v561
    %v563 = vsel %vm560, %v562, %v558
    %v564 = vmul.f32 1.0, %v563
    %v565 = vrcp.pop %v519
    %v566 = vmul.f32 %v519, %v565
    %v567 = vsub.f32 1.0, %v566
    %v568 = vmul.f32 %v565, %v567
    %v569 = vadd.f32 %v565, %v568
    %vm570 = vweird.f32 %v519
    %vm571 = vweird.f32 %v565
    %vm572 = vmor %vm570, %vm571
    %v573 = vsel %vm572, %v565, %v569
    %v574 = vand.u32 2147483647, %v519
    %vm575 = vcmp.eq.f32.partialorder %v574, 8.507059e+37
    %v576 = vand.u32 %v519, 2147483648
    %v577 = vor.u32 1.1754944e-38, %v576
    %v578 = vsel %vm575, %v577, %v573
    %v579 = vmul.f32 1.0, %v578
    %v580 = vadd.f32 %v369, %v491
    %v581 = vadd.f32 %v372, %v493
    %v582 = vadd.f32 %v375, %v496
    %v583 = vadd.f32 %v378, %v498
    %v584 = vxor.u32 %v580, 2147483648
    %v585 = vxor.u32 %v581, 2147483648
    %v586 = vxor.u32 %v582, 2147483648
    %v587 = vxor.u32 %v583, 2147483648
    %v588 = vmul.f32 %v584, 1.442695
    %v589 = vpow.pop %v588
    %v590 = vmul.f32 %v585, 1.442695
    %v591 = vpow.pop %v590
    %v592 = vmul.f32 %v586, 1.442695
    %v593 = vpow.pop %v592
    %v594 = vmul.f32 %v587, 1.442695
    %v595 = vpow.pop %v594
    %v596 = vadd.f32 %v589, 1.0
    %v597 = vadd.f32 %v591, 1.0
    %v598 = vadd.f32 %v593, 1.0
    %v599 = vadd.f32 %v595, 1.0
    %v600 = vrcp.pop %v596
    %v601 = vmul.f32 %v596, %v600
    %v602 = vsub.f32 1.0, %v601
    %v603 = vmul.f32 %v600, %v602
    %v604 = vadd.f32 %v600, %v603
    %vm605 = vweird.f32 %v596
    %vm606 = vweird.f32 %v600
    %vm607 = vmor %vm605, %vm606
    %v608 = vsel %vm607, %v600, %v604
    %v609 = vand.u32 2147483647, %v596
    %vm610 = vcmp.eq.f32.partialorder %v609, 8.507059e+37
    %v611 = vand.u32 %v596, 2147483648
    %v612 = vor.u32 1.1754944e-38, %v611
    %v613 = vsel %vm610, %v612, %v608
    %v614 = vmul.f32 1.0, %v613
    %v615 = vrcp.pop %v597
    %v616 = vmul.f32 %v597, %v615
    %v617 = vsub.f32 1.0, %v616
    %v618 = vmul.f32 %v615, %v617
    %v619 = vadd.f32 %v615, %v618
    %vm620 = vweird.f32 %v597
    %vm621 = vweird.f32 %v615
    %vm622 = vmor %vm620, %vm621
    %v623 = vsel %vm622, %v615, %v619
    %v624 = vand.u32 2147483647, %v597
    %vm625 = vcmp.eq.f32.partialorder %v624, 8.507059e+37
    %v626 = vand.u32 %v597, 2147483648
    %v627 = vor.u32 1.1754944e-38, %v626
    %v628 = vsel %vm625, %v627, %v623
    %v629 = vmul.f32 1.0, %v628
    %v630 = vrcp.pop %v598
    %v631 = vmul.f32 %v598, %v630
    %v632 = vsub.f32 1.0, %v631
    %v633 = vmul.f32 %v630, %v632
    %v634 = vadd.f32 %v630, %v633
    %vm635 = vweird.f32 %v598
    %vm636 = vweird.f32 %v630
    %vm637 = vmor %vm635, %vm636
    %v638 = vsel %vm637, %v630, %v634
    %v639 = vand.u32 2147483647, %v598
    %vm640 = vcmp.eq.f32.partialorder %v639, 8.507059e+37
    %v641 = vand.u32 %v598, 2147483648
    %v642 = vor.u32 1.1754944e-38, %v641
    %v643 = vsel %vm640, %v642, %v638
    %v644 = vmul.f32 1.0, %v643
    %v645 = vrcp.pop %v599
    %v646 = vmul.f32 %v599, %v645
    %v647 = vsub.f32 1.0, %v646
    %v648 = vmul.f32 %v645, %v647
    %v649 = vadd.f32 %v645, %v648
    %vm650 = vweird.f32 %v599
    %vm651 = vweird.f32 %v645
    %vm652 = vmor %vm650, %vm651
    %v653 = vsel %vm652, %v645, %v649
    %v654 = vand.u32 2147483647, %v599
    %vm655 = vcmp.eq.f32.partialorder %v654, 8.507059e+37
    %v656 = vand.u32 %v599, 2147483648
    %v657 = vor.u32 1.1754944e-38, %v656
    %v658 = vsel %vm655, %v657, %v653
    %v659 = vmul.f32 1.0, %v658
    %v660 = vmul.f32 %v614, %v79
    %v661 = vmul.f32 %v629, %v80
    %v662 = vmul.f32 %v644, %v81
    %v663 = vmul.f32 %v659, %v82
    %v664 = vpack.c.bf16 %v661, %v660
    %v665 = vpack.c.bf16 %v663, %v662
    %v682 = vunpack.c.l.b16 %v149
    %v683 = vunpack.c.l.b16 %v150
    %v684 = vunpack.c.l.b16 %v151
    %v685 = vunpack.c.l.b16 %v152
    %v686 = vunpack.c.l.b16 %v153
    %v687 = vunpack.c.l.b16 %v154
    %v688 = vunpack.c.l.b16 %v155
    %v689 = vunpack.c.l.b16 %v156
    %v690 = vunpack.c.l.b16 %v157
    %v691 = vunpack.c.l.b16 %v158
    %v692 = vunpack.c.l.b16 %v159
    %v693 = vunpack.c.l.b16 %v160
    %v694 = vunpack.c.l.b16 %v161
    %v695 = vunpack.c.l.b16 %v162
    %v696 = vunpack.c.l.b16 %v163
    %v697 = vunpack.c.l.b16 %v164
    %v698 = vpack.c.b16 %v683, %v682
    %v699 = vpack.c.b16 %v685, %v684
    %v700 = vpack.c.b16 %v687, %v686
    %v701 = vpack.c.b16 %v689, %v688
    %v702 = vpack.c.b16 %v691, %v690
    %v703 = vpack.c.b16 %v693, %v692
    %v704 = vpack.c.b16 %v695, %v694
    %v705 = vpack.c.b16 %v697, %v696
    %714 = vmatpush.bf16.msra.mxu0 %v705
    %715 = vmatpush.bf16.msra.mxu0 %v704
    %716 = vmatpush.bf16.msra.mxu0 %v703
    %717 = vmatpush.bf16.msra.mxu0 %v702
    %718 = vmatpush.bf16.msra.mxu0 %v701
    %719 = vmatpush.bf16.msra.mxu0 %v700
    %720 = vmatpush.bf16.msra.mxu0 %v699
    %721 = vmatpush.bf16.msra.mxu0 %v698
    %722 = vmatmul.bf16.gmra.mxu0 %v664
    %v723 = vpop.f32.mrf.mxu0
    %v724 = vadd.f32 0.0, %v723
    %v725 = vpop.f32.mrf.mxu0
    %v726 = vadd.f32 0.0, %v725
    %727 = vmatmul.bf16.gmra.mxu0 %v665
    %v728 = vpop.f32.mrf.mxu0
    %v729 = vadd.f32 0.0, %v728
    %v730 = vpop.f32.mrf.mxu0
    %v731 = vadd.f32 0.0, %v730
    %732 = vdwg.mxu0
    %v733 = vadd.f32 %v370, %v724
    %v734 = vadd.f32 %v373, %v726
    %v735 = vadd.f32 %v376, %v729
    %v736 = vadd.f32 %v379, %v731
    %v737 = vtanh.pop %v733
    %v738 = vtanh.pop %v734
    %v739 = vtanh.pop %v735
    %v740 = vtanh.pop %v736
    %v741 = vsub.f32 1.0, %v534
    %v742 = vsub.f32 1.0, %v549
    %v743 = vsub.f32 1.0, %v564
    %v744 = vsub.f32 1.0, %v579
    %v745 = vmul.f32 %v741, %v79
    %v746 = vmul.f32 %v742, %v80
    %v747 = vmul.f32 %v743, %v81
    %v748 = vmul.f32 %v744, %v82
    %v749 = vmul.f32 %v534, %v737
    %v750 = vmul.f32 %v549, %v738
    %v751 = vmul.f32 %v564, %v739
    %v752 = vmul.f32 %v579, %v740
    %v753 = vadd.f32 %v745, %v749
    %v754 = vadd.f32 %v746, %v750
    %v755 = vadd.f32 %v747, %v751
    %v756 = vadd.f32 %v748, %v752
    %v757 = vperm.slane %v165, 0
    %v758 = vmul.f32 %v753, %v757
    %v759 = vmul.f32 %v754, %v757
    %v760 = vmul.f32 %v755, %v757
    %v761 = vmul.f32 %v756, %v757
    %762 = vadd.xlane.f32.xlu0 %v758
    %v763 = vpop.xlane.xlu0 %762
    %764 = vadd.xlane.f32.xlu0 %v759
    %v765 = vpop.xlane.xlu0 %764
    %766 = vadd.xlane.f32.xlu0 %v760
    %v767 = vpop.xlane.xlu0 %766
    %768 = vadd.xlane.f32.xlu0 %v761
    %v769 = vpop.xlane.xlu0 %768
    %v771 = vperm.slane %v167, 0
    %v773 = vadd.f32 %v763, %v771
    %v774 = vadd.f32 %v765, %v771
    %v775 = vadd.f32 %v767, %v771
    %v776 = vadd.f32 %v769, %v771
    %v777 = vperm.slane %v166, 0
    %v778 = vmul.f32 %v753, %v777
    %v779 = vmul.f32 %v754, %v777
    %v780 = vmul.f32 %v755, %v777
    %v781 = vmul.f32 %v756, %v777
    %782 = vadd.xlane.f32.xlu0 %v778
    %v783 = vpop.xlane.xlu0 %782
    %784 = vadd.xlane.f32.xlu0 %v779
    %v785 = vpop.xlane.xlu0 %784
    %786 = vadd.xlane.f32.xlu0 %v780
    %v787 = vpop.xlane.xlu0 %786
    %788 = vadd.xlane.f32.xlu0 %v781
    %v789 = vpop.xlane.xlu0 %788
    %v790 = vadd.f32 %v783, %v771
    %v791 = vadd.f32 %v785, %v771
    %v792 = vadd.f32 %v787, %v771
    %v793 = vadd.f32 %v789, %v771
    %v794 = vadd.f32 %v773, 0.0
    %v795 = vadd.f32 %v774, 0.0
    %v796 = vadd.f32 %v775, 0.0
    %v797 = vadd.f32 %v776, 0.0
    %v798 = vadd.f32 %v790, 0.0
    %v799 = vadd.f32 %v791, 0.0
    %v800 = vadd.f32 %v792, 0.0
    %v801 = vadd.f32 %v793, 0.0
    %803 = vset.pattern.permute.xlu0 0
    %804 = vperm.xlu0 %803, %v794
    %v805 = vpop.permute.xlu0 %804
    %808 = vset.pattern.permute.xlu0 0
    %809 = vperm.xlu0 %808, %v795
    %v810 = vpop.permute.xlu0 %809
    %813 = vset.pattern.permute.xlu0 0
    %814 = vperm.xlu0 %813, %v796
    %v815 = vpop.permute.xlu0 %814
    %818 = vset.pattern.permute.xlu0 0
    %819 = vperm.xlu0 %818, %v797
    %v820 = vpop.permute.xlu0 %819
    %v822 = vmul.f32 %v805, %v168
    %v823 = vmul.f32 %v810, %v168
    %v824 = vmul.f32 %v815, %v168
    %v825 = vmul.f32 %v820, %v168
    %827 = vset.pattern.permute.xlu0 1
    %828 = vperm.xlu0 %827, %v798
    %v829 = vpop.permute.xlu0 %828
    %832 = vset.pattern.permute.xlu0 1
    %833 = vperm.xlu0 %832, %v799
    %v834 = vpop.permute.xlu0 %833
    %837 = vset.pattern.permute.xlu0 1
    %838 = vperm.xlu0 %837, %v800
    %v839 = vpop.permute.xlu0 %838
    %842 = vset.pattern.permute.xlu0 1
    %843 = vperm.xlu0 %842, %v801
    %v844 = vpop.permute.xlu0 %843
    %v846 = vmul.f32 %v829, %v170
    %v847 = vmul.f32 %v834, %v170
    %v848 = vmul.f32 %v839, %v170
    %v849 = vmul.f32 %v844, %v170
    %v850 = vadd.f32 %v822, %v846
    %v851 = vadd.f32 %v823, %v847
    %v852 = vadd.f32 %v824, %v848
    %v853 = vadd.f32 %v825, %v849
    %v854 = vadd.f32 %v95, %v850
    %v855 = vadd.f32 %v96, %v851
    %v856 = vadd.f32 %v97, %v852
    %v857 = vadd.f32 %v98, %v853
    %v858 = vmax.f32 %v854, 0.0
    %v859 = vmax.f32 %v855, 0.0
    %v860 = vmax.f32 %v856, 0.0
    %v861 = vmax.f32 %v857, 0.0
    %v862 = vpack.c.bf16 %v859, %v858
    %v863 = vpack.c.bf16 %v861, %v860
    %864 = vmatpush.bf16.msra.mxu0 %v284
    %865 = vmatpush.bf16.msra.mxu0 %v281
    %866 = vmatpush.bf16.msra.mxu0 %v278
    %867 = vmatpush.bf16.msra.mxu0 %v275
    %868 = vmatpush.bf16.msra.mxu0 %v272
    %869 = vmatpush.bf16.msra.mxu0 %v269
    %870 = vmatpush.bf16.msra.mxu0 %v266
    %871 = vmatpush.bf16.msra.mxu0 %v263
    %872 = vmatmul.bf16.gmra.mxu0 %v862
    %v873 = vpop.f32.mrf.mxu0
    %v874 = vadd.f32 0.0, %v873
    %v875 = vpop.f32.mrf.mxu0
    %v876 = vadd.f32 0.0, %v875
    %877 = vmatmul.bf16.gmra.mxu0 %v863
    %v878 = vpop.f32.mrf.mxu0
    %v879 = vadd.f32 0.0, %v878
    %v880 = vpop.f32.mrf.mxu0
    %v881 = vadd.f32 0.0, %v880
    %882 = vdwg.mxu0
    %883 = vmatpush.bf16.msra.mxu0 %v285
    %884 = vmatpush.bf16.msra.mxu0 %v282
    %885 = vmatpush.bf16.msra.mxu0 %v279
    %886 = vmatpush.bf16.msra.mxu0 %v276
    %887 = vmatpush.bf16.msra.mxu0 %v273
    %888 = vmatpush.bf16.msra.mxu0 %v270
    %889 = vmatpush.bf16.msra.mxu0 %v267
    %890 = vmatpush.bf16.msra.mxu0 %v264
    %891 = vmatmul.bf16.gmra.mxu0 %v862
    %v892 = vpop.f32.mrf.mxu0
    %v893 = vadd.f32 0.0, %v892
    %v894 = vpop.f32.mrf.mxu0
    %v895 = vadd.f32 0.0, %v894
    %896 = vmatmul.bf16.gmra.mxu0 %v863
    %v897 = vpop.f32.mrf.mxu0
    %v898 = vadd.f32 0.0, %v897
    %v899 = vpop.f32.mrf.mxu0
    %v900 = vadd.f32 0.0, %v899
    %901 = vdwg.mxu0
    %902 = vmatpush.bf16.msra.mxu0 %v286
    %903 = vmatpush.bf16.msra.mxu0 %v283
    %904 = vmatpush.bf16.msra.mxu0 %v280
    %905 = vmatpush.bf16.msra.mxu0 %v277
    %906 = vmatpush.bf16.msra.mxu0 %v274
    %907 = vmatpush.bf16.msra.mxu0 %v271
    %908 = vmatpush.bf16.msra.mxu0 %v268
    %909 = vmatpush.bf16.msra.mxu0 %v265
    %910 = vmatmul.bf16.gmra.mxu0 %v862
    %v911 = vpop.f32.mrf.mxu0
    %v912 = vadd.f32 0.0, %v911
    %v913 = vpop.f32.mrf.mxu0
    %v914 = vadd.f32 0.0, %v913
    %915 = vmatmul.bf16.gmra.mxu0 %v863
    %v916 = vpop.f32.mrf.mxu0
    %v917 = vadd.f32 0.0, %v916
    %v918 = vpop.f32.mrf.mxu0
    %v919 = vadd.f32 0.0, %v918
    %920 = vdwg.mxu0
    %v921 = vadd.f32 %v83, %v874
    %v922 = vadd.f32 %v84, %v893
    %v923 = vadd.f32 %v85, %v912
    %v924 = vadd.f32 %v86, %v876
    %v925 = vadd.f32 %v87, %v895
    %v926 = vadd.f32 %v88, %v914
    %v927 = vadd.f32 %v89, %v879
    %v928 = vadd.f32 %v90, %v898
    %v929 = vadd.f32 %v91, %v917
    %v930 = vadd.f32 %v92, %v881
    %v931 = vadd.f32 %v93, %v900
    %v932 = vadd.f32 %v94, %v919
    %v933 = vpack.c.bf16 %v754, %v753
    %v934 = vpack.c.bf16 %v756, %v755
    %935 = vmatpush.bf16.msra.mxu0 %v444
    %936 = vmatpush.bf16.msra.mxu0 %v442
    %937 = vmatpush.bf16.msra.mxu0 %v440
    %938 = vmatpush.bf16.msra.mxu0 %v438
    %939 = vmatpush.bf16.msra.mxu0 %v436
    %940 = vmatpush.bf16.msra.mxu0 %v434
    %941 = vmatpush.bf16.msra.mxu0 %v432
    %942 = vmatpush.bf16.msra.mxu0 %v430
    %943 = vmatmul.bf16.gmra.mxu0 %v933
    %v944 = vpop.f32.mrf.mxu0
    %v945 = vadd.f32 0.0, %v944
    %v946 = vpop.f32.mrf.mxu0
    %v947 = vadd.f32 0.0, %v946
    %948 = vmatmul.bf16.gmra.mxu0 %v934
    %v949 = vpop.f32.mrf.mxu0
    %v950 = vadd.f32 0.0, %v949
    %v951 = vpop.f32.mrf.mxu0
    %v952 = vadd.f32 0.0, %v951
    %953 = vdwg.mxu0
    %954 = vmatpush.bf16.msra.mxu0 %v445
    %955 = vmatpush.bf16.msra.mxu0 %v443
    %956 = vmatpush.bf16.msra.mxu0 %v441
    %957 = vmatpush.bf16.msra.mxu0 %v439
    %958 = vmatpush.bf16.msra.mxu0 %v437
    %959 = vmatpush.bf16.msra.mxu0 %v435
    %960 = vmatpush.bf16.msra.mxu0 %v433
    %961 = vmatpush.bf16.msra.mxu0 %v431
    %962 = vmatmul.bf16.gmra.mxu0 %v933
    %v963 = vpop.f32.mrf.mxu0
    %v964 = vadd.f32 0.0, %v963
    %v965 = vpop.f32.mrf.mxu0
    %v966 = vadd.f32 0.0, %v965
    %967 = vmatmul.bf16.gmra.mxu0 %v934
    %v968 = vpop.f32.mrf.mxu0
    %v969 = vadd.f32 0.0, %v968
    %v970 = vpop.f32.mrf.mxu0
    %v971 = vadd.f32 0.0, %v970
    %972 = vdwg.mxu0
    %v973 = vadd.f32 %v921, %v945
    %v974 = vadd.f32 %v924, %v947
    %v975 = vadd.f32 %v927, %v950
    %v976 = vadd.f32 %v930, %v952
    %v977 = vxor.u32 %v973, 2147483648
    %v978 = vxor.u32 %v974, 2147483648
    %v979 = vxor.u32 %v975, 2147483648
    %v980 = vxor.u32 %v976, 2147483648
    %v981 = vmul.f32 %v977, 1.442695
    %v982 = vpow.pop %v981
    %v983 = vmul.f32 %v978, 1.442695
    %v984 = vpow.pop %v983
    %v985 = vmul.f32 %v979, 1.442695
    %v986 = vpow.pop %v985
    %v987 = vmul.f32 %v980, 1.442695
    %v988 = vpow.pop %v987
    %v989 = vadd.f32 %v982, 1.0
    %v990 = vadd.f32 %v984, 1.0
    %v991 = vadd.f32 %v986, 1.0
    %v992 = vadd.f32 %v988, 1.0
    %v993 = vrcp.pop %v989
    %v994 = vmul.f32 %v989, %v993
    %v995 = vsub.f32 1.0, %v994
    %v996 = vmul.f32 %v993, %v995
    %v997 = vadd.f32 %v993, %v996
    %vm998 = vweird.f32 %v989
    %vm999 = vweird.f32 %v993
    %vm1000 = vmor %vm998, %vm999
    %v1001 = vsel %vm1000, %v993, %v997
    %v1002 = vand.u32 2147483647, %v989
    %vm1003 = vcmp.eq.f32.partialorder %v1002, 8.507059e+37
    %v1004 = vand.u32 %v989, 2147483648
    %v1005 = vor.u32 1.1754944e-38, %v1004
    %v1006 = vsel %vm1003, %v1005, %v1001
    %v1007 = vmul.f32 1.0, %v1006
    %v1008 = vrcp.pop %v990
    %v1009 = vmul.f32 %v990, %v1008
    %v1010 = vsub.f32 1.0, %v1009
    %v1011 = vmul.f32 %v1008, %v1010
    %v1012 = vadd.f32 %v1008, %v1011
    %vm1013 = vweird.f32 %v990
    %vm1014 = vweird.f32 %v1008
    %vm1015 = vmor %vm1013, %vm1014
    %v1016 = vsel %vm1015, %v1008, %v1012
    %v1017 = vand.u32 2147483647, %v990
    %vm1018 = vcmp.eq.f32.partialorder %v1017, 8.507059e+37
    %v1019 = vand.u32 %v990, 2147483648
    %v1020 = vor.u32 1.1754944e-38, %v1019
    %v1021 = vsel %vm1018, %v1020, %v1016
    %v1022 = vmul.f32 1.0, %v1021
    %v1023 = vrcp.pop %v991
    %v1024 = vmul.f32 %v991, %v1023
    %v1025 = vsub.f32 1.0, %v1024
    %v1026 = vmul.f32 %v1023, %v1025
    %v1027 = vadd.f32 %v1023, %v1026
    %vm1028 = vweird.f32 %v991
    %vm1029 = vweird.f32 %v1023
    %vm1030 = vmor %vm1028, %vm1029
    %v1031 = vsel %vm1030, %v1023, %v1027
    %v1032 = vand.u32 2147483647, %v991
    %vm1033 = vcmp.eq.f32.partialorder %v1032, 8.507059e+37
    %v1034 = vand.u32 %v991, 2147483648
    %v1035 = vor.u32 1.1754944e-38, %v1034
    %v1036 = vsel %vm1033, %v1035, %v1031
    %v1037 = vmul.f32 1.0, %v1036
    %v1038 = vrcp.pop %v992
    %v1039 = vmul.f32 %v992, %v1038
    %v1040 = vsub.f32 1.0, %v1039
    %v1041 = vmul.f32 %v1038, %v1040
    %v1042 = vadd.f32 %v1038, %v1041
    %vm1043 = vweird.f32 %v992
    %vm1044 = vweird.f32 %v1038
    %vm1045 = vmor %vm1043, %vm1044
    %v1046 = vsel %vm1045, %v1038, %v1042
    %v1047 = vand.u32 2147483647, %v992
    %vm1048 = vcmp.eq.f32.partialorder %v1047, 8.507059e+37
    %v1049 = vand.u32 %v992, 2147483648
    %v1050 = vor.u32 1.1754944e-38, %v1049
    %v1051 = vsel %vm1048, %v1050, %v1046
    %v1052 = vmul.f32 1.0, %v1051
    %v1053 = vadd.f32 %v922, %v964
    %v1054 = vadd.f32 %v925, %v966
    %v1055 = vadd.f32 %v928, %v969
    %v1056 = vadd.f32 %v931, %v971
    %v1057 = vxor.u32 %v1053, 2147483648
    %v1058 = vxor.u32 %v1054, 2147483648
    %v1059 = vxor.u32 %v1055, 2147483648
    %v1060 = vxor.u32 %v1056, 2147483648
    %v1061 = vmul.f32 %v1057, 1.442695
    %v1062 = vpow.pop %v1061
    %v1063 = vmul.f32 %v1058, 1.442695
    %v1064 = vpow.pop %v1063
    %v1065 = vmul.f32 %v1059, 1.442695
    %v1066 = vpow.pop %v1065
    %v1067 = vmul.f32 %v1060, 1.442695
    %v1068 = vpow.pop %v1067
    %v1069 = vadd.f32 %v1062, 1.0
    %v1070 = vadd.f32 %v1064, 1.0
    %v1071 = vadd.f32 %v1066, 1.0
    %v1072 = vadd.f32 %v1068, 1.0
    %v1073 = vrcp.pop %v1069
    %v1074 = vmul.f32 %v1069, %v1073
    %v1075 = vsub.f32 1.0, %v1074
    %v1076 = vmul.f32 %v1073, %v1075
    %v1077 = vadd.f32 %v1073, %v1076
    %vm1078 = vweird.f32 %v1069
    %vm1079 = vweird.f32 %v1073
    %vm1080 = vmor %vm1078, %vm1079
    %v1081 = vsel %vm1080, %v1073, %v1077
    %v1082 = vand.u32 2147483647, %v1069
    %vm1083 = vcmp.eq.f32.partialorder %v1082, 8.507059e+37
    %v1084 = vand.u32 %v1069, 2147483648
    %v1085 = vor.u32 1.1754944e-38, %v1084
    %v1086 = vsel %vm1083, %v1085, %v1081
    %v1087 = vmul.f32 1.0, %v1086
    %v1088 = vrcp.pop %v1070
    %v1089 = vmul.f32 %v1070, %v1088
    %v1090 = vsub.f32 1.0, %v1089
    %v1091 = vmul.f32 %v1088, %v1090
    %v1092 = vadd.f32 %v1088, %v1091
    %vm1093 = vweird.f32 %v1070
    %vm1094 = vweird.f32 %v1088
    %vm1095 = vmor %vm1093, %vm1094
    %v1096 = vsel %vm1095, %v1088, %v1092
    %v1097 = vand.u32 2147483647, %v1070
    %vm1098 = vcmp.eq.f32.partialorder %v1097, 8.507059e+37
    %v1099 = vand.u32 %v1070, 2147483648
    %v1100 = vor.u32 1.1754944e-38, %v1099
    %v1101 = vsel %vm1098, %v1100, %v1096
    %v1102 = vmul.f32 1.0, %v1101
    %v1103 = vrcp.pop %v1071
    %v1104 = vmul.f32 %v1071, %v1103
    %v1105 = vsub.f32 1.0, %v1104
    %v1106 = vmul.f32 %v1103, %v1105
    %v1107 = vadd.f32 %v1103, %v1106
    %vm1108 = vweird.f32 %v1071
    %vm1109 = vweird.f32 %v1103
    %vm1110 = vmor %vm1108, %vm1109
    %v1111 = vsel %vm1110, %v1103, %v1107
    %v1112 = vand.u32 2147483647, %v1071
    %vm1113 = vcmp.eq.f32.partialorder %v1112, 8.507059e+37
    %v1114 = vand.u32 %v1071, 2147483648
    %v1115 = vor.u32 1.1754944e-38, %v1114
    %v1116 = vsel %vm1113, %v1115, %v1111
    %v1117 = vmul.f32 1.0, %v1116
    %v1118 = vrcp.pop %v1072
    %v1119 = vmul.f32 %v1072, %v1118
    %v1120 = vsub.f32 1.0, %v1119
    %v1121 = vmul.f32 %v1118, %v1120
    %v1122 = vadd.f32 %v1118, %v1121
    %vm1123 = vweird.f32 %v1072
    %vm1124 = vweird.f32 %v1118
    %vm1125 = vmor %vm1123, %vm1124
    %v1126 = vsel %vm1125, %v1118, %v1122
    %v1127 = vand.u32 2147483647, %v1072
    %vm1128 = vcmp.eq.f32.partialorder %v1127, 8.507059e+37
    %v1129 = vand.u32 %v1072, 2147483648
    %v1130 = vor.u32 1.1754944e-38, %v1129
    %v1131 = vsel %vm1128, %v1130, %v1126
    %v1132 = vmul.f32 1.0, %v1131
    %v1133 = vmul.f32 %v1087, %v753
    %v1134 = vmul.f32 %v1102, %v754
    %v1135 = vmul.f32 %v1117, %v755
    %v1136 = vmul.f32 %v1132, %v756
    %v1137 = vpack.c.bf16 %v1134, %v1133
    %v1138 = vpack.c.bf16 %v1136, %v1135
    %1139 = vmatpush.bf16.msra.mxu0 %v705
    %1140 = vmatpush.bf16.msra.mxu0 %v704
    %1141 = vmatpush.bf16.msra.mxu0 %v703
    %1142 = vmatpush.bf16.msra.mxu0 %v702
    %1143 = vmatpush.bf16.msra.mxu0 %v701
    %1144 = vmatpush.bf16.msra.mxu0 %v700
    %1145 = vmatpush.bf16.msra.mxu0 %v699
    %1146 = vmatpush.bf16.msra.mxu0 %v698
    %1147 = vmatmul.bf16.gmra.mxu0 %v1137
    %v1148 = vpop.f32.mrf.mxu0
    %v1149 = vadd.f32 0.0, %v1148
    %v1150 = vpop.f32.mrf.mxu0
    %v1151 = vadd.f32 0.0, %v1150
    %1152 = vmatmul.bf16.gmra.mxu0 %v1138
    %v1153 = vpop.f32.mrf.mxu0
    %v1154 = vadd.f32 0.0, %v1153
    %v1155 = vpop.f32.mrf.mxu0
    %v1156 = vadd.f32 0.0, %v1155
    %1157 = vdwg.mxu0
    %v1158 = vadd.f32 %v923, %v1149
    %v1159 = vadd.f32 %v926, %v1151
    %v1160 = vadd.f32 %v929, %v1154
    %v1161 = vadd.f32 %v932, %v1156
    %v1162 = vtanh.pop %v1158
    %v1163 = vtanh.pop %v1159
    %v1164 = vtanh.pop %v1160
    %v1165 = vtanh.pop %v1161
    %v1166 = vsub.f32 1.0, %v1007
    %v1167 = vsub.f32 1.0, %v1022
    %v1168 = vsub.f32 1.0, %v1037
    %v1169 = vsub.f32 1.0, %v1052
    %v1170 = vmul.f32 %v1166, %v753
    %v1171 = vmul.f32 %v1167, %v754
    %v1172 = vmul.f32 %v1168, %v755
    %v1173 = vmul.f32 %v1169, %v756
    %v1174 = vmul.f32 %v1007, %v1162
    %v1175 = vmul.f32 %v1022, %v1163
    %v1176 = vmul.f32 %v1037, %v1164
    %v1177 = vmul.f32 %v1052, %v1165
    %v1178 = vadd.f32 %v1170, %v1174
    %v1179 = vadd.f32 %v1171, %v1175
    %v1180 = vadd.f32 %v1172, %v1176
    %v1181 = vadd.f32 %v1173, %v1177
    %v1182 = vmul.f32 %v1178, %v757
    %v1183 = vmul.f32 %v1179, %v757
    %v1184 = vmul.f32 %v1180, %v757
    %v1185 = vmul.f32 %v1181, %v757
    %1186 = vadd.xlane.f32.xlu0 %v1182
    %v1187 = vpop.xlane.xlu0 %1186
    %1188 = vadd.xlane.f32.xlu0 %v1183
    %v1189 = vpop.xlane.xlu0 %1188
    %1190 = vadd.xlane.f32.xlu0 %v1184
    %v1191 = vpop.xlane.xlu0 %1190
    %1192 = vadd.xlane.f32.xlu0 %v1185
    %v1193 = vpop.xlane.xlu0 %1192
    %v1194 = vadd.f32 %v1187, %v771
    %v1195 = vadd.f32 %v1189, %v771
    %v1196 = vadd.f32 %v1191, %v771
    %v1197 = vadd.f32 %v1193, %v771
    %v1198 = vmul.f32 %v1178, %v777
    %v1199 = vmul.f32 %v1179, %v777
    %v1200 = vmul.f32 %v1180, %v777
    %v1201 = vmul.f32 %v1181, %v777
    %1202 = vadd.xlane.f32.xlu0 %v1198
    %v1203 = vpop.xlane.xlu0 %1202
    %1204 = vadd.xlane.f32.xlu0 %v1199
    %v1205 = vpop.xlane.xlu0 %1204
    %1206 = vadd.xlane.f32.xlu0 %v1200
    %v1207 = vpop.xlane.xlu0 %1206
    %1208 = vadd.xlane.f32.xlu0 %v1201
    %v1209 = vpop.xlane.xlu0 %1208
    %v1210 = vadd.f32 %v1203, %v771
    %v1211 = vadd.f32 %v1205, %v771
    %v1212 = vadd.f32 %v1207, %v771
    %v1213 = vadd.f32 %v1209, %v771
    %v1214 = vadd.f32 %v794, %v1194
    %v1215 = vadd.f32 %v795, %v1195
    %v1216 = vadd.f32 %v796, %v1196
    %v1217 = vadd.f32 %v797, %v1197
    %v1218 = vadd.f32 %v798, %v1210
    %v1219 = vadd.f32 %v799, %v1211
    %v1220 = vadd.f32 %v800, %v1212
    %v1221 = vadd.f32 %v801, %v1213
    %1223 = vset.pattern.permute.xlu0 0
    %1224 = vperm.xlu0 %1223, %v1214
    %v1225 = vpop.permute.xlu0 %1224
    %1228 = vset.pattern.permute.xlu0 0
    %1229 = vperm.xlu0 %1228, %v1215
    %v1230 = vpop.permute.xlu0 %1229
    %1233 = vset.pattern.permute.xlu0 0
    %1234 = vperm.xlu0 %1233, %v1216
    %v1235 = vpop.permute.xlu0 %1234
    %1238 = vset.pattern.permute.xlu0 0
    %1239 = vperm.xlu0 %1238, %v1217
    %v1240 = vpop.permute.xlu0 %1239
    %v1242 = vmul.f32 %v1225, %v168
    %v1243 = vmul.f32 %v1230, %v168
    %v1244 = vmul.f32 %v1235, %v168
    %v1245 = vmul.f32 %v1240, %v168
    %1247 = vset.pattern.permute.xlu0 1
    %1248 = vperm.xlu0 %1247, %v1218
    %v1249 = vpop.permute.xlu0 %1248
    %1252 = vset.pattern.permute.xlu0 1
    %1253 = vperm.xlu0 %1252, %v1219
    %v1254 = vpop.permute.xlu0 %1253
    %1257 = vset.pattern.permute.xlu0 1
    %1258 = vperm.xlu0 %1257, %v1220
    %v1259 = vpop.permute.xlu0 %1258
    %1262 = vset.pattern.permute.xlu0 1
    %1263 = vperm.xlu0 %1262, %v1221
    %v1264 = vpop.permute.xlu0 %1263
    %v1266 = vmul.f32 %v1249, %v170
    %v1267 = vmul.f32 %v1254, %v170
    %v1268 = vmul.f32 %v1259, %v170
    %v1269 = vmul.f32 %v1264, %v170
    %v1270 = vadd.f32 %v1242, %v1266
    %v1271 = vadd.f32 %v1243, %v1267
    %v1272 = vadd.f32 %v1244, %v1268
    %v1273 = vadd.f32 %v1245, %v1269
    %v1274 = vadd.f32 %v95, %v1270
    %v1275 = vadd.f32 %v96, %v1271
    %v1276 = vadd.f32 %v97, %v1272
    %v1277 = vadd.f32 %v98, %v1273
    %v1278 = vmax.f32 %v1274, 0.0
    %v1279 = vmax.f32 %v1275, 0.0
    %v1280 = vmax.f32 %v1276, 0.0
    %v1281 = vmax.f32 %v1277, 0.0
    %v1282 = vpack.c.bf16 %v1279, %v1278
    %v1283 = vpack.c.bf16 %v1281, %v1280
    %1284 = vmatpush.bf16.msra.mxu0 %v284
    %1285 = vmatpush.bf16.msra.mxu0 %v281
    %1286 = vmatpush.bf16.msra.mxu0 %v278
    %1287 = vmatpush.bf16.msra.mxu0 %v275
    %1288 = vmatpush.bf16.msra.mxu0 %v272
    %1289 = vmatpush.bf16.msra.mxu0 %v269
    %1290 = vmatpush.bf16.msra.mxu0 %v266
    %1291 = vmatpush.bf16.msra.mxu0 %v263
    %1292 = vmatmul.bf16.gmra.mxu0 %v1282
    %v1293 = vpop.f32.mrf.mxu0
    %v1294 = vadd.f32 0.0, %v1293
    %v1295 = vpop.f32.mrf.mxu0
    %v1296 = vadd.f32 0.0, %v1295
    %1297 = vmatmul.bf16.gmra.mxu0 %v1283
    %v1298 = vpop.f32.mrf.mxu0
    %v1299 = vadd.f32 0.0, %v1298
    %v1300 = vpop.f32.mrf.mxu0
    %v1301 = vadd.f32 0.0, %v1300
    %1302 = vdwg.mxu0
    %1303 = vmatpush.bf16.msra.mxu0 %v285
    %1304 = vmatpush.bf16.msra.mxu0 %v282
    %1305 = vmatpush.bf16.msra.mxu0 %v279
    %1306 = vmatpush.bf16.msra.mxu0 %v276
    %1307 = vmatpush.bf16.msra.mxu0 %v273
    %1308 = vmatpush.bf16.msra.mxu0 %v270
    %1309 = vmatpush.bf16.msra.mxu0 %v267
    %1310 = vmatpush.bf16.msra.mxu0 %v264
    %1311 = vmatmul.bf16.gmra.mxu0 %v1282
    %v1312 = vpop.f32.mrf.mxu0
    %v1313 = vadd.f32 0.0, %v1312
    %v1314 = vpop.f32.mrf.mxu0
    %v1315 = vadd.f32 0.0, %v1314
    %1316 = vmatmul.bf16.gmra.mxu0 %v1283
    %v1317 = vpop.f32.mrf.mxu0
    %v1318 = vadd.f32 0.0, %v1317
    %v1319 = vpop.f32.mrf.mxu0
    %v1320 = vadd.f32 0.0, %v1319
    %1321 = vdwg.mxu0
    %1322 = vmatpush.bf16.msra.mxu0 %v286
    %1323 = vmatpush.bf16.msra.mxu0 %v283
    %1324 = vmatpush.bf16.msra.mxu0 %v280
    %1325 = vmatpush.bf16.msra.mxu0 %v277
    %1326 = vmatpush.bf16.msra.mxu0 %v274
    %1327 = vmatpush.bf16.msra.mxu0 %v271
    %1328 = vmatpush.bf16.msra.mxu0 %v268
    %1329 = vmatpush.bf16.msra.mxu0 %v265
    %1330 = vmatmul.bf16.gmra.mxu0 %v1282
    %v1331 = vpop.f32.mrf.mxu0
    %v1332 = vadd.f32 0.0, %v1331
    %v1333 = vpop.f32.mrf.mxu0
    %v1334 = vadd.f32 0.0, %v1333
    %1335 = vmatmul.bf16.gmra.mxu0 %v1283
    %v1336 = vpop.f32.mrf.mxu0
    %v1337 = vadd.f32 0.0, %v1336
    %v1338 = vpop.f32.mrf.mxu0
    %v1339 = vadd.f32 0.0, %v1338
    %1340 = vdwg.mxu0
    %v1341 = vadd.f32 %v83, %v1294
    %v1342 = vadd.f32 %v84, %v1313
    %v1343 = vadd.f32 %v85, %v1332
    %v1344 = vadd.f32 %v86, %v1296
    %v1345 = vadd.f32 %v87, %v1315
    %v1346 = vadd.f32 %v88, %v1334
    %v1347 = vadd.f32 %v89, %v1299
    %v1348 = vadd.f32 %v90, %v1318
    %v1349 = vadd.f32 %v91, %v1337
    %v1350 = vadd.f32 %v92, %v1301
    %v1351 = vadd.f32 %v93, %v1320
    %v1352 = vadd.f32 %v94, %v1339
    %v1353 = vpack.c.bf16 %v1179, %v1178
    %v1354 = vpack.c.bf16 %v1181, %v1180
    %1355 = vmatpush.bf16.msra.mxu0 %v444
    %1356 = vmatpush.bf16.msra.mxu0 %v442
    %1357 = vmatpush.bf16.msra.mxu0 %v440
    %1358 = vmatpush.bf16.msra.mxu0 %v438
    %1359 = vmatpush.bf16.msra.mxu0 %v436
    %1360 = vmatpush.bf16.msra.mxu0 %v434
    %1361 = vmatpush.bf16.msra.mxu0 %v432
    %1362 = vmatpush.bf16.msra.mxu0 %v430
    %1363 = vmatmul.bf16.gmra.mxu0 %v1353
    %v1364 = vpop.f32.mrf.mxu0
    %v1365 = vadd.f32 0.0, %v1364
    %v1366 = vpop.f32.mrf.mxu0
    %v1367 = vadd.f32 0.0, %v1366
    %1368 = vmatmul.bf16.gmra.mxu0 %v1354
    %v1369 = vpop.f32.mrf.mxu0
    %v1370 = vadd.f32 0.0, %v1369
    %v1371 = vpop.f32.mrf.mxu0
    %v1372 = vadd.f32 0.0, %v1371
    %1373 = vdwg.mxu0
    %1374 = vmatpush.bf16.msra.mxu0 %v445
    %1375 = vmatpush.bf16.msra.mxu0 %v443
    %1376 = vmatpush.bf16.msra.mxu0 %v441
    %1377 = vmatpush.bf16.msra.mxu0 %v439
    %1378 = vmatpush.bf16.msra.mxu0 %v437
    %1379 = vmatpush.bf16.msra.mxu0 %v435
    %1380 = vmatpush.bf16.msra.mxu0 %v433
    %1381 = vmatpush.bf16.msra.mxu0 %v431
    %1382 = vmatmul.bf16.gmra.mxu0 %v1353
    %v1383 = vpop.f32.mrf.mxu0
    %v1384 = vadd.f32 0.0, %v1383
    %v1385 = vpop.f32.mrf.mxu0
    %v1386 = vadd.f32 0.0, %v1385
    %1387 = vmatmul.bf16.gmra.mxu0 %v1354
    %v1388 = vpop.f32.mrf.mxu0
    %v1389 = vadd.f32 0.0, %v1388
    %v1390 = vpop.f32.mrf.mxu0
    %v1391 = vadd.f32 0.0, %v1390
    %1392 = vdwg.mxu0
    %v1393 = vadd.f32 %v1341, %v1365
    %v1394 = vadd.f32 %v1344, %v1367
    %v1395 = vadd.f32 %v1347, %v1370
    %v1396 = vadd.f32 %v1350, %v1372
    %v1397 = vxor.u32 %v1393, 2147483648
    %v1398 = vxor.u32 %v1394, 2147483648
    %v1399 = vxor.u32 %v1395, 2147483648
    %v1400 = vxor.u32 %v1396, 2147483648
    %v1401 = vmul.f32 %v1397, 1.442695
    %v1402 = vpow.pop %v1401
    %v1403 = vmul.f32 %v1398, 1.442695
    %v1404 = vpow.pop %v1403
    %v1405 = vmul.f32 %v1399, 1.442695
    %v1406 = vpow.pop %v1405
    %v1407 = vmul.f32 %v1400, 1.442695
    %v1408 = vpow.pop %v1407
    %v1409 = vadd.f32 %v1402, 1.0
    %v1410 = vadd.f32 %v1404, 1.0
    %v1411 = vadd.f32 %v1406, 1.0
    %v1412 = vadd.f32 %v1408, 1.0
    %v1413 = vrcp.pop %v1409
    %v1414 = vmul.f32 %v1409, %v1413
    %v1415 = vsub.f32 1.0, %v1414
    %v1416 = vmul.f32 %v1413, %v1415
    %v1417 = vadd.f32 %v1413, %v1416
    %vm1418 = vweird.f32 %v1409
    %vm1419 = vweird.f32 %v1413
    %vm1420 = vmor %vm1418, %vm1419
    %v1421 = vsel %vm1420, %v1413, %v1417
    %v1422 = vand.u32 2147483647, %v1409
    %vm1423 = vcmp.eq.f32.partialorder %v1422, 8.507059e+37
    %v1424 = vand.u32 %v1409, 2147483648
    %v1425 = vor.u32 1.1754944e-38, %v1424
    %v1426 = vsel %vm1423, %v1425, %v1421
    %v1427 = vmul.f32 1.0, %v1426
    %v1428 = vrcp.pop %v1410
    %v1429 = vmul.f32 %v1410, %v1428
    %v1430 = vsub.f32 1.0, %v1429
    %v1431 = vmul.f32 %v1428, %v1430
    %v1432 = vadd.f32 %v1428, %v1431
    %vm1433 = vweird.f32 %v1410
    %vm1434 = vweird.f32 %v1428
    %vm1435 = vmor %vm1433, %vm1434
    %v1436 = vsel %vm1435, %v1428, %v1432
    %v1437 = vand.u32 2147483647, %v1410
    %vm1438 = vcmp.eq.f32.partialorder %v1437, 8.507059e+37
    %v1439 = vand.u32 %v1410, 2147483648
    %v1440 = vor.u32 1.1754944e-38, %v1439
    %v1441 = vsel %vm1438, %v1440, %v1436
    %v1442 = vmul.f32 1.0, %v1441
    %v1443 = vrcp.pop %v1411
    %v1444 = vmul.f32 %v1411, %v1443
    %v1445 = vsub.f32 1.0, %v1444
    %v1446 = vmul.f32 %v1443, %v1445
    %v1447 = vadd.f32 %v1443, %v1446
    %vm1448 = vweird.f32 %v1411
    %vm1449 = vweird.f32 %v1443
    %vm1450 = vmor %vm1448, %vm1449
    %v1451 = vsel %vm1450, %v1443, %v1447
    %v1452 = vand.u32 2147483647, %v1411
    %vm1453 = vcmp.eq.f32.partialorder %v1452, 8.507059e+37
    %v1454 = vand.u32 %v1411, 2147483648
    %v1455 = vor.u32 1.1754944e-38, %v1454
    %v1456 = vsel %vm1453, %v1455, %v1451
    %v1457 = vmul.f32 1.0, %v1456
    %v1458 = vrcp.pop %v1412
    %v1459 = vmul.f32 %v1412, %v1458
    %v1460 = vsub.f32 1.0, %v1459
    %v1461 = vmul.f32 %v1458, %v1460
    %v1462 = vadd.f32 %v1458, %v1461
    %vm1463 = vweird.f32 %v1412
    %vm1464 = vweird.f32 %v1458
    %vm1465 = vmor %vm1463, %vm1464
    %v1466 = vsel %vm1465, %v1458, %v1462
    %v1467 = vand.u32 2147483647, %v1412
    %vm1468 = vcmp.eq.f32.partialorder %v1467, 8.507059e+37
    %v1469 = vand.u32 %v1412, 2147483648
    %v1470 = vor.u32 1.1754944e-38, %v1469
    %v1471 = vsel %vm1468, %v1470, %v1466
    %v1472 = vmul.f32 1.0, %v1471
    %v1473 = vadd.f32 %v1342, %v1384
    %v1474 = vadd.f32 %v1345, %v1386
    %v1475 = vadd.f32 %v1348, %v1389
    %v1476 = vadd.f32 %v1351, %v1391
    %v1477 = vxor.u32 %v1473, 2147483648
    %v1478 = vxor.u32 %v1474, 2147483648
    %v1479 = vxor.u32 %v1475, 2147483648
    %v1480 = vxor.u32 %v1476, 2147483648
    %v1481 = vmul.f32 %v1477, 1.442695
    %v1482 = vpow.pop %v1481
    %v1483 = vmul.f32 %v1478, 1.442695
    %v1484 = vpow.pop %v1483
    %v1485 = vmul.f32 %v1479, 1.442695
    %v1486 = vpow.pop %v1485
    %v1487 = vmul.f32 %v1480, 1.442695
    %v1488 = vpow.pop %v1487
    %v1489 = vadd.f32 %v1482, 1.0
    %v1490 = vadd.f32 %v1484, 1.0
    %v1491 = vadd.f32 %v1486, 1.0
    %v1492 = vadd.f32 %v1488, 1.0
    %v1493 = vrcp.pop %v1489
    %v1494 = vmul.f32 %v1489, %v1493
    %v1495 = vsub.f32 1.0, %v1494
    %v1496 = vmul.f32 %v1493, %v1495
    %v1497 = vadd.f32 %v1493, %v1496
    %vm1498 = vweird.f32 %v1489
    %vm1499 = vweird.f32 %v1493
    %vm1500 = vmor %vm1498, %vm1499
    %v1501 = vsel %vm1500, %v1493, %v1497
    %v1502 = vand.u32 2147483647, %v1489
    %vm1503 = vcmp.eq.f32.partialorder %v1502, 8.507059e+37
    %v1504 = vand.u32 %v1489, 2147483648
    %v1505 = vor.u32 1.1754944e-38, %v1504
    %v1506 = vsel %vm1503, %v1505, %v1501
    %v1507 = vmul.f32 1.0, %v1506
    %v1508 = vrcp.pop %v1490
    %v1509 = vmul.f32 %v1490, %v1508
    %v1510 = vsub.f32 1.0, %v1509
    %v1511 = vmul.f32 %v1508, %v1510
    %v1512 = vadd.f32 %v1508, %v1511
    %vm1513 = vweird.f32 %v1490
    %vm1514 = vweird.f32 %v1508
    %vm1515 = vmor %vm1513, %vm1514
    %v1516 = vsel %vm1515, %v1508, %v1512
    %v1517 = vand.u32 2147483647, %v1490
    %vm1518 = vcmp.eq.f32.partialorder %v1517, 8.507059e+37
    %v1519 = vand.u32 %v1490, 2147483648
    %v1520 = vor.u32 1.1754944e-38, %v1519
    %v1521 = vsel %vm1518, %v1520, %v1516
    %v1522 = vmul.f32 1.0, %v1521
    %v1523 = vrcp.pop %v1491
    %v1524 = vmul.f32 %v1491, %v1523
    %v1525 = vsub.f32 1.0, %v1524
    %v1526 = vmul.f32 %v1523, %v1525
    %v1527 = vadd.f32 %v1523, %v1526
    %vm1528 = vweird.f32 %v1491
    %vm1529 = vweird.f32 %v1523
    %vm1530 = vmor %vm1528, %vm1529
    %v1531 = vsel %vm1530, %v1523, %v1527
    %v1532 = vand.u32 2147483647, %v1491
    %vm1533 = vcmp.eq.f32.partialorder %v1532, 8.507059e+37
    %v1534 = vand.u32 %v1491, 2147483648
    %v1535 = vor.u32 1.1754944e-38, %v1534
    %v1536 = vsel %vm1533, %v1535, %v1531
    %v1537 = vmul.f32 1.0, %v1536
    %v1538 = vrcp.pop %v1492
    %v1539 = vmul.f32 %v1492, %v1538
    %v1540 = vsub.f32 1.0, %v1539
    %v1541 = vmul.f32 %v1538, %v1540
    %v1542 = vadd.f32 %v1538, %v1541
    %vm1543 = vweird.f32 %v1492
    %vm1544 = vweird.f32 %v1538
    %vm1545 = vmor %vm1543, %vm1544
    %v1546 = vsel %vm1545, %v1538, %v1542
    %v1547 = vand.u32 2147483647, %v1492
    %vm1548 = vcmp.eq.f32.partialorder %v1547, 8.507059e+37
    %v1549 = vand.u32 %v1492, 2147483648
    %v1550 = vor.u32 1.1754944e-38, %v1549
    %v1551 = vsel %vm1548, %v1550, %v1546
    %v1552 = vmul.f32 1.0, %v1551
    %v1553 = vmul.f32 %v1507, %v1178
    %v1554 = vmul.f32 %v1522, %v1179
    %v1555 = vmul.f32 %v1537, %v1180
    %v1556 = vmul.f32 %v1552, %v1181
    %v1557 = vpack.c.bf16 %v1554, %v1553
    %v1558 = vpack.c.bf16 %v1556, %v1555
    %1559 = vmatpush.bf16.msra.mxu0 %v705
    %1560 = vmatpush.bf16.msra.mxu0 %v704
    %1561 = vmatpush.bf16.msra.mxu0 %v703
    %1562 = vmatpush.bf16.msra.mxu0 %v702
    %1563 = vmatpush.bf16.msra.mxu0 %v701
    %1564 = vmatpush.bf16.msra.mxu0 %v700
    %1565 = vmatpush.bf16.msra.mxu0 %v699
    %1566 = vmatpush.bf16.msra.mxu0 %v698
    %1567 = vmatmul.bf16.gmra.mxu0 %v1557
    %v1568 = vpop.f32.mrf.mxu0
    %v1569 = vadd.f32 0.0, %v1568
    %v1570 = vpop.f32.mrf.mxu0
    %v1571 = vadd.f32 0.0, %v1570
    %1572 = vmatmul.bf16.gmra.mxu0 %v1558
    %v1573 = vpop.f32.mrf.mxu0
    %v1574 = vadd.f32 0.0, %v1573
    %v1575 = vpop.f32.mrf.mxu0
    %v1576 = vadd.f32 0.0, %v1575
    %1577 = vdwg.mxu0
    %v1578 = vadd.f32 %v1343, %v1569
    %v1579 = vadd.f32 %v1346, %v1571
    %v1580 = vadd.f32 %v1349, %v1574
    %v1581 = vadd.f32 %v1352, %v1576
    %v1582 = vtanh.pop %v1578
    %v1583 = vtanh.pop %v1579
    %v1584 = vtanh.pop %v1580
    %v1585 = vtanh.pop %v1581
    %v1586 = vsub.f32 1.0, %v1427
    %v1587 = vsub.f32 1.0, %v1442
    %v1588 = vsub.f32 1.0, %v1457
    %v1589 = vsub.f32 1.0, %v1472
    %v1590 = vmul.f32 %v1586, %v1178
    %v1591 = vmul.f32 %v1587, %v1179
    %v1592 = vmul.f32 %v1588, %v1180
    %v1593 = vmul.f32 %v1589, %v1181
    %v1594 = vmul.f32 %v1427, %v1582
    %v1595 = vmul.f32 %v1442, %v1583
    %v1596 = vmul.f32 %v1457, %v1584
    %v1597 = vmul.f32 %v1472, %v1585
    %v1598 = vadd.f32 %v1590, %v1594
    %v1599 = vadd.f32 %v1591, %v1595
    %v1600 = vadd.f32 %v1592, %v1596
    %v1601 = vadd.f32 %v1593, %v1597
    %v1602 = vmul.f32 %v1598, %v757
    %v1603 = vmul.f32 %v1599, %v757
    %v1604 = vmul.f32 %v1600, %v757
    %v1605 = vmul.f32 %v1601, %v757
    %1606 = vadd.xlane.f32.xlu0 %v1602
    %v1607 = vpop.xlane.xlu0 %1606
    %1608 = vadd.xlane.f32.xlu0 %v1603
    %v1609 = vpop.xlane.xlu0 %1608
    %1610 = vadd.xlane.f32.xlu0 %v1604
    %v1611 = vpop.xlane.xlu0 %1610
    %1612 = vadd.xlane.f32.xlu0 %v1605
    %v1613 = vpop.xlane.xlu0 %1612
    %v1614 = vadd.f32 %v1607, %v771
    %v1615 = vadd.f32 %v1609, %v771
    %v1616 = vadd.f32 %v1611, %v771
    %v1617 = vadd.f32 %v1613, %v771
    %v1618 = vmul.f32 %v1598, %v777
    %v1619 = vmul.f32 %v1599, %v777
    %v1620 = vmul.f32 %v1600, %v777
    %v1621 = vmul.f32 %v1601, %v777
    %1622 = vadd.xlane.f32.xlu0 %v1618
    %v1623 = vpop.xlane.xlu0 %1622
    %1624 = vadd.xlane.f32.xlu0 %v1619
    %v1625 = vpop.xlane.xlu0 %1624
    %1626 = vadd.xlane.f32.xlu0 %v1620
    %v1627 = vpop.xlane.xlu0 %1626
    %1628 = vadd.xlane.f32.xlu0 %v1621
    %v1629 = vpop.xlane.xlu0 %1628
    %v1630 = vadd.f32 %v1623, %v771
    %v1631 = vadd.f32 %v1625, %v771
    %v1632 = vadd.f32 %v1627, %v771
    %v1633 = vadd.f32 %v1629, %v771
    %v1634 = vadd.f32 %v1214, %v1614
    %v1635 = vadd.f32 %v1215, %v1615
    %v1636 = vadd.f32 %v1216, %v1616
    %v1637 = vadd.f32 %v1217, %v1617
    %v1638 = vadd.f32 %v1218, %v1630
    %v1639 = vadd.f32 %v1219, %v1631
    %v1640 = vadd.f32 %v1220, %v1632
    %v1641 = vadd.f32 %v1221, %v1633
    %1643 = vset.pattern.permute.xlu0 0
    %1644 = vperm.xlu0 %1643, %v1634
    %v1645 = vpop.permute.xlu0 %1644
    %1648 = vset.pattern.permute.xlu0 0
    %1649 = vperm.xlu0 %1648, %v1635
    %v1650 = vpop.permute.xlu0 %1649
    %1653 = vset.pattern.permute.xlu0 0
    %1654 = vperm.xlu0 %1653, %v1636
    %v1655 = vpop.permute.xlu0 %1654
    %1658 = vset.pattern.permute.xlu0 0
    %1659 = vperm.xlu0 %1658, %v1637
    %v1660 = vpop.permute.xlu0 %1659
    %v1662 = vmul.f32 %v1645, %v168
    %v1663 = vmul.f32 %v1650, %v168
    %v1664 = vmul.f32 %v1655, %v168
    %v1665 = vmul.f32 %v1660, %v168
    %1667 = vset.pattern.permute.xlu0 1
    %1668 = vperm.xlu0 %1667, %v1638
    %v1669 = vpop.permute.xlu0 %1668
    %1672 = vset.pattern.permute.xlu0 1
    %1673 = vperm.xlu0 %1672, %v1639
    %v1674 = vpop.permute.xlu0 %1673
    %1677 = vset.pattern.permute.xlu0 1
    %1678 = vperm.xlu0 %1677, %v1640
    %v1679 = vpop.permute.xlu0 %1678
    %1682 = vset.pattern.permute.xlu0 1
    %1683 = vperm.xlu0 %1682, %v1641
    %v1684 = vpop.permute.xlu0 %1683
    %v1686 = vmul.f32 %v1669, %v170
    %v1687 = vmul.f32 %v1674, %v170
    %v1688 = vmul.f32 %v1679, %v170
    %v1689 = vmul.f32 %v1684, %v170
    %v1690 = vadd.f32 %v1662, %v1686
    %v1691 = vadd.f32 %v1663, %v1687
    %v1692 = vadd.f32 %v1664, %v1688
    %v1693 = vadd.f32 %v1665, %v1689
    %v1694 = vadd.f32 %v95, %v1690
    %v1695 = vadd.f32 %v96, %v1691
    %v1696 = vadd.f32 %v97, %v1692
    %v1697 = vadd.f32 %v98, %v1693
    %v1698 = vmax.f32 %v1694, 0.0
    %v1699 = vmax.f32 %v1695, 0.0
    %v1700 = vmax.f32 %v1696, 0.0
    %v1701 = vmax.f32 %v1697, 0.0
    %v1702 = vpack.c.bf16 %v1699, %v1698
    %v1703 = vpack.c.bf16 %v1701, %v1700
    %1704 = vmatpush.bf16.msra.mxu0 %v284
    %1705 = vmatpush.bf16.msra.mxu0 %v281
    %1706 = vmatpush.bf16.msra.mxu0 %v278
    %1707 = vmatpush.bf16.msra.mxu0 %v275
    %1708 = vmatpush.bf16.msra.mxu0 %v272
    %1709 = vmatpush.bf16.msra.mxu0 %v269
    %1710 = vmatpush.bf16.msra.mxu0 %v266
    %1711 = vmatpush.bf16.msra.mxu0 %v263
    %1712 = vmatmul.bf16.gmra.mxu0 %v1702
    %v1713 = vpop.f32.mrf.mxu0
    %v1714 = vadd.f32 0.0, %v1713
    %v1715 = vpop.f32.mrf.mxu0
    %v1716 = vadd.f32 0.0, %v1715
    %1717 = vmatmul.bf16.gmra.mxu0 %v1703
    %v1718 = vpop.f32.mrf.mxu0
    %v1719 = vadd.f32 0.0, %v1718
    %v1720 = vpop.f32.mrf.mxu0
    %v1721 = vadd.f32 0.0, %v1720
    %1722 = vdwg.mxu0
    %1723 = vmatpush.bf16.msra.mxu0 %v285
    %1724 = vmatpush.bf16.msra.mxu0 %v282
    %1725 = vmatpush.bf16.msra.mxu0 %v279
    %1726 = vmatpush.bf16.msra.mxu0 %v276
    %1727 = vmatpush.bf16.msra.mxu0 %v273
    %1728 = vmatpush.bf16.msra.mxu0 %v270
    %1729 = vmatpush.bf16.msra.mxu0 %v267
    %1730 = vmatpush.bf16.msra.mxu0 %v264
    %1731 = vmatmul.bf16.gmra.mxu0 %v1702
    %v1732 = vpop.f32.mrf.mxu0
    %v1733 = vadd.f32 0.0, %v1732
    %v1734 = vpop.f32.mrf.mxu0
    %v1735 = vadd.f32 0.0, %v1734
    %1736 = vmatmul.bf16.gmra.mxu0 %v1703
    %v1737 = vpop.f32.mrf.mxu0
    %v1738 = vadd.f32 0.0, %v1737
    %v1739 = vpop.f32.mrf.mxu0
    %v1740 = vadd.f32 0.0, %v1739
    %1741 = vdwg.mxu0
    %1742 = vmatpush.bf16.msra.mxu0 %v286
    %1743 = vmatpush.bf16.msra.mxu0 %v283
    %1744 = vmatpush.bf16.msra.mxu0 %v280
    %1745 = vmatpush.bf16.msra.mxu0 %v277
    %1746 = vmatpush.bf16.msra.mxu0 %v274
    %1747 = vmatpush.bf16.msra.mxu0 %v271
    %1748 = vmatpush.bf16.msra.mxu0 %v268
    %1749 = vmatpush.bf16.msra.mxu0 %v265
    %1750 = vmatmul.bf16.gmra.mxu0 %v1702
    %v1751 = vpop.f32.mrf.mxu0
    %v1752 = vadd.f32 0.0, %v1751
    %v1753 = vpop.f32.mrf.mxu0
    %v1754 = vadd.f32 0.0, %v1753
    %1755 = vmatmul.bf16.gmra.mxu0 %v1703
    %v1756 = vpop.f32.mrf.mxu0
    %v1757 = vadd.f32 0.0, %v1756
    %v1758 = vpop.f32.mrf.mxu0
    %v1759 = vadd.f32 0.0, %v1758
    %1760 = vdwg.mxu0
    %v1761 = vadd.f32 %v83, %v1714
    %v1762 = vadd.f32 %v84, %v1733
    %v1763 = vadd.f32 %v85, %v1752
    %v1764 = vadd.f32 %v86, %v1716
    %v1765 = vadd.f32 %v87, %v1735
    %v1766 = vadd.f32 %v88, %v1754
    %v1767 = vadd.f32 %v89, %v1719
    %v1768 = vadd.f32 %v90, %v1738
    %v1769 = vadd.f32 %v91, %v1757
    %v1770 = vadd.f32 %v92, %v1721
    %v1771 = vadd.f32 %v93, %v1740
    %v1772 = vadd.f32 %v94, %v1759
    %v1773 = vpack.c.bf16 %v1599, %v1598
    %v1774 = vpack.c.bf16 %v1601, %v1600
    %1775 = vmatpush.bf16.msra.mxu0 %v444
    %1776 = vmatpush.bf16.msra.mxu0 %v442
    %1777 = vmatpush.bf16.msra.mxu0 %v440
    %1778 = vmatpush.bf16.msra.mxu0 %v438
    %1779 = vmatpush.bf16.msra.mxu0 %v436
    %1780 = vmatpush.bf16.msra.mxu0 %v434
    %1781 = vmatpush.bf16.msra.mxu0 %v432
    %1782 = vmatpush.bf16.msra.mxu0 %v430
    %1783 = vmatmul.bf16.gmra.mxu0 %v1773
    %v1784 = vpop.f32.mrf.mxu0
    %v1785 = vadd.f32 0.0, %v1784
    %v1786 = vpop.f32.mrf.mxu0
    %v1787 = vadd.f32 0.0, %v1786
    %1788 = vmatmul.bf16.gmra.mxu0 %v1774
    %v1789 = vpop.f32.mrf.mxu0
    %v1790 = vadd.f32 0.0, %v1789
    %v1791 = vpop.f32.mrf.mxu0
    %v1792 = vadd.f32 0.0, %v1791
    %1793 = vdwg.mxu0
    %1794 = vmatpush.bf16.msra.mxu0 %v445
    %1795 = vmatpush.bf16.msra.mxu0 %v443
    %1796 = vmatpush.bf16.msra.mxu0 %v441
    %1797 = vmatpush.bf16.msra.mxu0 %v439
    %1798 = vmatpush.bf16.msra.mxu0 %v437
    %1799 = vmatpush.bf16.msra.mxu0 %v435
    %1800 = vmatpush.bf16.msra.mxu0 %v433
    %1801 = vmatpush.bf16.msra.mxu0 %v431
    %1802 = vmatmul.bf16.gmra.mxu0 %v1773
    %v1803 = vpop.f32.mrf.mxu0
    %v1804 = vadd.f32 0.0, %v1803
    %v1805 = vpop.f32.mrf.mxu0
    %v1806 = vadd.f32 0.0, %v1805
    %1807 = vmatmul.bf16.gmra.mxu0 %v1774
    %v1808 = vpop.f32.mrf.mxu0
    %v1809 = vadd.f32 0.0, %v1808
    %v1810 = vpop.f32.mrf.mxu0
    %v1811 = vadd.f32 0.0, %v1810
    %1812 = vdwg.mxu0
    %v1813 = vadd.f32 %v1761, %v1785
    %v1814 = vadd.f32 %v1764, %v1787
    %v1815 = vadd.f32 %v1767, %v1790
    %v1816 = vadd.f32 %v1770, %v1792
    %v1817 = vxor.u32 %v1813, 2147483648
    %v1818 = vxor.u32 %v1814, 2147483648
    %v1819 = vxor.u32 %v1815, 2147483648
    %v1820 = vxor.u32 %v1816, 2147483648
    %v1821 = vmul.f32 %v1817, 1.442695
    %v1822 = vpow.pop %v1821
    %v1823 = vmul.f32 %v1818, 1.442695
    %v1824 = vpow.pop %v1823
    %v1825 = vmul.f32 %v1819, 1.442695
    %v1826 = vpow.pop %v1825
    %v1827 = vmul.f32 %v1820, 1.442695
    %v1828 = vpow.pop %v1827
    %v1829 = vadd.f32 %v1822, 1.0
    %v1830 = vadd.f32 %v1824, 1.0
    %v1831 = vadd.f32 %v1826, 1.0
    %v1832 = vadd.f32 %v1828, 1.0
    %v1833 = vrcp.pop %v1829
    %v1834 = vmul.f32 %v1829, %v1833
    %v1835 = vsub.f32 1.0, %v1834
    %v1836 = vmul.f32 %v1833, %v1835
    %v1837 = vadd.f32 %v1833, %v1836
    %vm1838 = vweird.f32 %v1829
    %vm1839 = vweird.f32 %v1833
    %vm1840 = vmor %vm1838, %vm1839
    %v1841 = vsel %vm1840, %v1833, %v1837
    %v1842 = vand.u32 2147483647, %v1829
    %vm1843 = vcmp.eq.f32.partialorder %v1842, 8.507059e+37
    %v1844 = vand.u32 %v1829, 2147483648
    %v1845 = vor.u32 1.1754944e-38, %v1844
    %v1846 = vsel %vm1843, %v1845, %v1841
    %v1847 = vmul.f32 1.0, %v1846
    %v1848 = vrcp.pop %v1830
    %v1849 = vmul.f32 %v1830, %v1848
    %v1850 = vsub.f32 1.0, %v1849
    %v1851 = vmul.f32 %v1848, %v1850
    %v1852 = vadd.f32 %v1848, %v1851
    %vm1853 = vweird.f32 %v1830
    %vm1854 = vweird.f32 %v1848
    %vm1855 = vmor %vm1853, %vm1854
    %v1856 = vsel %vm1855, %v1848, %v1852
    %v1857 = vand.u32 2147483647, %v1830
    %vm1858 = vcmp.eq.f32.partialorder %v1857, 8.507059e+37
    %v1859 = vand.u32 %v1830, 2147483648
    %v1860 = vor.u32 1.1754944e-38, %v1859
    %v1861 = vsel %vm1858, %v1860, %v1856
    %v1862 = vmul.f32 1.0, %v1861
    %v1863 = vrcp.pop %v1831
    %v1864 = vmul.f32 %v1831, %v1863
    %v1865 = vsub.f32 1.0, %v1864
    %v1866 = vmul.f32 %v1863, %v1865
    %v1867 = vadd.f32 %v1863, %v1866
    %vm1868 = vweird.f32 %v1831
    %vm1869 = vweird.f32 %v1863
    %vm1870 = vmor %vm1868, %vm1869
    %v1871 = vsel %vm1870, %v1863, %v1867
    %v1872 = vand.u32 2147483647, %v1831
    %vm1873 = vcmp.eq.f32.partialorder %v1872, 8.507059e+37
    %v1874 = vand.u32 %v1831, 2147483648
    %v1875 = vor.u32 1.1754944e-38, %v1874
    %v1876 = vsel %vm1873, %v1875, %v1871
    %v1877 = vmul.f32 1.0, %v1876
    %v1878 = vrcp.pop %v1832
    %v1879 = vmul.f32 %v1832, %v1878
    %v1880 = vsub.f32 1.0, %v1879
    %v1881 = vmul.f32 %v1878, %v1880
    %v1882 = vadd.f32 %v1878, %v1881
    %vm1883 = vweird.f32 %v1832
    %vm1884 = vweird.f32 %v1878
    %vm1885 = vmor %vm1883, %vm1884
    %v1886 = vsel %vm1885, %v1878, %v1882
    %v1887 = vand.u32 2147483647, %v1832
    %vm1888 = vcmp.eq.f32.partialorder %v1887, 8.507059e+37
    %v1889 = vand.u32 %v1832, 2147483648
    %v1890 = vor.u32 1.1754944e-38, %v1889
    %v1891 = vsel %vm1888, %v1890, %v1886
    %v1892 = vmul.f32 1.0, %v1891
    %v1893 = vadd.f32 %v1762, %v1804
    %v1894 = vadd.f32 %v1765, %v1806
    %v1895 = vadd.f32 %v1768, %v1809
    %v1896 = vadd.f32 %v1771, %v1811
    %v1897 = vxor.u32 %v1893, 2147483648
    %v1898 = vxor.u32 %v1894, 2147483648
    %v1899 = vxor.u32 %v1895, 2147483648
    %v1900 = vxor.u32 %v1896, 2147483648
    %v1901 = vmul.f32 %v1897, 1.442695
    %v1902 = vpow.pop %v1901
    %v1903 = vmul.f32 %v1898, 1.442695
    %v1904 = vpow.pop %v1903
    %v1905 = vmul.f32 %v1899, 1.442695
    %v1906 = vpow.pop %v1905
    %v1907 = vmul.f32 %v1900, 1.442695
    %v1908 = vpow.pop %v1907
    %v1909 = vadd.f32 %v1902, 1.0
    %v1910 = vadd.f32 %v1904, 1.0
    %v1911 = vadd.f32 %v1906, 1.0
    %v1912 = vadd.f32 %v1908, 1.0
    %v1913 = vrcp.pop %v1909
    %v1914 = vmul.f32 %v1909, %v1913
    %v1915 = vsub.f32 1.0, %v1914
    %v1916 = vmul.f32 %v1913, %v1915
    %v1917 = vadd.f32 %v1913, %v1916
    %vm1918 = vweird.f32 %v1909
    %vm1919 = vweird.f32 %v1913
    %vm1920 = vmor %vm1918, %vm1919
    %v1921 = vsel %vm1920, %v1913, %v1917
    %v1922 = vand.u32 2147483647, %v1909
    %vm1923 = vcmp.eq.f32.partialorder %v1922, 8.507059e+37
    %v1924 = vand.u32 %v1909, 2147483648
    %v1925 = vor.u32 1.1754944e-38, %v1924
    %v1926 = vsel %vm1923, %v1925, %v1921
    %v1927 = vmul.f32 1.0, %v1926
    %v1928 = vrcp.pop %v1910
    %v1929 = vmul.f32 %v1910, %v1928
    %v1930 = vsub.f32 1.0, %v1929
    %v1931 = vmul.f32 %v1928, %v1930
    %v1932 = vadd.f32 %v1928, %v1931
    %vm1933 = vweird.f32 %v1910
    %vm1934 = vweird.f32 %v1928
    %vm1935 = vmor %vm1933, %vm1934
    %v1936 = vsel %vm1935, %v1928, %v1932
    %v1937 = vand.u32 2147483647, %v1910
    %vm1938 = vcmp.eq.f32.partialorder %v1937, 8.507059e+37
    %v1939 = vand.u32 %v1910, 2147483648
    %v1940 = vor.u32 1.1754944e-38, %v1939
    %v1941 = vsel %vm1938, %v1940, %v1936
    %v1942 = vmul.f32 1.0, %v1941
    %v1943 = vrcp.pop %v1911
    %v1944 = vmul.f32 %v1911, %v1943
    %v1945 = vsub.f32 1.0, %v1944
    %v1946 = vmul.f32 %v1943, %v1945
    %v1947 = vadd.f32 %v1943, %v1946
    %vm1948 = vweird.f32 %v1911
    %vm1949 = vweird.f32 %v1943
    %vm1950 = vmor %vm1948, %vm1949
    %v1951 = vsel %vm1950, %v1943, %v1947
    %v1952 = vand.u32 2147483647, %v1911
    %vm1953 = vcmp.eq.f32.partialorder %v1952, 8.507059e+37
    %v1954 = vand.u32 %v1911, 2147483648
    %v1955 = vor.u32 1.1754944e-38, %v1954
    %v1956 = vsel %vm1953, %v1955, %v1951
    %v1957 = vmul.f32 1.0, %v1956
    %v1958 = vrcp.pop %v1912
    %v1959 = vmul.f32 %v1912, %v1958
    %v1960 = vsub.f32 1.0, %v1959
    %v1961 = vmul.f32 %v1958, %v1960
    %v1962 = vadd.f32 %v1958, %v1961
    %vm1963 = vweird.f32 %v1912
    %vm1964 = vweird.f32 %v1958
    %vm1965 = vmor %vm1963, %vm1964
    %v1966 = vsel %vm1965, %v1958, %v1962
    %v1967 = vand.u32 2147483647, %v1912
    %vm1968 = vcmp.eq.f32.partialorder %v1967, 8.507059e+37
    %v1969 = vand.u32 %v1912, 2147483648
    %v1970 = vor.u32 1.1754944e-38, %v1969
    %v1971 = vsel %vm1968, %v1970, %v1966
    %v1972 = vmul.f32 1.0, %v1971
    %v1973 = vmul.f32 %v1927, %v1598
    %v1974 = vmul.f32 %v1942, %v1599
    %v1975 = vmul.f32 %v1957, %v1600
    %v1976 = vmul.f32 %v1972, %v1601
    %v1977 = vpack.c.bf16 %v1974, %v1973
    %v1978 = vpack.c.bf16 %v1976, %v1975
    %1979 = vmatpush.bf16.msra.mxu0 %v705
    %1980 = vmatpush.bf16.msra.mxu0 %v704
    %1981 = vmatpush.bf16.msra.mxu0 %v703
    %1982 = vmatpush.bf16.msra.mxu0 %v702
    %1983 = vmatpush.bf16.msra.mxu0 %v701
    %1984 = vmatpush.bf16.msra.mxu0 %v700
    %1985 = vmatpush.bf16.msra.mxu0 %v699
    %1986 = vmatpush.bf16.msra.mxu0 %v698
    %1987 = vmatmul.bf16.gmra.mxu0 %v1977
    %v1988 = vpop.f32.mrf.mxu0
    %v1989 = vadd.f32 0.0, %v1988
    %v1990 = vpop.f32.mrf.mxu0
    %v1991 = vadd.f32 0.0, %v1990
    %1992 = vmatmul.bf16.gmra.mxu0 %v1978
    %v1993 = vpop.f32.mrf.mxu0
    %v1994 = vadd.f32 0.0, %v1993
    %v1995 = vpop.f32.mrf.mxu0
    %v1996 = vadd.f32 0.0, %v1995
    %1997 = vdwg.mxu0
    %v1998 = vadd.f32 %v1763, %v1989
    %v1999 = vadd.f32 %v1766, %v1991
    %v2000 = vadd.f32 %v1769, %v1994
    %v2001 = vadd.f32 %v1772, %v1996
    %v2002 = vtanh.pop %v1998
    %v2003 = vtanh.pop %v1999
    %v2004 = vtanh.pop %v2000
    %v2005 = vtanh.pop %v2001
    %v2006 = vsub.f32 1.0, %v1847
    %v2007 = vsub.f32 1.0, %v1862
    %v2008 = vsub.f32 1.0, %v1877
    %v2009 = vsub.f32 1.0, %v1892
    %v2010 = vmul.f32 %v2006, %v1598
    %v2011 = vmul.f32 %v2007, %v1599
    %v2012 = vmul.f32 %v2008, %v1600
    %v2013 = vmul.f32 %v2009, %v1601
    %v2014 = vmul.f32 %v1847, %v2002
    %v2015 = vmul.f32 %v1862, %v2003
    %v2016 = vmul.f32 %v1877, %v2004
    %v2017 = vmul.f32 %v1892, %v2005
    %v2018 = vadd.f32 %v2010, %v2014
    %v2019 = vadd.f32 %v2011, %v2015
    %v2020 = vadd.f32 %v2012, %v2016
    %v2021 = vadd.f32 %v2013, %v2017
    %v2022 = vmul.f32 %v2018, %v757
    %v2023 = vmul.f32 %v2019, %v757
    %v2024 = vmul.f32 %v2020, %v757
    %v2025 = vmul.f32 %v2021, %v757
    %2026 = vadd.xlane.f32.xlu0 %v2022
    %v2027 = vpop.xlane.xlu0 %2026
    %2028 = vadd.xlane.f32.xlu0 %v2023
    %v2029 = vpop.xlane.xlu0 %2028
    %2030 = vadd.xlane.f32.xlu0 %v2024
    %v2031 = vpop.xlane.xlu0 %2030
    %2032 = vadd.xlane.f32.xlu0 %v2025
    %v2033 = vpop.xlane.xlu0 %2032
    %v2034 = vadd.f32 %v2027, %v771
    %v2035 = vadd.f32 %v2029, %v771
    %v2036 = vadd.f32 %v2031, %v771
    %v2037 = vadd.f32 %v2033, %v771
    %v2038 = vmul.f32 %v2018, %v777
    %v2039 = vmul.f32 %v2019, %v777
    %v2040 = vmul.f32 %v2020, %v777
    %v2041 = vmul.f32 %v2021, %v777
    %2042 = vadd.xlane.f32.xlu0 %v2038
    %v2043 = vpop.xlane.xlu0 %2042
    %2044 = vadd.xlane.f32.xlu0 %v2039
    %v2045 = vpop.xlane.xlu0 %2044
    %2046 = vadd.xlane.f32.xlu0 %v2040
    %v2047 = vpop.xlane.xlu0 %2046
    %2048 = vadd.xlane.f32.xlu0 %v2041
    %v2049 = vpop.xlane.xlu0 %2048
    %v2050 = vadd.f32 %v2043, %v771
    %v2051 = vadd.f32 %v2045, %v771
    %v2052 = vadd.f32 %v2047, %v771
    %v2053 = vadd.f32 %v2049, %v771
    %v2054 = vadd.f32 %v1634, %v2034
    %v2055 = vadd.f32 %v1635, %v2035
    %v2056 = vadd.f32 %v1636, %v2036
    %v2057 = vadd.f32 %v1637, %v2037
    %v2058 = vadd.f32 %v1638, %v2050
    %v2059 = vadd.f32 %v1639, %v2051
    %v2060 = vadd.f32 %v1640, %v2052
    %v2061 = vadd.f32 %v1641, %v2053
    %2063 = vset.pattern.permute.xlu0 0
    %2064 = vperm.xlu0 %2063, %v2054
    %v2065 = vpop.permute.xlu0 %2064
    %2068 = vset.pattern.permute.xlu0 0
    %2069 = vperm.xlu0 %2068, %v2055
    %v2070 = vpop.permute.xlu0 %2069
    %2073 = vset.pattern.permute.xlu0 0
    %2074 = vperm.xlu0 %2073, %v2056
    %v2075 = vpop.permute.xlu0 %2074
    %2078 = vset.pattern.permute.xlu0 0
    %2079 = vperm.xlu0 %2078, %v2057
    %v2080 = vpop.permute.xlu0 %2079
    %v2082 = vmul.f32 %v2065, %v168
    %v2083 = vmul.f32 %v2070, %v168
    %v2084 = vmul.f32 %v2075, %v168
    %v2085 = vmul.f32 %v2080, %v168
    %2087 = vset.pattern.permute.xlu0 1
    %2088 = vperm.xlu0 %2087, %v2058
    %v2089 = vpop.permute.xlu0 %2088
    %2092 = vset.pattern.permute.xlu0 1
    %2093 = vperm.xlu0 %2092, %v2059
    %v2094 = vpop.permute.xlu0 %2093
    %2097 = vset.pattern.permute.xlu0 1
    %2098 = vperm.xlu0 %2097, %v2060
    %v2099 = vpop.permute.xlu0 %2098
    %2102 = vset.pattern.permute.xlu0 1
    %2103 = vperm.xlu0 %2102, %v2061
    %v2104 = vpop.permute.xlu0 %2103
    %v2106 = vmul.f32 %v2089, %v170
    %v2107 = vmul.f32 %v2094, %v170
    %v2108 = vmul.f32 %v2099, %v170
    %v2109 = vmul.f32 %v2104, %v170
    %v2110 = vadd.f32 %v2082, %v2106
    %v2111 = vadd.f32 %v2083, %v2107
    %v2112 = vadd.f32 %v2084, %v2108
    %v2113 = vadd.f32 %v2085, %v2109
    %v2114 = vadd.f32 %v95, %v2110
    %v2115 = vadd.f32 %v96, %v2111
    %v2116 = vadd.f32 %v97, %v2112
    %v2117 = vadd.f32 %v98, %v2113
    %v2118 = vmax.f32 %v2114, 0.0
    %v2119 = vmax.f32 %v2115, 0.0
    %v2120 = vmax.f32 %v2116, 0.0
    %v2121 = vmax.f32 %v2117, 0.0
    %v2122 = vpack.c.bf16 %v2119, %v2118
    %v2123 = vpack.c.bf16 %v2121, %v2120
    %2124 = vmatpush.bf16.msra.mxu0 %v284
    %2125 = vmatpush.bf16.msra.mxu0 %v281
    %2126 = vmatpush.bf16.msra.mxu0 %v278
    %2127 = vmatpush.bf16.msra.mxu0 %v275
    %2128 = vmatpush.bf16.msra.mxu0 %v272
    %2129 = vmatpush.bf16.msra.mxu0 %v269
    %2130 = vmatpush.bf16.msra.mxu0 %v266
    %2131 = vmatpush.bf16.msra.mxu0 %v263
    %2132 = vmatmul.bf16.gmra.mxu0 %v2122
    %v2133 = vpop.f32.mrf.mxu0
    %v2134 = vadd.f32 0.0, %v2133
    %v2135 = vpop.f32.mrf.mxu0
    %v2136 = vadd.f32 0.0, %v2135
    %2137 = vmatmul.bf16.gmra.mxu0 %v2123
    %v2138 = vpop.f32.mrf.mxu0
    %v2139 = vadd.f32 0.0, %v2138
    %v2140 = vpop.f32.mrf.mxu0
    %v2141 = vadd.f32 0.0, %v2140
    %2142 = vdwg.mxu0
    %2143 = vmatpush.bf16.msra.mxu0 %v285
    %2144 = vmatpush.bf16.msra.mxu0 %v282
    %2145 = vmatpush.bf16.msra.mxu0 %v279
    %2146 = vmatpush.bf16.msra.mxu0 %v276
    %2147 = vmatpush.bf16.msra.mxu0 %v273
    %2148 = vmatpush.bf16.msra.mxu0 %v270
    %2149 = vmatpush.bf16.msra.mxu0 %v267
    %2150 = vmatpush.bf16.msra.mxu0 %v264
    %2151 = vmatmul.bf16.gmra.mxu0 %v2122
    %v2152 = vpop.f32.mrf.mxu0
    %v2153 = vadd.f32 0.0, %v2152
    %v2154 = vpop.f32.mrf.mxu0
    %v2155 = vadd.f32 0.0, %v2154
    %2156 = vmatmul.bf16.gmra.mxu0 %v2123
    %v2157 = vpop.f32.mrf.mxu0
    %v2158 = vadd.f32 0.0, %v2157
    %v2159 = vpop.f32.mrf.mxu0
    %v2160 = vadd.f32 0.0, %v2159
    %2161 = vdwg.mxu0
    %2162 = vmatpush.bf16.msra.mxu0 %v286
    %2163 = vmatpush.bf16.msra.mxu0 %v283
    %2164 = vmatpush.bf16.msra.mxu0 %v280
    %2165 = vmatpush.bf16.msra.mxu0 %v277
    %2166 = vmatpush.bf16.msra.mxu0 %v274
    %2167 = vmatpush.bf16.msra.mxu0 %v271
    %2168 = vmatpush.bf16.msra.mxu0 %v268
    %2169 = vmatpush.bf16.msra.mxu0 %v265
    %2170 = vmatmul.bf16.gmra.mxu0 %v2122
    %v2171 = vpop.f32.mrf.mxu0
    %v2172 = vadd.f32 0.0, %v2171
    %v2173 = vpop.f32.mrf.mxu0
    %v2174 = vadd.f32 0.0, %v2173
    %2175 = vmatmul.bf16.gmra.mxu0 %v2123
    %v2176 = vpop.f32.mrf.mxu0
    %v2177 = vadd.f32 0.0, %v2176
    %v2178 = vpop.f32.mrf.mxu0
    %v2179 = vadd.f32 0.0, %v2178
    %2180 = vdwg.mxu0
    %v2181 = vadd.f32 %v83, %v2134
    %v2182 = vadd.f32 %v84, %v2153
    %v2183 = vadd.f32 %v85, %v2172
    %v2184 = vadd.f32 %v86, %v2136
    %v2185 = vadd.f32 %v87, %v2155
    %v2186 = vadd.f32 %v88, %v2174
    %v2187 = vadd.f32 %v89, %v2139
    %v2188 = vadd.f32 %v90, %v2158
    %v2189 = vadd.f32 %v91, %v2177
    %v2190 = vadd.f32 %v92, %v2141
    %v2191 = vadd.f32 %v93, %v2160
    %v2192 = vadd.f32 %v94, %v2179
    %v2193 = vpack.c.bf16 %v2019, %v2018
    %v2194 = vpack.c.bf16 %v2021, %v2020
    %2195 = vmatpush.bf16.msra.mxu0 %v444
    %2196 = vmatpush.bf16.msra.mxu0 %v442
    %2197 = vmatpush.bf16.msra.mxu0 %v440
    %2198 = vmatpush.bf16.msra.mxu0 %v438
    %2199 = vmatpush.bf16.msra.mxu0 %v436
    %2200 = vmatpush.bf16.msra.mxu0 %v434
    %2201 = vmatpush.bf16.msra.mxu0 %v432
    %2202 = vmatpush.bf16.msra.mxu0 %v430
    %2203 = vmatmul.bf16.gmra.mxu0 %v2193
    %v2204 = vpop.f32.mrf.mxu0
    %v2205 = vadd.f32 0.0, %v2204
    %v2206 = vpop.f32.mrf.mxu0
    %v2207 = vadd.f32 0.0, %v2206
    %2208 = vmatmul.bf16.gmra.mxu0 %v2194
    %v2209 = vpop.f32.mrf.mxu0
    %v2210 = vadd.f32 0.0, %v2209
    %v2211 = vpop.f32.mrf.mxu0
    %v2212 = vadd.f32 0.0, %v2211
    %2213 = vdwg.mxu0
    %2214 = vmatpush.bf16.msra.mxu0 %v445
    %2215 = vmatpush.bf16.msra.mxu0 %v443
    %2216 = vmatpush.bf16.msra.mxu0 %v441
    %2217 = vmatpush.bf16.msra.mxu0 %v439
    %2218 = vmatpush.bf16.msra.mxu0 %v437
    %2219 = vmatpush.bf16.msra.mxu0 %v435
    %2220 = vmatpush.bf16.msra.mxu0 %v433
    %2221 = vmatpush.bf16.msra.mxu0 %v431
    %2222 = vmatmul.bf16.gmra.mxu0 %v2193
    %v2223 = vpop.f32.mrf.mxu0
    %v2224 = vadd.f32 0.0, %v2223
    %v2225 = vpop.f32.mrf.mxu0
    %v2226 = vadd.f32 0.0, %v2225
    %2227 = vmatmul.bf16.gmra.mxu0 %v2194
    %v2228 = vpop.f32.mrf.mxu0
    %v2229 = vadd.f32 0.0, %v2228
    %v2230 = vpop.f32.mrf.mxu0
    %v2231 = vadd.f32 0.0, %v2230
    %2232 = vdwg.mxu0
    %v2233 = vadd.f32 %v2181, %v2205
    %v2234 = vadd.f32 %v2184, %v2207
    %v2235 = vadd.f32 %v2187, %v2210
    %v2236 = vadd.f32 %v2190, %v2212
    %v2237 = vxor.u32 %v2233, 2147483648
    %v2238 = vxor.u32 %v2234, 2147483648
    %v2239 = vxor.u32 %v2235, 2147483648
    %v2240 = vxor.u32 %v2236, 2147483648
    %v2241 = vmul.f32 %v2237, 1.442695
    %v2242 = vpow.pop %v2241
    %v2243 = vmul.f32 %v2238, 1.442695
    %v2244 = vpow.pop %v2243
    %v2245 = vmul.f32 %v2239, 1.442695
    %v2246 = vpow.pop %v2245
    %v2247 = vmul.f32 %v2240, 1.442695
    %v2248 = vpow.pop %v2247
    %v2249 = vadd.f32 %v2242, 1.0
    %v2250 = vadd.f32 %v2244, 1.0
    %v2251 = vadd.f32 %v2246, 1.0
    %v2252 = vadd.f32 %v2248, 1.0
    %v2253 = vrcp.pop %v2249
    %v2254 = vmul.f32 %v2249, %v2253
    %v2255 = vsub.f32 1.0, %v2254
    %v2256 = vmul.f32 %v2253, %v2255
    %v2257 = vadd.f32 %v2253, %v2256
    %vm2258 = vweird.f32 %v2249
    %vm2259 = vweird.f32 %v2253
    %vm2260 = vmor %vm2258, %vm2259
    %v2261 = vsel %vm2260, %v2253, %v2257
    %v2262 = vand.u32 2147483647, %v2249
    %vm2263 = vcmp.eq.f32.partialorder %v2262, 8.507059e+37
    %v2264 = vand.u32 %v2249, 2147483648
    %v2265 = vor.u32 1.1754944e-38, %v2264
    %v2266 = vsel %vm2263, %v2265, %v2261
    %v2267 = vmul.f32 1.0, %v2266
    %v2268 = vrcp.pop %v2250
    %v2269 = vmul.f32 %v2250, %v2268
    %v2270 = vsub.f32 1.0, %v2269
    %v2271 = vmul.f32 %v2268, %v2270
    %v2272 = vadd.f32 %v2268, %v2271
    %vm2273 = vweird.f32 %v2250
    %vm2274 = vweird.f32 %v2268
    %vm2275 = vmor %vm2273, %vm2274
    %v2276 = vsel %vm2275, %v2268, %v2272
    %v2277 = vand.u32 2147483647, %v2250
    %vm2278 = vcmp.eq.f32.partialorder %v2277, 8.507059e+37
    %v2279 = vand.u32 %v2250, 2147483648
    %v2280 = vor.u32 1.1754944e-38, %v2279
    %v2281 = vsel %vm2278, %v2280, %v2276
    %v2282 = vmul.f32 1.0, %v2281
    %v2283 = vrcp.pop %v2251
    %v2284 = vmul.f32 %v2251, %v2283
    %v2285 = vsub.f32 1.0, %v2284
    %v2286 = vmul.f32 %v2283, %v2285
    %v2287 = vadd.f32 %v2283, %v2286
    %vm2288 = vweird.f32 %v2251
    %vm2289 = vweird.f32 %v2283
    %vm2290 = vmor %vm2288, %vm2289
    %v2291 = vsel %vm2290, %v2283, %v2287
    %v2292 = vand.u32 2147483647, %v2251
    %vm2293 = vcmp.eq.f32.partialorder %v2292, 8.507059e+37
    %v2294 = vand.u32 %v2251, 2147483648
    %v2295 = vor.u32 1.1754944e-38, %v2294
    %v2296 = vsel %vm2293, %v2295, %v2291
    %v2297 = vmul.f32 1.0, %v2296
    %v2298 = vrcp.pop %v2252
    %v2299 = vmul.f32 %v2252, %v2298
    %v2300 = vsub.f32 1.0, %v2299
    %v2301 = vmul.f32 %v2298, %v2300
    %v2302 = vadd.f32 %v2298, %v2301
    %vm2303 = vweird.f32 %v2252
    %vm2304 = vweird.f32 %v2298
    %vm2305 = vmor %vm2303, %vm2304
    %v2306 = vsel %vm2305, %v2298, %v2302
    %v2307 = vand.u32 2147483647, %v2252
    %vm2308 = vcmp.eq.f32.partialorder %v2307, 8.507059e+37
    %v2309 = vand.u32 %v2252, 2147483648
    %v2310 = vor.u32 1.1754944e-38, %v2309
    %v2311 = vsel %vm2308, %v2310, %v2306
    %v2312 = vmul.f32 1.0, %v2311
    %v2313 = vadd.f32 %v2182, %v2224
    %v2314 = vadd.f32 %v2185, %v2226
    %v2315 = vadd.f32 %v2188, %v2229
    %v2316 = vadd.f32 %v2191, %v2231
    %v2317 = vxor.u32 %v2313, 2147483648
    %v2318 = vxor.u32 %v2314, 2147483648
    %v2319 = vxor.u32 %v2315, 2147483648
    %v2320 = vxor.u32 %v2316, 2147483648
    %v2321 = vmul.f32 %v2317, 1.442695
    %v2322 = vpow.pop %v2321
    %v2323 = vmul.f32 %v2318, 1.442695
    %v2324 = vpow.pop %v2323
    %v2325 = vmul.f32 %v2319, 1.442695
    %v2326 = vpow.pop %v2325
    %v2327 = vmul.f32 %v2320, 1.442695
    %v2328 = vpow.pop %v2327
    %v2329 = vadd.f32 %v2322, 1.0
    %v2330 = vadd.f32 %v2324, 1.0
    %v2331 = vadd.f32 %v2326, 1.0
    %v2332 = vadd.f32 %v2328, 1.0
    %v2333 = vrcp.pop %v2329
    %v2334 = vmul.f32 %v2329, %v2333
    %v2335 = vsub.f32 1.0, %v2334
    %v2336 = vmul.f32 %v2333, %v2335
    %v2337 = vadd.f32 %v2333, %v2336
    %vm2338 = vweird.f32 %v2329
    %vm2339 = vweird.f32 %v2333
    %vm2340 = vmor %vm2338, %vm2339
    %v2341 = vsel %vm2340, %v2333, %v2337
    %v2342 = vand.u32 2147483647, %v2329
    %vm2343 = vcmp.eq.f32.partialorder %v2342, 8.507059e+37
    %v2344 = vand.u32 %v2329, 2147483648
    %v2345 = vor.u32 1.1754944e-38, %v2344
    %v2346 = vsel %vm2343, %v2345, %v2341
    %v2347 = vmul.f32 1.0, %v2346
    %v2348 = vrcp.pop %v2330
    %v2349 = vmul.f32 %v2330, %v2348
    %v2350 = vsub.f32 1.0, %v2349
    %v2351 = vmul.f32 %v2348, %v2350
    %v2352 = vadd.f32 %v2348, %v2351
    %vm2353 = vweird.f32 %v2330
    %vm2354 = vweird.f32 %v2348
    %vm2355 = vmor %vm2353, %vm2354
    %v2356 = vsel %vm2355, %v2348, %v2352
    %v2357 = vand.u32 2147483647, %v2330
    %vm2358 = vcmp.eq.f32.partialorder %v2357, 8.507059e+37
    %v2359 = vand.u32 %v2330, 2147483648
    %v2360 = vor.u32 1.1754944e-38, %v2359
    %v2361 = vsel %vm2358, %v2360, %v2356
    %v2362 = vmul.f32 1.0, %v2361
    %v2363 = vrcp.pop %v2331
    %v2364 = vmul.f32 %v2331, %v2363
    %v2365 = vsub.f32 1.0, %v2364
    %v2366 = vmul.f32 %v2363, %v2365
    %v2367 = vadd.f32 %v2363, %v2366
    %vm2368 = vweird.f32 %v2331
    %vm2369 = vweird.f32 %v2363
    %vm2370 = vmor %vm2368, %vm2369
    %v2371 = vsel %vm2370, %v2363, %v2367
    %v2372 = vand.u32 2147483647, %v2331
    %vm2373 = vcmp.eq.f32.partialorder %v2372, 8.507059e+37
    %v2374 = vand.u32 %v2331, 2147483648
    %v2375 = vor.u32 1.1754944e-38, %v2374
    %v2376 = vsel %vm2373, %v2375, %v2371
    %v2377 = vmul.f32 1.0, %v2376
    %v2378 = vrcp.pop %v2332
    %v2379 = vmul.f32 %v2332, %v2378
    %v2380 = vsub.f32 1.0, %v2379
    %v2381 = vmul.f32 %v2378, %v2380
    %v2382 = vadd.f32 %v2378, %v2381
    %vm2383 = vweird.f32 %v2332
    %vm2384 = vweird.f32 %v2378
    %vm2385 = vmor %vm2383, %vm2384
    %v2386 = vsel %vm2385, %v2378, %v2382
    %v2387 = vand.u32 2147483647, %v2332
    %vm2388 = vcmp.eq.f32.partialorder %v2387, 8.507059e+37
    %v2389 = vand.u32 %v2332, 2147483648
    %v2390 = vor.u32 1.1754944e-38, %v2389
    %v2391 = vsel %vm2388, %v2390, %v2386
    %v2392 = vmul.f32 1.0, %v2391
    %v2393 = vmul.f32 %v2347, %v2018
    %v2394 = vmul.f32 %v2362, %v2019
    %v2395 = vmul.f32 %v2377, %v2020
    %v2396 = vmul.f32 %v2392, %v2021
    %v2397 = vpack.c.bf16 %v2394, %v2393
    %v2398 = vpack.c.bf16 %v2396, %v2395
    %2399 = vmatpush.bf16.msra.mxu0 %v705
    %2400 = vmatpush.bf16.msra.mxu0 %v704
    %2401 = vmatpush.bf16.msra.mxu0 %v703
    %2402 = vmatpush.bf16.msra.mxu0 %v702
    %2403 = vmatpush.bf16.msra.mxu0 %v701
    %2404 = vmatpush.bf16.msra.mxu0 %v700
    %2405 = vmatpush.bf16.msra.mxu0 %v699
    %2406 = vmatpush.bf16.msra.mxu0 %v698
    %2407 = vmatmul.bf16.gmra.mxu0 %v2397
    %v2408 = vpop.f32.mrf.mxu0
    %v2409 = vadd.f32 0.0, %v2408
    %v2410 = vpop.f32.mrf.mxu0
    %v2411 = vadd.f32 0.0, %v2410
    %2412 = vmatmul.bf16.gmra.mxu0 %v2398
    %v2413 = vpop.f32.mrf.mxu0
    %v2414 = vadd.f32 0.0, %v2413
    %v2415 = vpop.f32.mrf.mxu0
    %v2416 = vadd.f32 0.0, %v2415
    %2417 = vdwg.mxu0
    %v2418 = vadd.f32 %v2183, %v2409
    %v2419 = vadd.f32 %v2186, %v2411
    %v2420 = vadd.f32 %v2189, %v2414
    %v2421 = vadd.f32 %v2192, %v2416
    %v2422 = vtanh.pop %v2418
    %v2423 = vtanh.pop %v2419
    %v2424 = vtanh.pop %v2420
    %v2425 = vtanh.pop %v2421
    %v2426 = vsub.f32 1.0, %v2267
    %v2427 = vsub.f32 1.0, %v2282
    %v2428 = vsub.f32 1.0, %v2297
    %v2429 = vsub.f32 1.0, %v2312
    %v2430 = vmul.f32 %v2426, %v2018
    %v2431 = vmul.f32 %v2427, %v2019
    %v2432 = vmul.f32 %v2428, %v2020
    %v2433 = vmul.f32 %v2429, %v2021
    %v2434 = vmul.f32 %v2267, %v2422
    %v2435 = vmul.f32 %v2282, %v2423
    %v2436 = vmul.f32 %v2297, %v2424
    %v2437 = vmul.f32 %v2312, %v2425
    %v2438 = vadd.f32 %v2430, %v2434
    %v2439 = vadd.f32 %v2431, %v2435
    %v2440 = vadd.f32 %v2432, %v2436
    %v2441 = vadd.f32 %v2433, %v2437
    %v2442 = vmul.f32 %v2438, %v757
    %v2443 = vmul.f32 %v2439, %v757
    %v2444 = vmul.f32 %v2440, %v757
    %v2445 = vmul.f32 %v2441, %v757
    %2446 = vadd.xlane.f32.xlu0 %v2442
    %v2447 = vpop.xlane.xlu0 %2446
    %2448 = vadd.xlane.f32.xlu0 %v2443
    %v2449 = vpop.xlane.xlu0 %2448
    %2450 = vadd.xlane.f32.xlu0 %v2444
    %v2451 = vpop.xlane.xlu0 %2450
    %2452 = vadd.xlane.f32.xlu0 %v2445
    %v2453 = vpop.xlane.xlu0 %2452
    %v2454 = vadd.f32 %v2447, %v771
    %v2455 = vadd.f32 %v2449, %v771
    %v2456 = vadd.f32 %v2451, %v771
    %v2457 = vadd.f32 %v2453, %v771
    %v2458 = vmul.f32 %v2438, %v777
    %v2459 = vmul.f32 %v2439, %v777
    %v2460 = vmul.f32 %v2440, %v777
    %v2461 = vmul.f32 %v2441, %v777
    %2462 = vadd.xlane.f32.xlu0 %v2458
    %v2463 = vpop.xlane.xlu0 %2462
    %2464 = vadd.xlane.f32.xlu0 %v2459
    %v2465 = vpop.xlane.xlu0 %2464
    %2466 = vadd.xlane.f32.xlu0 %v2460
    %v2467 = vpop.xlane.xlu0 %2466
    %2468 = vadd.xlane.f32.xlu0 %v2461
    %v2469 = vpop.xlane.xlu0 %2468
    %v2470 = vadd.f32 %v2463, %v771
    %v2471 = vadd.f32 %v2465, %v771
    %v2472 = vadd.f32 %v2467, %v771
    %v2473 = vadd.f32 %v2469, %v771
    %v2474 = vadd.f32 %v2054, %v2454
    %v2475 = vadd.f32 %v2055, %v2455
    %v2476 = vadd.f32 %v2056, %v2456
    %v2477 = vadd.f32 %v2057, %v2457
    %v2478 = vadd.f32 %v2058, %v2470
    %v2479 = vadd.f32 %v2059, %v2471
    %v2480 = vadd.f32 %v2060, %v2472
    %v2481 = vadd.f32 %v2061, %v2473
    %vm2482 = vcmask 7168
    %2483 = vst.msk [vmem:[%s9] sm:$0xff] %vm2482, %v2474
    %2484 = vst.msk [vmem:[%s9 + $0x8] sm:$0xff] %vm2482, %v2475
    %2485 = vst.msk [vmem:[%s9 + $0x10] sm:$0xff] %vm2482, %v2476
    %2486 = vst.msk [vmem:[%s9 + $0x18] sm:$0xff] %vm2482, %v2477
    %vm2487 = vcmask 15368
    %2488 = vst.msk [vmem:[%s9] sm:$0xff] %vm2487, %v2478
    %2489 = vst.msk [vmem:[%s9 + $0x8] sm:$0xff] %vm2487, %v2479
    %2490 = vst.msk [vmem:[%s9 + $0x10] sm:$0xff] %vm2487, %v2480
    %2491 = vst.msk [vmem:[%s9 + $0x18] sm:$0xff] %vm2487, %v2481
    // Predicated region
    $region76: #{raft_forward.10} parent=1 // pred_check
      _
    $region77: #{raft_forward.10} parent=1 // pred_check_branch
      %2493 = sbr.rel (0) target = $region79
    $region78: #{raft_forward.10} parent=1 // pred_region
      _
    $region79: #{raft_forward.10} parent=1 // pred_fallthru
      _
    // Predicated region
    $region80: #{raft_forward.10} parent=1 // pred_check
      _
    $region81: #{raft_forward.10} parent=1 // pred_check_branch
      %2495 = sbr.rel (0) target = $region83
    $region82: #{raft_forward.10} parent=1 // pred_region
      _
    $region83: #{raft_forward.10} parent=1 // pred_fallthru
      _

</llo_original>
